<compile_context>
chip_gen: v6e
topology: v6e:2x2x1
jax: 0.10.0
libtpu: 0.0.40
codegen_flags: <defaults>
</compile_context>

<pallas_src>
import functools

import jax
import jax.numpy as jnp
from jax import lax
from jax.experimental import pallas as pl
from jax.experimental.pallas import tpu as pltpu


_SQRT_HALF = 0.7071067811865476


def _erf_approx(x):
    # Abramowitz & Stegun 7.1.26, |error| <= 1.5e-7.  The divide is replaced by an
    # EUP approximate reciprocal (otherwise-idle slot); exp also goes to the EUP.
    p = 0.3275911
    a1, a2, a3, a4, a5 = (0.254829592, -0.284496736, 1.421413741,
                          -1.453152027, 1.061405429)
    ax = jnp.abs(x)
    t = pl.reciprocal(1.0 + p * ax, approx=True)
    poly = ((((a5 * t + a4) * t + a3) * t + a2) * t + a1) * t
    y = 1.0 - poly * jnp.exp(-ax * ax)
    return jnp.where(x < 0, -y, y)


def _gelu_exact(x):
    # nn.functional.gelu default (erf-based, approximate='none').
    return 0.5 * x * (1.0 + _erf_approx(x * _SQRT_HALF))


def _layer_norm(x, gamma, beta, eps):
    # PyTorch LayerNorm: biased variance over last dim, eps inside sqrt.
    mean = jnp.mean(x, axis=-1, keepdims=True)
    c = x - mean
    var = jnp.mean(c * c, axis=-1, keepdims=True)
    return c * lax.rsqrt(var + eps) * gamma + beta


def _bert_layer_kernel(
    x_ref,                                   # (TB, S, H) f32 input block
    wqkv_ref, bqkv_ref,                      # (H, 3H) bf16, (1, 3H) f32
    wo_ref, bo_ref,                          # (nH, dh, H) bf16, (1, H) f32
    ln1_g_ref, ln1_b_ref,                    # (1, H) f32
    w1_ref, b1_ref,                          # (H, I) bf16, (1, I) f32
    w2_ref, b2_ref,                          # (I, H) bf16, (1, H) f32
    ln2_g_ref, ln2_b_ref,                    # (1, H) f32
    hidden_out_ref,                          # (TB, S, H) f32
    attn_out_ref,                            # (TB, S, H) f32
    *,
    n_heads: int,
    eps: float,
    ffn_chunk: int,
):
    TB, S, H = x_ref.shape
    dh = H // n_heads
    R = TB * S
    scale = 1.0 / (dh ** 0.5)
    bf16 = jnp.bfloat16
    f32 = jnp.float32

    x = x_ref[...]                           # (TB, S, H) f32
    xf = x.reshape(R, H)                     # leading-dim merge only (cheap)

    # --- fused Q/K/V projection: one MXU pass, 3x wider output tile ---
    qkv = (jnp.dot(xf.astype(bf16), wqkv_ref[...], preferred_element_type=f32)
           + bqkv_ref[...])                  # (R, 3H) f32

    # --- attention: per-head slices, batched over the TB batch tile ---
    # TODO(synk): for long sequences (S >= ~512) switch the head loop to a
    #             fori_loop / flash-style KV tiling so (TB,S,S) scores never
    #             live as a whole (bounds vreg live ranges / spills).
    attn = jnp.zeros((R, H), f32)
    for h in range(n_heads):                 # static unroll; n_heads is small
        lo = h * dh
        qh = qkv[:, lo:lo + dh].reshape(TB, S, dh).astype(bf16)
        kh = qkv[:, H + lo:H + lo + dh].reshape(TB, S, dh).astype(bf16)
        vh = qkv[:, 2 * H + lo:2 * H + lo + dh].reshape(TB, S, dh).astype(bf16)
        # q_h @ k_h^T without materializing a transpose (contract last dims).
        s = jnp.einsum("bqd,bkd->bqk", qh, kh, preferred_element_type=f32) * scale
        s = s - jnp.max(s, axis=-1, keepdims=True)
        p = jnp.exp(s)
        p = p * pl.reciprocal(jnp.sum(p, axis=-1, keepdims=True), approx=True)
        # TODO(synk): attention_probs_dropout (training) not applied; eval identity.
        ctx = jnp.einsum("bqk,bkd->bqd", p.astype(bf16), vh,
                         preferred_element_type=f32)            # (TB, S, dh)
        # Per-head output projection accumulate (avoids heads->lanes transpose).
        attn = attn + jnp.dot(ctx.reshape(R, dh).astype(bf16), wo_ref[h],
                              preferred_element_type=f32)
    attn = attn + bo_ref[...]
    # TODO(synk): hidden_dropout after the output projection not applied (eval).
    attn_out_ref[...] = attn.reshape(TB, S, H)

    # --- add & norm (attention), f32 elementwise ---
    h1 = _layer_norm(xf + attn, ln1_g_ref[...], ln1_b_ref[...], eps)
    h1_bf = h1.astype(bf16)

    # --- feed-forward: Linear -> exact gelu -> Linear, chunked over I ---
    I = w1_ref.shape[1]
    ff = jnp.zeros((R, H), f32)
    for c0 in range(0, I, ffn_chunk):        # static unroll; few chunks
        c1 = min(I, c0 + ffn_chunk)
        inter = (jnp.dot(h1_bf, w1_ref[:, c0:c1], preferred_element_type=f32)
                 + b1_ref[:, c0:c1])
        inter = _gelu_exact(inter)
        ff = ff + jnp.dot(inter.astype(bf16), w2_ref[c0:c1, :],
                          preferred_element_type=f32)
    ff = ff + b2_ref[...]
    # TODO(synk): hidden_dropout after the second FF linear not applied (eval).

    # --- add & norm (feed-forward) ---
    hidden_out_ref[...] = _layer_norm(h1 + ff, ln2_g_ref[...], ln2_b_ref[...],
                                      eps).reshape(TB, S, H)


def _pick_batch_tile(batch: int, seq: int) -> int:
    """Largest divisor of `batch` with tile*seq <= ~128 rows (fills MXU rows /
    sublanes at small S); 1 when S >= 128 (keeps many parallel steps for v7x)."""
    if seq >= 128:
        return 1
    target = max(1, 128 // seq)
    best = 1
    for d in range(1, batch + 1):
        if batch % d == 0 and d <= target:
            best = d
    return best


def _prep_params(params, n_heads: int):
    bf16, f32 = jnp.bfloat16, jnp.float32
    H = params["w_q"].shape[0]
    dh = H // n_heads
    return {
        # Fused QKV weight/bias.
        "w_qkv": jnp.concatenate(
            [params["w_q"], params["w_k"], params["w_v"]], axis=1).astype(bf16),
        "b_qkv": jnp.concatenate(
            [params["b_q"], params["b_k"], params["b_v"]], axis=1).astype(f32),
        # Output projection reshaped per head: rows h*dh:(h+1)*dh -> wo[h].
        "w_o": params["w_o"].astype(bf16).reshape(n_heads, dh, H),
        "b_o": params["b_o"].astype(f32),
        "ln1_g": params["ln1_g"].astype(f32), "ln1_b": params["ln1_b"].astype(f32),
        "w_ff1": params["w_ff1"].astype(bf16), "b_ff1": params["b_ff1"].astype(f32),
        "w_ff2": params["w_ff2"].astype(bf16), "b_ff2": params["b_ff2"].astype(f32),
        "ln2_g": params["ln2_g"].astype(f32), "ln2_b": params["ln2_b"].astype(f32),
    }


def _call_kernel(x, p, *, n_heads, eps, ffn_chunk, single_buffer_weights):
    B, S, H = x.shape
    dh = H // n_heads
    I = p["w_ff1"].shape[1]
    tb = _pick_batch_tile(B, S)

    row_spec = pl.BlockSpec((tb, S, H), lambda b: (b, 0, 0))

    def wspec(shape):
        n = len(shape)

        def index_map(b):
            return (0,) * n

        if single_buffer_weights:
            # Grid-invariant weights are revisited, never re-fetched: single-buffer
            # them so v7x's smaller VMEM isn't spent double-buffering them.
            return pl.BlockSpec(shape, index_map, pipeline_mode=pl.Buffered(1))
        return pl.BlockSpec(shape, index_map)

    in_specs = [
        row_spec,
        wspec((H, 3 * H)), wspec((1, 3 * H)),          # Wqkv, bqkv
        wspec((n_heads, dh, H)), wspec((1, H)),        # Wo (per head), bo
        wspec((1, H)), wspec((1, H)),                  # LN1 gamma, beta
        wspec((H, I)), wspec((1, I)),                  # W_ff1, b_ff1
        wspec((I, H)), wspec((1, H)),                  # W_ff2, b_ff2
        wspec((1, H)), wspec((1, H)),                  # LN2 gamma, beta
    ]

    grid_spec = pltpu.PrefetchScalarGridSpec(
        num_scalar_prefetch=0,
        grid=(B // tb,),
        in_specs=in_specs,
        out_specs=(row_spec, row_spec),
    )

    kernel = functools.partial(_bert_layer_kernel, n_heads=n_heads, eps=eps,
                               ffn_chunk=min(ffn_chunk, I))

    return pl.pallas_call(
        kernel,
        grid_spec=grid_spec,
        out_shape=(
            jax.ShapeDtypeStruct((B, S, H), jnp.float32),   # hidden_states
            jax.ShapeDtypeStruct((B, S, H), jnp.float32),   # attentions (sublayer out)
        ),
        compiler_params=pltpu.CompilerParams(
            dimension_semantics=("parallel",),              # batch blocks independent
            vmem_limit_bytes=48 * 1024 * 1024,              # safe on v5e/v6e/v7x
        ),
    )(
        x.astype(jnp.float32),
        p["w_qkv"], p["b_qkv"],
        p["w_o"], p["b_o"],
        p["ln1_g"], p["ln1_b"],
        p["w_ff1"], p["b_ff1"],
        p["w_ff2"], p["b_ff2"],
        p["ln2_g"], p["ln2_b"],
    )


def bert_layer_forward(x, params, *, n_heads: int, layer_norm_eps: float,
                       ffn_chunk: int = 512):
    p = _prep_params(params, n_heads)
    try:
        return _call_kernel(x, p, n_heads=n_heads, eps=layer_norm_eps,
                            ffn_chunk=ffn_chunk, single_buffer_weights=True)
    except Exception:
        # pipeline_mode=pl.Buffered(1) unsupported on this JAX version; fall back to
        # default double-buffering (correctness unaffected, only weight VMEM grows).
        return _call_kernel(x, p, n_heads=n_heads, eps=layer_norm_eps,
                            ffn_chunk=ffn_chunk, single_buffer_weights=False)


def _reference(x, p, *, n_heads, eps, matmul_dtype=jnp.float32):
    """Pure-JAX reference.  matmul_dtype=bf16 mirrors the kernel's MXU precision."""
    B, S, H = x.shape
    dh = H // n_heads
    md = matmul_dtype
    prec = lax.Precision.HIGHEST if md == jnp.float32 else lax.Precision.DEFAULT

    def lin(a, w, b):
        return jnp.einsum("bsh,hd->bsd", a.astype(md), w.astype(md),
                          preferred_element_type=jnp.float32, precision=prec) + b

    def split_heads(t):
        return t.reshape(B, S, n_heads, dh).transpose(0, 2, 1, 3)

    q = split_heads(lin(x, p["w_q"], p["b_q"]))
    k = split_heads(lin(x, p["w_k"], p["b_k"]))
    v = split_heads(lin(x, p["w_v"], p["b_v"]))

    scores = jnp.einsum("bhqd,bhkd->bhqk", q.astype(md), k.astype(md),
                        preferred_element_type=jnp.float32,
                        precision=prec) * (1.0 / (dh ** 0.5))
    probs = jax.nn.softmax(scores, axis=-1)
    ctx = jnp.einsum("bhqk,bhkd->bhqd", probs.astype(md), v.astype(md),
                     preferred_element_type=jnp.float32, precision=prec)
    ctx = ctx.transpose(0, 2, 1, 3).reshape(B, S, H)
    attn = lin(ctx, p["w_o"], p["b_o"])

    def ln(y, g, bb):
        m = jnp.mean(y, axis=-1, keepdims=True)
        c = y - m
        var = jnp.mean(c * c, axis=-1, keepdims=True)
        return c * lax.rsqrt(var + eps) * g + bb

    h1 = ln(x + attn, p["ln1_g"], p["ln1_b"])
    inter = jax.nn.gelu(
        jnp.einsum("bsh,hi->bsi", h1.astype(md), p["w_ff1"].astype(md),
                   preferred_element_type=jnp.float32, precision=prec) + p["b_ff1"],
        approximate=False)
    ff = jnp.einsum("bsi,ih->bsh", inter.astype(md), p["w_ff2"].astype(md),
                    preferred_element_type=jnp.float32, precision=prec) + p["b_ff2"]
    out = ln(h1 + ff, p["ln2_g"], p["ln2_b"])
    return out, attn


if __name__ == "__main__":
    # Small shapes consistent with BertLayer.__init__.
    hidden_dim = 32
    n_heads = 4
    intermediate_dim = 128
    layer_norm_eps = 1e-12
    # attention_probs_dropout / hidden_dropout: identity in eval mode.
    B, S = 2, 8

    key = jax.random.PRNGKey(0)
    ks = jax.random.split(key, 17)

    def w(k, shape, scale=0.1):
        return (scale * jax.random.normal(k, shape, jnp.float32)).astype(jnp.float32)

    params = {
        "w_q": w(ks[0], (hidden_dim, hidden_dim)),
        "b_q": w(ks[1], (1, hidden_dim)),
        "w_k": w(ks[2], (hidden_dim, hidden_dim)),
        "b_k": w(ks[3], (1, hidden_dim)),
        "w_v": w(ks[4], (hidden_dim, hidden_dim)),
        "b_v": w(ks[5], (1, hidden_dim)),
        "w_o": w(ks[6], (hidden_dim, hidden_dim)),
        "b_o": w(ks[7], (1, hidden_dim)),
        "ln1_g": 1.0 + w(ks[8], (1, hidden_dim), 0.05),
        "ln1_b": w(ks[9], (1, hidden_dim), 0.05),
        "w_ff1": w(ks[10], (hidden_dim, intermediate_dim)),
        "b_ff1": w(ks[11], (1, intermediate_dim)),
        "w_ff2": w(ks[12], (intermediate_dim, hidden_dim)),
        "b_ff2": w(ks[13], (1, hidden_dim)),
        "ln2_g": 1.0 + w(ks[14], (1, hidden_dim), 0.05),
        "ln2_b": w(ks[15], (1, hidden_dim), 0.05),
    }
    x = jax.random.normal(ks[16], (B, S, hidden_dim), jnp.float32)

    hidden, attn = bert_layer_forward(x, params, n_heads=n_heads,
                                      layer_norm_eps=layer_norm_eps)
    hidden, attn = jax.block_until_ready((hidden, attn))

    assert hidden.shape == (B, S, hidden_dim)
    assert attn.shape == (B, S, hidden_dim)

    # Tight check against a precision-matched (bf16-matmul) reference.
    ref_h_bf, ref_a_bf = _reference(x, params, n_heads=n_heads, eps=layer_norm_eps,
                                    matmul_dtype=jnp.bfloat16)
    assert jnp.allclose(attn, ref_a_bf, atol=2e-2, rtol=2e-2), \
        "attention mismatch vs bf16 reference"
    assert jnp.allclose(hidden, ref_h_bf, atol=2e-2, rtol=2e-2), \
        "hidden mismatch vs bf16 reference"

    # Loose semantic check against the full-f32 module reference (bf16 MXU matmuls
    # intentionally loosen the achievable tolerance, as noted in review).
    ref_h_f32, ref_a_f32 = _reference(x, params, n_heads=n_heads, eps=layer_norm_eps,
                                      matmul_dtype=jnp.float32)
    assert jnp.allclose(attn, ref_a_f32, atol=1e-1, rtol=1e-1), \
        "attention mismatch vs f32 reference"
    assert jnp.allclose(hidden, ref_h_f32, atol=1e-1, rtol=1e-1), \
        "hidden mismatch vs f32 reference"

    print("KERNEL_OK")
</pallas_src>

<mosaic_0001>
module attributes {stable_mosaic.version = 11 : i64} {
  func.func @_bert_layer_kernel(%arg0: i32, %arg1: memref<2x8x32xf32, #tpu.memory_space<vmem>>, %arg2: memref<32x96xbf16, #tpu.memory_space<vmem>>, %arg3: memref<1x96xf32, #tpu.memory_space<vmem>>, %arg4: memref<4x8x32xbf16, #tpu.memory_space<vmem>>, %arg5: memref<1x32xf32, #tpu.memory_space<vmem>>, %arg6: memref<1x32xf32, #tpu.memory_space<vmem>>, %arg7: memref<1x32xf32, #tpu.memory_space<vmem>>, %arg8: memref<32x128xbf16, #tpu.memory_space<vmem>>, %arg9: memref<1x128xf32, #tpu.memory_space<vmem>>, %arg10: memref<128x32xbf16, #tpu.memory_space<vmem>>, %arg11: memref<1x32xf32, #tpu.memory_space<vmem>>, %arg12: memref<1x32xf32, #tpu.memory_space<vmem>>, %arg13: memref<1x32xf32, #tpu.memory_space<vmem>>, %arg14: memref<2x8x32xf32, #tpu.memory_space<vmem>>, %arg15: memref<2x8x32xf32, #tpu.memory_space<vmem>>) attributes {dimension_semantics = [#tpu.dimension_semantics<parallel>], iteration_bounds = array<i64: 1>, scalar_prefetch = 0 : i64, scratch_operands = 0 : i64, tpu.core_type = #tpu.core_type<tc>, window_params = [{transform_indices = @transform_0, window_bounds = array<i64: 2, 8, 32>}, {pipeline_mode = #tpu.pipeline_mode<synchronous>, transform_indices = @transform_1, window_bounds = array<i64: 32, 96>}, {pipeline_mode = #tpu.pipeline_mode<synchronous>, transform_indices = @transform_2, window_bounds = array<i64: 1, 96>}, {pipeline_mode = #tpu.pipeline_mode<synchronous>, transform_indices = @transform_3, window_bounds = array<i64: 4, 8, 32>}, {pipeline_mode = #tpu.pipeline_mode<synchronous>, transform_indices = @transform_4, window_bounds = array<i64: 1, 32>}, {pipeline_mode = #tpu.pipeline_mode<synchronous>, transform_indices = @transform_5, window_bounds = array<i64: 1, 32>}, {pipeline_mode = #tpu.pipeline_mode<synchronous>, transform_indices = @transform_6, window_bounds = array<i64: 1, 32>}, {pipeline_mode = #tpu.pipeline_mode<synchronous>, transform_indices = @transform_7, window_bounds = array<i64: 32, 128>}, {pipeline_mode = #tpu.pipeline_mode<synchronous>, transform_indices = @transform_8, window_bounds = array<i64: 1, 128>}, {pipeline_mode = #tpu.pipeline_mode<synchronous>, transform_indices = @transform_9, window_bounds = array<i64: 128, 32>}, {pipeline_mode = #tpu.pipeline_mode<synchronous>, transform_indices = @transform_10, window_bounds = array<i64: 1, 32>}, {pipeline_mode = #tpu.pipeline_mode<synchronous>, transform_indices = @transform_11, window_bounds = array<i64: 1, 32>}, {pipeline_mode = #tpu.pipeline_mode<synchronous>, transform_indices = @transform_12, window_bounds = array<i64: 1, 32>}, {transform_indices = @transform_13, window_bounds = array<i64: 2, 8, 32>}, {transform_indices = @transform_14, window_bounds = array<i64: 2, 8, 32>}]} {
    %c0 = arith.constant 0 : index
    %c0_0 = arith.constant 0 : index
    %c0_1 = arith.constant 0 : index
    %0 = vector.load %arg1[%c0, %c0_0, %c0_1] : memref<2x8x32xf32, #tpu.memory_space<vmem>>, vector<2x8x32xf32>
    %1 = vector.shape_cast %0 : vector<2x8x32xf32> to vector<16x32xf32>
    %2 = arith.truncf %1 : vector<16x32xf32> to vector<16x32xbf16>
    %c0_2 = arith.constant 0 : index
    %c0_3 = arith.constant 0 : index
    %3 = vector.load %arg2[%c0_2, %c0_3] : memref<32x96xbf16, #tpu.memory_space<vmem>>, vector<32x96xbf16>
    %cst = arith.constant dense<0.000000e+00> : vector<16x96xf32>
    %4 = tpu.matmul %2, %3, %cst {dimension_numbers = #tpu.dot_dimension_numbers<[1], [0], [0], [1], [0, 0, 1, 1], [], []>} : vector<16x32xbf16>, vector<32x96xbf16>, vector<16x96xf32> -> vector<16x96xf32>
    %c0_4 = arith.constant 0 : index
    %c0_5 = arith.constant 0 : index
    %5 = vector.load %arg3[%c0_4, %c0_5] : memref<1x96xf32, #tpu.memory_space<vmem>>, vector<1x96xf32>
    %6 = vector.broadcast %5 : vector<1x96xf32> to vector<16x96xf32>
    %7 = arith.addf %4, %6 : vector<16x96xf32>
    %cst_6 = arith.constant 0.000000e+00 : f32
    %8 = vector.broadcast %cst_6 : f32 to vector<16x32xf32>
    %9 = vector.extract_strided_slice %7 {offsets = [0, 0], sizes = [16, 8], strides = [1, 1]} : vector<16x96xf32> to vector<16x8xf32>
    %10 = vector.shape_cast %9 : vector<16x8xf32> to vector<2x8x8xf32>
    %11 = arith.truncf %10 : vector<2x8x8xf32> to vector<2x8x8xbf16>
    %12 = vector.extract_strided_slice %7 {offsets = [0, 32], sizes = [16, 8], strides = [1, 1]} : vector<16x96xf32> to vector<16x8xf32>
    %13 = vector.shape_cast %12 : vector<16x8xf32> to vector<2x8x8xf32>
    %14 = arith.truncf %13 : vector<2x8x8xf32> to vector<2x8x8xbf16>
    %15 = vector.extract_strided_slice %7 {offsets = [0, 64], sizes = [16, 8], strides = [1, 1]} : vector<16x96xf32> to vector<16x8xf32>
    %16 = vector.shape_cast %15 : vector<16x8xf32> to vector<2x8x8xf32>
    %17 = arith.truncf %16 : vector<2x8x8xf32> to vector<2x8x8xbf16>
    "tpu.trace_start"() <{level = 10 : i32, message = "bqd,bkd->bqk"}> : () -> ()
    %cst_7 = arith.constant dense<0.000000e+00> : vector<2x8x8xf32>
    %18 = tpu.matmul %11, %14, %cst_7 {dimension_numbers = #tpu.dot_dimension_numbers<[2], [2], [1], [1], [0, 0, 0, 1, 1, 1], [0], [0]>} : vector<2x8x8xbf16>, vector<2x8x8xbf16>, vector<2x8x8xf32> -> vector<2x8x8xf32>
    "tpu.trace_stop"() : () -> ()
    %cst_8 = arith.constant 0.353553385 : f32
    %19 = vector.broadcast %cst_8 : f32 to vector<2x8x8xf32>
    %20 = arith.mulf %18, %19 : vector<2x8x8xf32>
    %cst_9 = arith.constant dense<0xFF800000> : vector<2x8xf32>
    %21 = vector.multi_reduction <maximumf>, %20, %cst_9 [2] : vector<2x8x8xf32> to vector<2x8xf32>
    %22 = vector.shape_cast %21 : vector<2x8xf32> to vector<2x8x1xf32>
    %23 = vector.broadcast %22 : vector<2x8x1xf32> to vector<2x8x8xf32>
    %24 = arith.subf %20, %23 : vector<2x8x8xf32>
    %25 = math.exp %24 : vector<2x8x8xf32>
    %cst_10 = arith.constant dense<0.000000e+00> : vector<2x8xf32>
    %26 = vector.multi_reduction <add>, %25, %cst_10 [2] : vector<2x8x8xf32> to vector<2x8xf32>
    %27 = vector.shape_cast %26 : vector<2x8xf32> to vector<2x8x1xf32>
    %28 = tpu.reciprocal %27 {approx = true} : vector<2x8x1xf32> -> vector<2x8x1xf32>
    %29 = vector.broadcast %28 : vector<2x8x1xf32> to vector<2x8x8xf32>
    %30 = arith.mulf %25, %29 : vector<2x8x8xf32>
    %31 = arith.truncf %30 : vector<2x8x8xf32> to vector<2x8x8xbf16>
    "tpu.trace_start"() <{level = 10 : i32, message = "bqk,bkd->bqd"}> : () -> ()
    %cst_11 = arith.constant dense<0.000000e+00> : vector<2x8x8xf32>
    %32 = tpu.matmul %31, %17, %cst_11 {dimension_numbers = #tpu.dot_dimension_numbers<[2], [1], [1], [2], [0, 0, 0, 1, 1, 2], [0], [0]>} : vector<2x8x8xbf16>, vector<2x8x8xbf16>, vector<2x8x8xf32> -> vector<2x8x8xf32>
    "tpu.trace_stop"() : () -> ()
    %33 = vector.shape_cast %32 : vector<2x8x8xf32> to vector<16x8xf32>
    %34 = arith.truncf %33 : vector<16x8xf32> to vector<16x8xbf16>
    %c0_12 = arith.constant 0 : index
    %c0_13 = arith.constant 0 : index
    %c0_14 = arith.constant 0 : index
    %35 = vector.load %arg4[%c0_12, %c0_13, %c0_14] : memref<4x8x32xbf16, #tpu.memory_space<vmem>>, vector<1x8x32xbf16>
    %36 = vector.shape_cast %35 : vector<1x8x32xbf16> to vector<8x32xbf16>
    %cst_15 = arith.constant dense<0.000000e+00> : vector<16x32xf32>
    %37 = tpu.matmul %34, %36, %cst_15 {dimension_numbers = #tpu.dot_dimension_numbers<[1], [0], [0], [1], [0, 0, 1, 1], [], []>} : vector<16x8xbf16>, vector<8x32xbf16>, vector<16x32xf32> -> vector<16x32xf32>
    %38 = arith.addf %8, %37 : vector<16x32xf32>
    %39 = vector.extract_strided_slice %7 {offsets = [0, 8], sizes = [16, 8], strides = [1, 1]} : vector<16x96xf32> to vector<16x8xf32>
    %40 = vector.shape_cast %39 : vector<16x8xf32> to vector<2x8x8xf32>
    %41 = arith.truncf %40 : vector<2x8x8xf32> to vector<2x8x8xbf16>
    %42 = vector.extract_strided_slice %7 {offsets = [0, 40], sizes = [16, 8], strides = [1, 1]} : vector<16x96xf32> to vector<16x8xf32>
    %43 = vector.shape_cast %42 : vector<16x8xf32> to vector<2x8x8xf32>
    %44 = arith.truncf %43 : vector<2x8x8xf32> to vector<2x8x8xbf16>
    %45 = vector.extract_strided_slice %7 {offsets = [0, 72], sizes = [16, 8], strides = [1, 1]} : vector<16x96xf32> to vector<16x8xf32>
    %46 = vector.shape_cast %45 : vector<16x8xf32> to vector<2x8x8xf32>
    %47 = arith.truncf %46 : vector<2x8x8xf32> to vector<2x8x8xbf16>
    "tpu.trace_start"() <{level = 10 : i32, message = "bqd,bkd->bqk"}> : () -> ()
    %cst_16 = arith.constant dense<0.000000e+00> : vector<2x8x8xf32>
    %48 = tpu.matmul %41, %44, %cst_16 {dimension_numbers = #tpu.dot_dimension_numbers<[2], [2], [1], [1], [0, 0, 0, 1, 1, 1], [0], [0]>} : vector<2x8x8xbf16>, vector<2x8x8xbf16>, vector<2x8x8xf32> -> vector<2x8x8xf32>
    "tpu.trace_stop"() : () -> ()
    %cst_17 = arith.constant 0.353553385 : f32
    %49 = vector.broadcast %cst_17 : f32 to vector<2x8x8xf32>
    %50 = arith.mulf %48, %49 : vector<2x8x8xf32>
    %cst_18 = arith.constant dense<0xFF800000> : vector<2x8xf32>
    %51 = vector.multi_reduction <maximumf>, %50, %cst_18 [2] : vector<2x8x8xf32> to vector<2x8xf32>
    %52 = vector.shape_cast %51 : vector<2x8xf32> to vector<2x8x1xf32>
    %53 = vector.broadcast %52 : vector<2x8x1xf32> to vector<2x8x8xf32>
    %54 = arith.subf %50, %53 : vector<2x8x8xf32>
    %55 = math.exp %54 : vector<2x8x8xf32>
    %cst_19 = arith.constant dense<0.000000e+00> : vector<2x8xf32>
    %56 = vector.multi_reduction <add>, %55, %cst_19 [2] : vector<2x8x8xf32> to vector<2x8xf32>
    %57 = vector.shape_cast %56 : vector<2x8xf32> to vector<2x8x1xf32>
    %58 = tpu.reciprocal %57 {approx = true} : vector<2x8x1xf32> -> vector<2x8x1xf32>
    %59 = vector.broadcast %58 : vector<2x8x1xf32> to vector<2x8x8xf32>
    %60 = arith.mulf %55, %59 : vector<2x8x8xf32>
    %61 = arith.truncf %60 : vector<2x8x8xf32> to vector<2x8x8xbf16>
    "tpu.trace_start"() <{level = 10 : i32, message = "bqk,bkd->bqd"}> : () -> ()
    %cst_20 = arith.constant dense<0.000000e+00> : vector<2x8x8xf32>
    %62 = tpu.matmul %61, %47, %cst_20 {dimension_numbers = #tpu.dot_dimension_numbers<[2], [1], [1], [2], [0, 0, 0, 1, 1, 2], [0], [0]>} : vector<2x8x8xbf16>, vector<2x8x8xbf16>, vector<2x8x8xf32> -> vector<2x8x8xf32>
    "tpu.trace_stop"() : () -> ()
    %63 = vector.shape_cast %62 : vector<2x8x8xf32> to vector<16x8xf32>
    %64 = arith.truncf %63 : vector<16x8xf32> to vector<16x8xbf16>
    %c1 = arith.constant 1 : index
    %c0_21 = arith.constant 0 : index
    %c0_22 = arith.constant 0 : index
    %65 = vector.load %arg4[%c1, %c0_21, %c0_22] : memref<4x8x32xbf16, #tpu.memory_space<vmem>>, vector<1x8x32xbf16>
    %66 = vector.shape_cast %65 : vector<1x8x32xbf16> to vector<8x32xbf16>
    %cst_23 = arith.constant dense<0.000000e+00> : vector<16x32xf32>
    %67 = tpu.matmul %64, %66, %cst_23 {dimension_numbers = #tpu.dot_dimension_numbers<[1], [0], [0], [1], [0, 0, 1, 1], [], []>} : vector<16x8xbf16>, vector<8x32xbf16>, vector<16x32xf32> -> vector<16x32xf32>
    %68 = arith.addf %38, %67 : vector<16x32xf32>
    %69 = vector.extract_strided_slice %7 {offsets = [0, 16], sizes = [16, 8], strides = [1, 1]} : vector<16x96xf32> to vector<16x8xf32>
    %70 = vector.shape_cast %69 : vector<16x8xf32> to vector<2x8x8xf32>
    %71 = arith.truncf %70 : vector<2x8x8xf32> to vector<2x8x8xbf16>
    %72 = vector.extract_strided_slice %7 {offsets = [0, 48], sizes = [16, 8], strides = [1, 1]} : vector<16x96xf32> to vector<16x8xf32>
    %73 = vector.shape_cast %72 : vector<16x8xf32> to vector<2x8x8xf32>
    %74 = arith.truncf %73 : vector<2x8x8xf32> to vector<2x8x8xbf16>
    %75 = vector.extract_strided_slice %7 {offsets = [0, 80], sizes = [16, 8], strides = [1, 1]} : vector<16x96xf32> to vector<16x8xf32>
    %76 = vector.shape_cast %75 : vector<16x8xf32> to vector<2x8x8xf32>
    %77 = arith.truncf %76 : vector<2x8x8xf32> to vector<2x8x8xbf16>
    "tpu.trace_start"() <{level = 10 : i32, message = "bqd,bkd->bqk"}> : () -> ()
    %cst_24 = arith.constant dense<0.000000e+00> : vector<2x8x8xf32>
    %78 = tpu.matmul %71, %74, %cst_24 {dimension_numbers = #tpu.dot_dimension_numbers<[2], [2], [1], [1], [0, 0, 0, 1, 1, 1], [0], [0]>} : vector<2x8x8xbf16>, vector<2x8x8xbf16>, vector<2x8x8xf32> -> vector<2x8x8xf32>
    "tpu.trace_stop"() : () -> ()
    %cst_25 = arith.constant 0.353553385 : f32
    %79 = vector.broadcast %cst_25 : f32 to vector<2x8x8xf32>
    %80 = arith.mulf %78, %79 : vector<2x8x8xf32>
    %cst_26 = arith.constant dense<0xFF800000> : vector<2x8xf32>
    %81 = vector.multi_reduction <maximumf>, %80, %cst_26 [2] : vector<2x8x8xf32> to vector<2x8xf32>
    %82 = vector.shape_cast %81 : vector<2x8xf32> to vector<2x8x1xf32>
    %83 = vector.broadcast %82 : vector<2x8x1xf32> to vector<2x8x8xf32>
    %84 = arith.subf %80, %83 : vector<2x8x8xf32>
    %85 = math.exp %84 : vector<2x8x8xf32>
    %cst_27 = arith.constant dense<0.000000e+00> : vector<2x8xf32>
    %86 = vector.multi_reduction <add>, %85, %cst_27 [2] : vector<2x8x8xf32> to vector<2x8xf32>
    %87 = vector.shape_cast %86 : vector<2x8xf32> to vector<2x8x1xf32>
    %88 = tpu.reciprocal %87 {approx = true} : vector<2x8x1xf32> -> vector<2x8x1xf32>
    %89 = vector.broadcast %88 : vector<2x8x1xf32> to vector<2x8x8xf32>
    %90 = arith.mulf %85, %89 : vector<2x8x8xf32>
    %91 = arith.truncf %90 : vector<2x8x8xf32> to vector<2x8x8xbf16>
    "tpu.trace_start"() <{level = 10 : i32, message = "bqk,bkd->bqd"}> : () -> ()
    %cst_28 = arith.constant dense<0.000000e+00> : vector<2x8x8xf32>
    %92 = tpu.matmul %91, %77, %cst_28 {dimension_numbers = #tpu.dot_dimension_numbers<[2], [1], [1], [2], [0, 0, 0, 1, 1, 2], [0], [0]>} : vector<2x8x8xbf16>, vector<2x8x8xbf16>, vector<2x8x8xf32> -> vector<2x8x8xf32>
    "tpu.trace_stop"() : () -> ()
    %93 = vector.shape_cast %92 : vector<2x8x8xf32> to vector<16x8xf32>
    %94 = arith.truncf %93 : vector<16x8xf32> to vector<16x8xbf16>
    %c2 = arith.constant 2 : index
    %c0_29 = arith.constant 0 : index
    %c0_30 = arith.constant 0 : index
    %95 = vector.load %arg4[%c2, %c0_29, %c0_30] : memref<4x8x32xbf16, #tpu.memory_space<vmem>>, vector<1x8x32xbf16>
    %96 = vector.shape_cast %95 : vector<1x8x32xbf16> to vector<8x32xbf16>
    %cst_31 = arith.constant dense<0.000000e+00> : vector<16x32xf32>
    %97 = tpu.matmul %94, %96, %cst_31 {dimension_numbers = #tpu.dot_dimension_numbers<[1], [0], [0], [1], [0, 0, 1, 1], [], []>} : vector<16x8xbf16>, vector<8x32xbf16>, vector<16x32xf32> -> vector<16x32xf32>
    %98 = arith.addf %68, %97 : vector<16x32xf32>
    %99 = vector.extract_strided_slice %7 {offsets = [0, 24], sizes = [16, 8], strides = [1, 1]} : vector<16x96xf32> to vector<16x8xf32>
    %100 = vector.shape_cast %99 : vector<16x8xf32> to vector<2x8x8xf32>
    %101 = arith.truncf %100 : vector<2x8x8xf32> to vector<2x8x8xbf16>
    %102 = vector.extract_strided_slice %7 {offsets = [0, 56], sizes = [16, 8], strides = [1, 1]} : vector<16x96xf32> to vector<16x8xf32>
    %103 = vector.shape_cast %102 : vector<16x8xf32> to vector<2x8x8xf32>
    %104 = arith.truncf %103 : vector<2x8x8xf32> to vector<2x8x8xbf16>
    %105 = vector.extract_strided_slice %7 {offsets = [0, 88], sizes = [16, 8], strides = [1, 1]} : vector<16x96xf32> to vector<16x8xf32>
    %106 = vector.shape_cast %105 : vector<16x8xf32> to vector<2x8x8xf32>
    %107 = arith.truncf %106 : vector<2x8x8xf32> to vector<2x8x8xbf16>
    "tpu.trace_start"() <{level = 10 : i32, message = "bqd,bkd->bqk"}> : () -> ()
    %cst_32 = arith.constant dense<0.000000e+00> : vector<2x8x8xf32>
    %108 = tpu.matmul %101, %104, %cst_32 {dimension_numbers = #tpu.dot_dimension_numbers<[2], [2], [1], [1], [0, 0, 0, 1, 1, 1], [0], [0]>} : vector<2x8x8xbf16>, vector<2x8x8xbf16>, vector<2x8x8xf32> -> vector<2x8x8xf32>
    "tpu.trace_stop"() : () -> ()
    %cst_33 = arith.constant 0.353553385 : f32
    %109 = vector.broadcast %cst_33 : f32 to vector<2x8x8xf32>
    %110 = arith.mulf %108, %109 : vector<2x8x8xf32>
    %cst_34 = arith.constant dense<0xFF800000> : vector<2x8xf32>
    %111 = vector.multi_reduction <maximumf>, %110, %cst_34 [2] : vector<2x8x8xf32> to vector<2x8xf32>
    %112 = vector.shape_cast %111 : vector<2x8xf32> to vector<2x8x1xf32>
    %113 = vector.broadcast %112 : vector<2x8x1xf32> to vector<2x8x8xf32>
    %114 = arith.subf %110, %113 : vector<2x8x8xf32>
    %115 = math.exp %114 : vector<2x8x8xf32>
    %cst_35 = arith.constant dense<0.000000e+00> : vector<2x8xf32>
    %116 = vector.multi_reduction <add>, %115, %cst_35 [2] : vector<2x8x8xf32> to vector<2x8xf32>
    %117 = vector.shape_cast %116 : vector<2x8xf32> to vector<2x8x1xf32>
    %118 = tpu.reciprocal %117 {approx = true} : vector<2x8x1xf32> -> vector<2x8x1xf32>
    %119 = vector.broadcast %118 : vector<2x8x1xf32> to vector<2x8x8xf32>
    %120 = arith.mulf %115, %119 : vector<2x8x8xf32>
    %121 = arith.truncf %120 : vector<2x8x8xf32> to vector<2x8x8xbf16>
    "tpu.trace_start"() <{level = 10 : i32, message = "bqk,bkd->bqd"}> : () -> ()
    %cst_36 = arith.constant dense<0.000000e+00> : vector<2x8x8xf32>
    %122 = tpu.matmul %121, %107, %cst_36 {dimension_numbers = #tpu.dot_dimension_numbers<[2], [1], [1], [2], [0, 0, 0, 1, 1, 2], [0], [0]>} : vector<2x8x8xbf16>, vector<2x8x8xbf16>, vector<2x8x8xf32> -> vector<2x8x8xf32>
    "tpu.trace_stop"() : () -> ()
    %123 = vector.shape_cast %122 : vector<2x8x8xf32> to vector<16x8xf32>
    %124 = arith.truncf %123 : vector<16x8xf32> to vector<16x8xbf16>
    %c3 = arith.constant 3 : index
    %c0_37 = arith.constant 0 : index
    %c0_38 = arith.constant 0 : index
    %125 = vector.load %arg4[%c3, %c0_37, %c0_38] : memref<4x8x32xbf16, #tpu.memory_space<vmem>>, vector<1x8x32xbf16>
    %126 = vector.shape_cast %125 : vector<1x8x32xbf16> to vector<8x32xbf16>
    %cst_39 = arith.constant dense<0.000000e+00> : vector<16x32xf32>
    %127 = tpu.matmul %124, %126, %cst_39 {dimension_numbers = #tpu.dot_dimension_numbers<[1], [0], [0], [1], [0, 0, 1, 1], [], []>} : vector<16x8xbf16>, vector<8x32xbf16>, vector<16x32xf32> -> vector<16x32xf32>
    %128 = arith.addf %98, %127 : vector<16x32xf32>
    %c0_40 = arith.constant 0 : index
    %c0_41 = arith.constant 0 : index
    %129 = vector.load %arg5[%c0_40, %c0_41] : memref<1x32xf32, #tpu.memory_space<vmem>>, vector<1x32xf32>
    %130 = vector.broadcast %129 : vector<1x32xf32> to vector<16x32xf32>
    %131 = arith.addf %128, %130 : vector<16x32xf32>
    %132 = vector.shape_cast %131 : vector<16x32xf32> to vector<2x8x32xf32>
    %c0_42 = arith.constant 0 : index
    %c0_43 = arith.constant 0 : index
    %c0_44 = arith.constant 0 : index
    %133 = vector.load %arg15[%c0_42, %c0_43, %c0_44] : memref<2x8x32xf32, #tpu.memory_space<vmem>>, vector<2x8x32xf32>
    tpu.vector_store %arg15[%c0_42, %c0_43, %c0_44], %132 {strides = array<i32>} : memref<2x8x32xf32, #tpu.memory_space<vmem>>, vector<2x8x32xf32>,
    %134 = arith.addf %1, %131 : vector<16x32xf32>
    %c0_45 = arith.constant 0 : index
    %c0_46 = arith.constant 0 : index
    %135 = vector.load %arg6[%c0_45, %c0_46] : memref<1x32xf32, #tpu.memory_space<vmem>>, vector<1x32xf32>
    %c0_47 = arith.constant 0 : index
    %c0_48 = arith.constant 0 : index
    %136 = vector.load %arg7[%c0_47, %c0_48] : memref<1x32xf32, #tpu.memory_space<vmem>>, vector<1x32xf32>
    %cst_49 = arith.constant dense<0.000000e+00> : vector<16xf32>
    %137 = vector.multi_reduction <add>, %134, %cst_49 [1] : vector<16x32xf32> to vector<16xf32>
    %138 = vector.shape_cast %137 : vector<16xf32> to vector<16x1xf32>
    %cst_50 = arith.constant 3.200000e+01 : f32
    %139 = vector.broadcast %cst_50 : f32 to vector<16x1xf32>
    %140 = arith.divf %138, %139 : vector<16x1xf32>
    %141 = vector.broadcast %140 : vector<16x1xf32> to vector<16x32xf32>
    %142 = arith.subf %134, %141 : vector<16x32xf32>
    %143 = arith.mulf %142, %142 : vector<16x32xf32>
    %cst_51 = arith.constant dense<0.000000e+00> : vector<16xf32>
    %144 = vector.multi_reduction <add>, %143, %cst_51 [1] : vector<16x32xf32> to vector<16xf32>
    %145 = vector.shape_cast %144 : vector<16xf32> to vector<16x1xf32>
    %cst_52 = arith.constant 3.200000e+01 : f32
    %146 = vector.broadcast %cst_52 : f32 to vector<16x1xf32>
    %147 = arith.divf %145, %146 : vector<16x1xf32>
    %cst_53 = arith.constant 9.99999996E-13 : f32
    %148 = vector.broadcast %cst_53 : f32 to vector<16x1xf32>
    %149 = arith.addf %147, %148 : vector<16x1xf32>
    %150 = math.rsqrt %149 : vector<16x1xf32>
    %151 = vector.broadcast %150 : vector<16x1xf32> to vector<16x32xf32>
    %152 = arith.mulf %142, %151 : vector<16x32xf32>
    %153 = vector.broadcast %135 : vector<1x32xf32> to vector<16x32xf32>
    %154 = arith.mulf %152, %153 : vector<16x32xf32>
    %155 = vector.broadcast %136 : vector<1x32xf32> to vector<16x32xf32>
    %156 = arith.addf %154, %155 : vector<16x32xf32>
    %157 = arith.truncf %156 : vector<16x32xf32> to vector<16x32xbf16>
    %cst_54 = arith.constant 0.000000e+00 : f32
    %158 = vector.broadcast %cst_54 : f32 to vector<16x32xf32>
    %c0_55 = arith.constant 0 : index
    %c0_56 = arith.constant 0 : index
    %159 = vector.load %arg8[%c0_55, %c0_56] : memref<32x128xbf16, #tpu.memory_space<vmem>>, vector<32x128xbf16>
    %cst_57 = arith.constant dense<0.000000e+00> : vector<16x128xf32>
    %160 = tpu.matmul %157, %159, %cst_57 {dimension_numbers = #tpu.dot_dimension_numbers<[1], [0], [0], [1], [0, 0, 1, 1], [], []>} : vector<16x32xbf16>, vector<32x128xbf16>, vector<16x128xf32> -> vector<16x128xf32>
    %c0_58 = arith.constant 0 : index
    %c0_59 = arith.constant 0 : index
    %161 = vector.load %arg9[%c0_58, %c0_59] : memref<1x128xf32, #tpu.memory_space<vmem>>, vector<1x128xf32>
    %162 = vector.broadcast %161 : vector<1x128xf32> to vector<16x128xf32>
    %163 = arith.addf %160, %162 : vector<16x128xf32>
    %cst_60 = arith.constant 5.000000e-01 : f32
    %164 = vector.broadcast %cst_60 : f32 to vector<16x128xf32>
    %165 = arith.mulf %164, %163 : vector<16x128xf32>
    %cst_61 = arith.constant 0.707106769 : f32
    %166 = vector.broadcast %cst_61 : f32 to vector<16x128xf32>
    %167 = arith.mulf %163, %166 : vector<16x128xf32>
    %168 = math.absf %167 : vector<16x128xf32>
    %cst_62 = arith.constant 0.327591091 : f32
    %169 = vector.broadcast %cst_62 : f32 to vector<16x128xf32>
    %170 = arith.mulf %169, %168 : vector<16x128xf32>
    %cst_63 = arith.constant 1.000000e+00 : f32
    %171 = vector.broadcast %cst_63 : f32 to vector<16x128xf32>
    %172 = arith.addf %171, %170 : vector<16x128xf32>
    %173 = tpu.reciprocal %172 {approx = true} : vector<16x128xf32> -> vector<16x128xf32>
    %cst_64 = arith.constant 1.06140542 : f32
    %174 = vector.broadcast %cst_64 : f32 to vector<16x128xf32>
    %175 = arith.mulf %174, %173 : vector<16x128xf32>
    %cst_65 = arith.constant -1.45315206 : f32
    %176 = vector.broadcast %cst_65 : f32 to vector<16x128xf32>
    %177 = arith.addf %175, %176 : vector<16x128xf32>
    %178 = arith.mulf %177, %173 : vector<16x128xf32>
    %cst_66 = arith.constant 1.42141378 : f32
    %179 = vector.broadcast %cst_66 : f32 to vector<16x128xf32>
    %180 = arith.addf %178, %179 : vector<16x128xf32>
    %181 = arith.mulf %180, %173 : vector<16x128xf32>
    %cst_67 = arith.constant -0.284496725 : f32
    %182 = vector.broadcast %cst_67 : f32 to vector<16x128xf32>
    %183 = arith.addf %181, %182 : vector<16x128xf32>
    %184 = arith.mulf %183, %173 : vector<16x128xf32>
    %cst_68 = arith.constant 0.254829586 : f32
    %185 = vector.broadcast %cst_68 : f32 to vector<16x128xf32>
    %186 = arith.addf %184, %185 : vector<16x128xf32>
    %187 = arith.mulf %186, %173 : vector<16x128xf32>
    %cst_69 = arith.constant 0.000000e+00 : f32
    %188 = vector.broadcast %cst_69 : f32 to vector<16x128xf32>
    %189 = arith.subf %188, %168 : vector<16x128xf32>
    %190 = arith.mulf %189, %168 : vector<16x128xf32>
    %191 = math.exp %190 : vector<16x128xf32>
    %192 = arith.mulf %187, %191 : vector<16x128xf32>
    %cst_70 = arith.constant 1.000000e+00 : f32
    %193 = vector.broadcast %cst_70 : f32 to vector<16x128xf32>
    %194 = arith.subf %193, %192 : vector<16x128xf32>
    %cst_71 = arith.constant 0.000000e+00 : f32
    %195 = vector.broadcast %cst_71 : f32 to vector<16x128xf32>
    %196 = arith.cmpf olt, %167, %195 : vector<16x128xf32>
    %cst_72 = arith.constant 0.000000e+00 : f32
    %197 = vector.broadcast %cst_72 : f32 to vector<16x128xf32>
    %198 = arith.subf %197, %194 : vector<16x128xf32>
    %199 = arith.select %196, %198, %194 : vector<16x128xi1>, vector<16x128xf32>
    %cst_73 = arith.constant 1.000000e+00 : f32
    %200 = vector.broadcast %cst_73 : f32 to vector<16x128xf32>
    %201 = arith.addf %200, %199 : vector<16x128xf32>
    %202 = arith.mulf %165, %201 : vector<16x128xf32>
    %203 = arith.truncf %202 : vector<16x128xf32> to vector<16x128xbf16>
    %c0_74 = arith.constant 0 : index
    %c0_75 = arith.constant 0 : index
    %204 = vector.load %arg10[%c0_74, %c0_75] : memref<128x32xbf16, #tpu.memory_space<vmem>>, vector<128x32xbf16>
    %cst_76 = arith.constant dense<0.000000e+00> : vector<16x32xf32>
    %205 = tpu.matmul %203, %204, %cst_76 {dimension_numbers = #tpu.dot_dimension_numbers<[1], [0], [0], [1], [0, 0, 1, 1], [], []>} : vector<16x128xbf16>, vector<128x32xbf16>, vector<16x32xf32> -> vector<16x32xf32>
    %206 = arith.addf %158, %205 : vector<16x32xf32>
    %c0_77 = arith.constant 0 : index
    %c0_78 = arith.constant 0 : index
    %207 = vector.load %arg11[%c0_77, %c0_78] : memref<1x32xf32, #tpu.memory_space<vmem>>, vector<1x32xf32>
    %208 = vector.broadcast %207 : vector<1x32xf32> to vector<16x32xf32>
    %209 = arith.addf %206, %208 : vector<16x32xf32>
    %210 = arith.addf %156, %209 : vector<16x32xf32>
    %c0_79 = arith.constant 0 : index
    %c0_80 = arith.constant 0 : index
    %211 = vector.load %arg12[%c0_79, %c0_80] : memref<1x32xf32, #tpu.memory_space<vmem>>, vector<1x32xf32>
    %c0_81 = arith.constant 0 : index
    %c0_82 = arith.constant 0 : index
    %212 = vector.load %arg13[%c0_81, %c0_82] : memref<1x32xf32, #tpu.memory_space<vmem>>, vector<1x32xf32>
    %cst_83 = arith.constant dense<0.000000e+00> : vector<16xf32>
    %213 = vector.multi_reduction <add>, %210, %cst_83 [1] : vector<16x32xf32> to vector<16xf32>
    %214 = vector.shape_cast %213 : vector<16xf32> to vector<16x1xf32>
    %cst_84 = arith.constant 3.200000e+01 : f32
    %215 = vector.broadcast %cst_84 : f32 to vector<16x1xf32>
    %216 = arith.divf %214, %215 : vector<16x1xf32>
    %217 = vector.broadcast %216 : vector<16x1xf32> to vector<16x32xf32>
    %218 = arith.subf %210, %217 : vector<16x32xf32>
    %219 = arith.mulf %218, %218 : vector<16x32xf32>
    %cst_85 = arith.constant dense<0.000000e+00> : vector<16xf32>
    %220 = vector.multi_reduction <add>, %219, %cst_85 [1] : vector<16x32xf32> to vector<16xf32>
    %221 = vector.shape_cast %220 : vector<16xf32> to vector<16x1xf32>
    %cst_86 = arith.constant 3.200000e+01 : f32
    %222 = vector.broadcast %cst_86 : f32 to vector<16x1xf32>
    %223 = arith.divf %221, %222 : vector<16x1xf32>
    %cst_87 = arith.constant 9.99999996E-13 : f32
    %224 = vector.broadcast %cst_87 : f32 to vector<16x1xf32>
    %225 = arith.addf %223, %224 : vector<16x1xf32>
    %226 = math.rsqrt %225 : vector<16x1xf32>
    %227 = vector.broadcast %226 : vector<16x1xf32> to vector<16x32xf32>
    %228 = arith.mulf %218, %227 : vector<16x32xf32>
    %229 = vector.broadcast %211 : vector<1x32xf32> to vector<16x32xf32>
    %230 = arith.mulf %228, %229 : vector<16x32xf32>
    %231 = vector.broadcast %212 : vector<1x32xf32> to vector<16x32xf32>
    %232 = arith.addf %230, %231 : vector<16x32xf32>
    %233 = vector.shape_cast %232 : vector<16x32xf32> to vector<2x8x32xf32>
    %c0_88 = arith.constant 0 : index
    %c0_89 = arith.constant 0 : index
    %c0_90 = arith.constant 0 : index
    %234 = vector.load %arg14[%c0_88, %c0_89, %c0_90] : memref<2x8x32xf32, #tpu.memory_space<vmem>>, vector<2x8x32xf32>
    tpu.vector_store %arg14[%c0_88, %c0_89, %c0_90], %233 {strides = array<i32>} : memref<2x8x32xf32, #tpu.memory_space<vmem>>, vector<2x8x32xf32>,
    return
  }
  func.func @transform_0(%arg0: i32) -> (i32, i32, i32) {
    %c0_i32 = arith.constant 0 : i32
    %c0_i32_0 = arith.constant 0 : i32
    %c0_i32_1 = arith.constant 0 : i32
    return %arg0, %c0_i32, %c0_i32_0 : i32, i32, i32
  }
  func.func @transform_1(%arg0: i32) -> (i32, i32) {
    %c0_i32 = arith.constant 0 : i32
    %c0_i32_0 = arith.constant 0 : i32
    %c0_i32_1 = arith.constant 0 : i32
    return %c0_i32, %c0_i32_0 : i32, i32
  }
  func.func @transform_2(%arg0: i32) -> (i32, i32) {
    %c0_i32 = arith.constant 0 : i32
    %c0_i32_0 = arith.constant 0 : i32
    %c0_i32_1 = arith.constant 0 : i32
    return %c0_i32, %c0_i32_0 : i32, i32
  }
  func.func @transform_3(%arg0: i32) -> (i32, i32, i32) {
    %c0_i32 = arith.constant 0 : i32
    %c0_i32_0 = arith.constant 0 : i32
    %c0_i32_1 = arith.constant 0 : i32
    %c0_i32_2 = arith.constant 0 : i32
    return %c0_i32, %c0_i32_0, %c0_i32_1 : i32, i32, i32
  }
  func.func @transform_4(%arg0: i32) -> (i32, i32) {
    %c0_i32 = arith.constant 0 : i32
    %c0_i32_0 = arith.constant 0 : i32
    %c0_i32_1 = arith.constant 0 : i32
    return %c0_i32, %c0_i32_0 : i32, i32
  }
  func.func @transform_5(%arg0: i32) -> (i32, i32) {
    %c0_i32 = arith.constant 0 : i32
    %c0_i32_0 = arith.constant 0 : i32
    %c0_i32_1 = arith.constant 0 : i32
    return %c0_i32, %c0_i32_0 : i32, i32
  }
  func.func @transform_6(%arg0: i32) -> (i32, i32) {
    %c0_i32 = arith.constant 0 : i32
    %c0_i32_0 = arith.constant 0 : i32
    %c0_i32_1 = arith.constant 0 : i32
    return %c0_i32, %c0_i32_0 : i32, i32
  }
  func.func @transform_7(%arg0: i32) -> (i32, i32) {
    %c0_i32 = arith.constant 0 : i32
    %c0_i32_0 = arith.constant 0 : i32
    %c0_i32_1 = arith.constant 0 : i32
    return %c0_i32, %c0_i32_0 : i32, i32
  }
  func.func @transform_8(%arg0: i32) -> (i32, i32) {
    %c0_i32 = arith.constant 0 : i32
    %c0_i32_0 = arith.constant 0 : i32
    %c0_i32_1 = arith.constant 0 : i32
    return %c0_i32, %c0_i32_0 : i32, i32
  }
  func.func @transform_9(%arg0: i32) -> (i32, i32) {
    %c0_i32 = arith.constant 0 : i32
    %c0_i32_0 = arith.constant 0 : i32
    %c0_i32_1 = arith.constant 0 : i32
    return %c0_i32, %c0_i32_0 : i32, i32
  }
  func.func @transform_10(%arg0: i32) -> (i32, i32) {
    %c0_i32 = arith.constant 0 : i32
    %c0_i32_0 = arith.constant 0 : i32
    %c0_i32_1 = arith.constant 0 : i32
    return %c0_i32, %c0_i32_0 : i32, i32
  }
  func.func @transform_11(%arg0: i32) -> (i32, i32) {
    %c0_i32 = arith.constant 0 : i32
    %c0_i32_0 = arith.constant 0 : i32
    %c0_i32_1 = arith.constant 0 : i32
    return %c0_i32, %c0_i32_0 : i32, i32
  }
  func.func @transform_12(%arg0: i32) -> (i32, i32) {
    %c0_i32 = arith.constant 0 : i32
    %c0_i32_0 = arith.constant 0 : i32
    %c0_i32_1 = arith.constant 0 : i32
    return %c0_i32, %c0_i32_0 : i32, i32
  }
  func.func @transform_13(%arg0: i32) -> (i32, i32, i32) {
    %c0_i32 = arith.constant 0 : i32
    %c0_i32_0 = arith.constant 0 : i32
    %c0_i32_1 = arith.constant 0 : i32
    return %arg0, %c0_i32, %c0_i32_0 : i32, i32, i32
  }
  func.func @transform_14(%arg0: i32) -> (i32, i32, i32) {
    %c0_i32 = arith.constant 0 : i32
    %c0_i32_0 = arith.constant 0 : i32
    %c0_i32_1 = arith.constant 0 : i32
    return %arg0, %c0_i32, %c0_i32_0 : i32, i32, i32
  }
}

module attributes {stable_mosaic.version = 11 : i64} {
  func.func @_bert_layer_kernel(%arg0: i32, %arg1: memref<2x8x32xf32, #tpu.memory_space<vmem>>, %arg2: memref<32x96xbf16, #tpu.memory_space<vmem>>, %arg3: memref<1x96xf32, #tpu.memory_space<vmem>>, %arg4: memref<4x8x32xbf16, #tpu.memory_space<vmem>>, %arg5: memref<1x32xf32, #tpu.memory_space<vmem>>, %arg6: memref<1x32xf32, #tpu.memory_space<vmem>>, %arg7: memref<1x32xf32, #tpu.memory_space<vmem>>, %arg8: memref<32x128xbf16, #tpu.memory_space<vmem>>, %arg9: memref<1x128xf32, #tpu.memory_space<vmem>>, %arg10: memref<128x32xbf16, #tpu.memory_space<vmem>>, %arg11: memref<1x32xf32, #tpu.memory_space<vmem>>, %arg12: memref<1x32xf32, #tpu.memory_space<vmem>>, %arg13: memref<1x32xf32, #tpu.memory_space<vmem>>, %arg14: memref<2x8x32xf32, #tpu.memory_space<vmem>>, %arg15: memref<2x8x32xf32, #tpu.memory_space<vmem>>) attributes {dimension_semantics = [#tpu.dimension_semantics<parallel>], iteration_bounds = array<i64: 1>, scalar_prefetch = 0 : i64, scratch_operands = 0 : i64, tpu.core_type = #tpu.core_type<tc>, window_params = [{transform_indices = @transform_0, window_bounds = array<i64: 2, 8, 32>}, {pipeline_mode = #tpu.pipeline_mode<synchronous>, transform_indices = @transform_1, window_bounds = array<i64: 32, 96>}, {pipeline_mode = #tpu.pipeline_mode<synchronous>, transform_indices = @transform_2, window_bounds = array<i64: 1, 96>}, {pipeline_mode = #tpu.pipeline_mode<synchronous>, transform_indices = @transform_3, window_bounds = array<i64: 4, 8, 32>}, {pipeline_mode = #tpu.pipeline_mode<synchronous>, transform_indices = @transform_4, window_bounds = array<i64: 1, 32>}, {pipeline_mode = #tpu.pipeline_mode<synchronous>, transform_indices = @transform_5, window_bounds = array<i64: 1, 32>}, {pipeline_mode = #tpu.pipeline_mode<synchronous>, transform_indices = @transform_6, window_bounds = array<i64: 1, 32>}, {pipeline_mode = #tpu.pipeline_mode<synchronous>, transform_indices = @transform_7, window_bounds = array<i64: 32, 128>}, {pipeline_mode = #tpu.pipeline_mode<synchronous>, transform_indices = @transform_8, window_bounds = array<i64: 1, 128>}, {pipeline_mode = #tpu.pipeline_mode<synchronous>, transform_indices = @transform_9, window_bounds = array<i64: 128, 32>}, {pipeline_mode = #tpu.pipeline_mode<synchronous>, transform_indices = @transform_10, window_bounds = array<i64: 1, 32>}, {pipeline_mode = #tpu.pipeline_mode<synchronous>, transform_indices = @transform_11, window_bounds = array<i64: 1, 32>}, {pipeline_mode = #tpu.pipeline_mode<synchronous>, transform_indices = @transform_12, window_bounds = array<i64: 1, 32>}, {transform_indices = @transform_13, window_bounds = array<i64: 2, 8, 32>}, {transform_indices = @transform_14, window_bounds = array<i64: 2, 8, 32>}]} {
    %c0 = arith.constant 0 : index
    %c0_0 = arith.constant 0 : index
    %c0_1 = arith.constant 0 : index
    %0 = vector.load %arg1[%c0, %c0_0, %c0_1] : memref<2x8x32xf32, #tpu.memory_space<vmem>>, vector<2x8x32xf32>
    %1 = vector.shape_cast %0 : vector<2x8x32xf32> to vector<16x32xf32>
    %2 = arith.truncf %1 : vector<16x32xf32> to vector<16x32xbf16>
    %c0_2 = arith.constant 0 : index
    %c0_3 = arith.constant 0 : index
    %3 = vector.load %arg2[%c0_2, %c0_3] : memref<32x96xbf16, #tpu.memory_space<vmem>>, vector<32x96xbf16>
    %cst = arith.constant dense<0.000000e+00> : vector<16x96xf32>
    %4 = tpu.matmul %2, %3, %cst {dimension_numbers = #tpu.dot_dimension_numbers<[1], [0], [0], [1], [0, 0, 1, 1], [], []>} : vector<16x32xbf16>, vector<32x96xbf16>, vector<16x96xf32> -> vector<16x96xf32>
    %c0_4 = arith.constant 0 : index
    %c0_5 = arith.constant 0 : index
    %5 = vector.load %arg3[%c0_4, %c0_5] : memref<1x96xf32, #tpu.memory_space<vmem>>, vector<1x96xf32>
    %6 = vector.broadcast %5 : vector<1x96xf32> to vector<16x96xf32>
    %7 = arith.addf %4, %6 : vector<16x96xf32>
    %cst_6 = arith.constant 0.000000e+00 : f32
    %8 = vector.broadcast %cst_6 : f32 to vector<16x32xf32>
    %9 = vector.extract_strided_slice %7 {offsets = [0, 0], sizes = [16, 8], strides = [1, 1]} : vector<16x96xf32> to vector<16x8xf32>
    %10 = vector.shape_cast %9 : vector<16x8xf32> to vector<2x8x8xf32>
    %11 = arith.truncf %10 : vector<2x8x8xf32> to vector<2x8x8xbf16>
    %12 = vector.extract_strided_slice %7 {offsets = [0, 32], sizes = [16, 8], strides = [1, 1]} : vector<16x96xf32> to vector<16x8xf32>
    %13 = vector.shape_cast %12 : vector<16x8xf32> to vector<2x8x8xf32>
    %14 = arith.truncf %13 : vector<2x8x8xf32> to vector<2x8x8xbf16>
    %15 = vector.extract_strided_slice %7 {offsets = [0, 64], sizes = [16, 8], strides = [1, 1]} : vector<16x96xf32> to vector<16x8xf32>
    %16 = vector.shape_cast %15 : vector<16x8xf32> to vector<2x8x8xf32>
    %17 = arith.truncf %16 : vector<2x8x8xf32> to vector<2x8x8xbf16>
    "tpu.trace_start"() <{level = 10 : i32, message = "bqd,bkd->bqk"}> : () -> ()
    %cst_7 = arith.constant dense<0.000000e+00> : vector<2x8x8xf32>
    %18 = tpu.matmul %11, %14, %cst_7 {dimension_numbers = #tpu.dot_dimension_numbers<[2], [2], [1], [1], [0, 0, 0, 1, 1, 1], [0], [0]>} : vector<2x8x8xbf16>, vector<2x8x8xbf16>, vector<2x8x8xf32> -> vector<2x8x8xf32>
    "tpu.trace_stop"() : () -> ()
    %cst_8 = arith.constant 0.353553385 : f32
    %19 = vector.broadcast %cst_8 : f32 to vector<2x8x8xf32>
    %20 = arith.mulf %18, %19 : vector<2x8x8xf32>
    %cst_9 = arith.constant dense<0xFF800000> : vector<2x8xf32>
    %21 = vector.multi_reduction <maximumf>, %20, %cst_9 [2] : vector<2x8x8xf32> to vector<2x8xf32>
    %22 = vector.shape_cast %21 : vector<2x8xf32> to vector<2x8x1xf32>
    %23 = vector.broadcast %22 : vector<2x8x1xf32> to vector<2x8x8xf32>
    %24 = arith.subf %20, %23 : vector<2x8x8xf32>
    %25 = math.exp %24 : vector<2x8x8xf32>
    %cst_10 = arith.constant dense<0.000000e+00> : vector<2x8xf32>
    %26 = vector.multi_reduction <add>, %25, %cst_10 [2] : vector<2x8x8xf32> to vector<2x8xf32>
    %27 = vector.shape_cast %26 : vector<2x8xf32> to vector<2x8x1xf32>
    %28 = tpu.reciprocal %27 {approx = true} : vector<2x8x1xf32> -> vector<2x8x1xf32>
    %29 = vector.broadcast %28 : vector<2x8x1xf32> to vector<2x8x8xf32>
    %30 = arith.mulf %25, %29 : vector<2x8x8xf32>
    %31 = arith.truncf %30 : vector<2x8x8xf32> to vector<2x8x8xbf16>
    "tpu.trace_start"() <{level = 10 : i32, message = "bqk,bkd->bqd"}> : () -> ()
    %cst_11 = arith.constant dense<0.000000e+00> : vector<2x8x8xf32>
    %32 = tpu.matmul %31, %17, %cst_11 {dimension_numbers = #tpu.dot_dimension_numbers<[2], [1], [1], [2], [0, 0, 0, 1, 1, 2], [0], [0]>} : vector<2x8x8xbf16>, vector<2x8x8xbf16>, vector<2x8x8xf32> -> vector<2x8x8xf32>
    "tpu.trace_stop"() : () -> ()
    %33 = vector.shape_cast %32 : vector<2x8x8xf32> to vector<16x8xf32>
    %34 = arith.truncf %33 : vector<16x8xf32> to vector<16x8xbf16>
    %c0_12 = arith.constant 0 : index
    %c0_13 = arith.constant 0 : index
    %c0_14 = arith.constant 0 : index
    %35 = vector.load %arg4[%c0_12, %c0_13, %c0_14] : memref<4x8x32xbf16, #tpu.memory_space<vmem>>, vector<1x8x32xbf16>
    %36 = vector.shape_cast %35 : vector<1x8x32xbf16> to vector<8x32xbf16>
    %cst_15 = arith.constant dense<0.000000e+00> : vector<16x32xf32>
    %37 = tpu.matmul %34, %36, %cst_15 {dimension_numbers = #tpu.dot_dimension_numbers<[1], [0], [0], [1], [0, 0, 1, 1], [], []>} : vector<16x8xbf16>, vector<8x32xbf16>, vector<16x32xf32> -> vector<16x32xf32>
    %38 = arith.addf %8, %37 : vector<16x32xf32>
    %39 = vector.extract_strided_slice %7 {offsets = [0, 8], sizes = [16, 8], strides = [1, 1]} : vector<16x96xf32> to vector<16x8xf32>
    %40 = vector.shape_cast %39 : vector<16x8xf32> to vector<2x8x8xf32>
    %41 = arith.truncf %40 : vector<2x8x8xf32> to vector<2x8x8xbf16>
    %42 = vector.extract_strided_slice %7 {offsets = [0, 40], sizes = [16, 8], strides = [1, 1]} : vector<16x96xf32> to vector<16x8xf32>
    %43 = vector.shape_cast %42 : vector<16x8xf32> to vector<2x8x8xf32>
    %44 = arith.truncf %43 : vector<2x8x8xf32> to vector<2x8x8xbf16>
    %45 = vector.extract_strided_slice %7 {offsets = [0, 72], sizes = [16, 8], strides = [1, 1]} : vector<16x96xf32> to vector<16x8xf32>
    %46 = vector.shape_cast %45 : vector<16x8xf32> to vector<2x8x8xf32>
    %47 = arith.truncf %46 : vector<2x8x8xf32> to vector<2x8x8xbf16>
    "tpu.trace_start"() <{level = 10 : i32, message = "bqd,bkd->bqk"}> : () -> ()
    %cst_16 = arith.constant dense<0.000000e+00> : vector<2x8x8xf32>
    %48 = tpu.matmul %41, %44, %cst_16 {dimension_numbers = #tpu.dot_dimension_numbers<[2], [2], [1], [1], [0, 0, 0, 1, 1, 1], [0], [0]>} : vector<2x8x8xbf16>, vector<2x8x8xbf16>, vector<2x8x8xf32> -> vector<2x8x8xf32>
    "tpu.trace_stop"() : () -> ()
    %cst_17 = arith.constant 0.353553385 : f32
    %49 = vector.broadcast %cst_17 : f32 to vector<2x8x8xf32>
    %50 = arith.mulf %48, %49 : vector<2x8x8xf32>
    %cst_18 = arith.constant dense<0xFF800000> : vector<2x8xf32>
    %51 = vector.multi_reduction <maximumf>, %50, %cst_18 [2] : vector<2x8x8xf32> to vector<2x8xf32>
    %52 = vector.shape_cast %51 : vector<2x8xf32> to vector<2x8x1xf32>
    %53 = vector.broadcast %52 : vector<2x8x1xf32> to vector<2x8x8xf32>
    %54 = arith.subf %50, %53 : vector<2x8x8xf32>
    %55 = math.exp %54 : vector<2x8x8xf32>
    %cst_19 = arith.constant dense<0.000000e+00> : vector<2x8xf32>
    %56 = vector.multi_reduction <add>, %55, %cst_19 [2] : vector<2x8x8xf32> to vector<2x8xf32>
    %57 = vector.shape_cast %56 : vector<2x8xf32> to vector<2x8x1xf32>
    %58 = tpu.reciprocal %57 {approx = true} : vector<2x8x1xf32> -> vector<2x8x1xf32>
    %59 = vector.broadcast %58 : vector<2x8x1xf32> to vector<2x8x8xf32>
    %60 = arith.mulf %55, %59 : vector<2x8x8xf32>
    %61 = arith.truncf %60 : vector<2x8x8xf32> to vector<2x8x8xbf16>
    "tpu.trace_start"() <{level = 10 : i32, message = "bqk,bkd->bqd"}> : () -> ()
    %cst_20 = arith.constant dense<0.000000e+00> : vector<2x8x8xf32>
    %62 = tpu.matmul %61, %47, %cst_20 {dimension_numbers = #tpu.dot_dimension_numbers<[2], [1], [1], [2], [0, 0, 0, 1, 1, 2], [0], [0]>} : vector<2x8x8xbf16>, vector<2x8x8xbf16>, vector<2x8x8xf32> -> vector<2x8x8xf32>
    "tpu.trace_stop"() : () -> ()
    %63 = vector.shape_cast %62 : vector<2x8x8xf32> to vector<16x8xf32>
    %64 = arith.truncf %63 : vector<16x8xf32> to vector<16x8xbf16>
    %c1 = arith.constant 1 : index
    %c0_21 = arith.constant 0 : index
    %c0_22 = arith.constant 0 : index
    %65 = vector.load %arg4[%c1, %c0_21, %c0_22] : memref<4x8x32xbf16, #tpu.memory_space<vmem>>, vector<1x8x32xbf16>
    %66 = vector.shape_cast %65 : vector<1x8x32xbf16> to vector<8x32xbf16>
    %cst_23 = arith.constant dense<0.000000e+00> : vector<16x32xf32>
    %67 = tpu.matmul %64, %66, %cst_23 {dimension_numbers = #tpu.dot_dimension_numbers<[1], [0], [0], [1], [0, 0, 1, 1], [], []>} : vector<16x8xbf16>, vector<8x32xbf16>, vector<16x32xf32> -> vector<16x32xf32>
    %68 = arith.addf %38, %67 : vector<16x32xf32>
    %69 = vector.extract_strided_slice %7 {offsets = [0, 16], sizes = [16, 8], strides = [1, 1]} : vector<16x96xf32> to vector<16x8xf32>
    %70 = vector.shape_cast %69 : vector<16x8xf32> to vector<2x8x8xf32>
    %71 = arith.truncf %70 : vector<2x8x8xf32> to vector<2x8x8xbf16>
    %72 = vector.extract_strided_slice %7 {offsets = [0, 48], sizes = [16, 8], strides = [1, 1]} : vector<16x96xf32> to vector<16x8xf32>
    %73 = vector.shape_cast %72 : vector<16x8xf32> to vector<2x8x8xf32>
    %74 = arith.truncf %73 : vector<2x8x8xf32> to vector<2x8x8xbf16>
    %75 = vector.extract_strided_slice %7 {offsets = [0, 80], sizes = [16, 8], strides = [1, 1]} : vector<16x96xf32> to vector<16x8xf32>
    %76 = vector.shape_cast %75 : vector<16x8xf32> to vector<2x8x8xf32>
    %77 = arith.truncf %76 : vector<2x8x8xf32> to vector<2x8x8xbf16>
    "tpu.trace_start"() <{level = 10 : i32, message = "bqd,bkd->bqk"}> : () -> ()
    %cst_24 = arith.constant dense<0.000000e+00> : vector<2x8x8xf32>
    %78 = tpu.matmul %71, %74, %cst_24 {dimension_numbers = #tpu.dot_dimension_numbers<[2], [2], [1], [1], [0, 0, 0, 1, 1, 1], [0], [0]>} : vector<2x8x8xbf16>, vector<2x8x8xbf16>, vector<2x8x8xf32> -> vector<2x8x8xf32>
    "tpu.trace_stop"() : () -> ()
    %cst_25 = arith.constant 0.353553385 : f32
    %79 = vector.broadcast %cst_25 : f32 to vector<2x8x8xf32>
    %80 = arith.mulf %78, %79 : vector<2x8x8xf32>
    %cst_26 = arith.constant dense<0xFF800000> : vector<2x8xf32>
    %81 = vector.multi_reduction <maximumf>, %80, %cst_26 [2] : vector<2x8x8xf32> to vector<2x8xf32>
    %82 = vector.shape_cast %81 : vector<2x8xf32> to vector<2x8x1xf32>
    %83 = vector.broadcast %82 : vector<2x8x1xf32> to vector<2x8x8xf32>
    %84 = arith.subf %80, %83 : vector<2x8x8xf32>
    %85 = math.exp %84 : vector<2x8x8xf32>
    %cst_27 = arith.constant dense<0.000000e+00> : vector<2x8xf32>
    %86 = vector.multi_reduction <add>, %85, %cst_27 [2] : vector<2x8x8xf32> to vector<2x8xf32>
    %87 = vector.shape_cast %86 : vector<2x8xf32> to vector<2x8x1xf32>
    %88 = tpu.reciprocal %87 {approx = true} : vector<2x8x1xf32> -> vector<2x8x1xf32>
    %89 = vector.broadcast %88 : vector<2x8x1xf32> to vector<2x8x8xf32>
    %90 = arith.mulf %85, %89 : vector<2x8x8xf32>
    %91 = arith.truncf %90 : vector<2x8x8xf32> to vector<2x8x8xbf16>
    "tpu.trace_start"() <{level = 10 : i32, message = "bqk,bkd->bqd"}> : () -> ()
    %cst_28 = arith.constant dense<0.000000e+00> : vector<2x8x8xf32>
    %92 = tpu.matmul %91, %77, %cst_28 {dimension_numbers = #tpu.dot_dimension_numbers<[2], [1], [1], [2], [0, 0, 0, 1, 1, 2], [0], [0]>} : vector<2x8x8xbf16>, vector<2x8x8xbf16>, vector<2x8x8xf32> -> vector<2x8x8xf32>
    "tpu.trace_stop"() : () -> ()
    %93 = vector.shape_cast %92 : vector<2x8x8xf32> to vector<16x8xf32>
    %94 = arith.truncf %93 : vector<16x8xf32> to vector<16x8xbf16>
    %c2 = arith.constant 2 : index
    %c0_29 = arith.constant 0 : index
    %c0_30 = arith.constant 0 : index
    %95 = vector.load %arg4[%c2, %c0_29, %c0_30] : memref<4x8x32xbf16, #tpu.memory_space<vmem>>, vector<1x8x32xbf16>
    %96 = vector.shape_cast %95 : vector<1x8x32xbf16> to vector<8x32xbf16>
    %cst_31 = arith.constant dense<0.000000e+00> : vector<16x32xf32>
    %97 = tpu.matmul %94, %96, %cst_31 {dimension_numbers = #tpu.dot_dimension_numbers<[1], [0], [0], [1], [0, 0, 1, 1], [], []>} : vector<16x8xbf16>, vector<8x32xbf16>, vector<16x32xf32> -> vector<16x32xf32>
    %98 = arith.addf %68, %97 : vector<16x32xf32>
    %99 = vector.extract_strided_slice %7 {offsets = [0, 24], sizes = [16, 8], strides = [1, 1]} : vector<16x96xf32> to vector<16x8xf32>
    %100 = vector.shape_cast %99 : vector<16x8xf32> to vector<2x8x8xf32>
    %101 = arith.truncf %100 : vector<2x8x8xf32> to vector<2x8x8xbf16>
    %102 = vector.extract_strided_slice %7 {offsets = [0, 56], sizes = [16, 8], strides = [1, 1]} : vector<16x96xf32> to vector<16x8xf32>
    %103 = vector.shape_cast %102 : vector<16x8xf32> to vector<2x8x8xf32>
    %104 = arith.truncf %103 : vector<2x8x8xf32> to vector<2x8x8xbf16>
    %105 = vector.extract_strided_slice %7 {offsets = [0, 88], sizes = [16, 8], strides = [1, 1]} : vector<16x96xf32> to vector<16x8xf32>
    %106 = vector.shape_cast %105 : vector<16x8xf32> to vector<2x8x8xf32>
    %107 = arith.truncf %106 : vector<2x8x8xf32> to vector<2x8x8xbf16>
    "tpu.trace_start"() <{level = 10 : i32, message = "bqd,bkd->bqk"}> : () -> ()
    %cst_32 = arith.constant dense<0.000000e+00> : vector<2x8x8xf32>
    %108 = tpu.matmul %101, %104, %cst_32 {dimension_numbers = #tpu.dot_dimension_numbers<[2], [2], [1], [1], [0, 0, 0, 1, 1, 1], [0], [0]>} : vector<2x8x8xbf16>, vector<2x8x8xbf16>, vector<2x8x8xf32> -> vector<2x8x8xf32>
    "tpu.trace_stop"() : () -> ()
    %cst_33 = arith.constant 0.353553385 : f32
    %109 = vector.broadcast %cst_33 : f32 to vector<2x8x8xf32>
    %110 = arith.mulf %108, %109 : vector<2x8x8xf32>
    %cst_34 = arith.constant dense<0xFF800000> : vector<2x8xf32>
    %111 = vector.multi_reduction <maximumf>, %110, %cst_34 [2] : vector<2x8x8xf32> to vector<2x8xf32>
    %112 = vector.shape_cast %111 : vector<2x8xf32> to vector<2x8x1xf32>
    %113 = vector.broadcast %112 : vector<2x8x1xf32> to vector<2x8x8xf32>
    %114 = arith.subf %110, %113 : vector<2x8x8xf32>
    %115 = math.exp %114 : vector<2x8x8xf32>
    %cst_35 = arith.constant dense<0.000000e+00> : vector<2x8xf32>
    %116 = vector.multi_reduction <add>, %115, %cst_35 [2] : vector<2x8x8xf32> to vector<2x8xf32>
    %117 = vector.shape_cast %116 : vector<2x8xf32> to vector<2x8x1xf32>
    %118 = tpu.reciprocal %117 {approx = true} : vector<2x8x1xf32> -> vector<2x8x1xf32>
    %119 = vector.broadcast %118 : vector<2x8x1xf32> to vector<2x8x8xf32>
    %120 = arith.mulf %115, %119 : vector<2x8x8xf32>
    %121 = arith.truncf %120 : vector<2x8x8xf32> to vector<2x8x8xbf16>
    "tpu.trace_start"() <{level = 10 : i32, message = "bqk,bkd->bqd"}> : () -> ()
    %cst_36 = arith.constant dense<0.000000e+00> : vector<2x8x8xf32>
    %122 = tpu.matmul %121, %107, %cst_36 {dimension_numbers = #tpu.dot_dimension_numbers<[2], [1], [1], [2], [0, 0, 0, 1, 1, 2], [0], [0]>} : vector<2x8x8xbf16>, vector<2x8x8xbf16>, vector<2x8x8xf32> -> vector<2x8x8xf32>
    "tpu.trace_stop"() : () -> ()
    %123 = vector.shape_cast %122 : vector<2x8x8xf32> to vector<16x8xf32>
    %124 = arith.truncf %123 : vector<16x8xf32> to vector<16x8xbf16>
    %c3 = arith.constant 3 : index
    %c0_37 = arith.constant 0 : index
    %c0_38 = arith.constant 0 : index
    %125 = vector.load %arg4[%c3, %c0_37, %c0_38] : memref<4x8x32xbf16, #tpu.memory_space<vmem>>, vector<1x8x32xbf16>
    %126 = vector.shape_cast %125 : vector<1x8x32xbf16> to vector<8x32xbf16>
    %cst_39 = arith.constant dense<0.000000e+00> : vector<16x32xf32>
    %127 = tpu.matmul %124, %126, %cst_39 {dimension_numbers = #tpu.dot_dimension_numbers<[1], [0], [0], [1], [0, 0, 1, 1], [], []>} : vector<16x8xbf16>, vector<8x32xbf16>, vector<16x32xf32> -> vector<16x32xf32>
    %128 = arith.addf %98, %127 : vector<16x32xf32>
    %c0_40 = arith.constant 0 : index
    %c0_41 = arith.constant 0 : index
    %129 = vector.load %arg5[%c0_40, %c0_41] : memref<1x32xf32, #tpu.memory_space<vmem>>, vector<1x32xf32>
    %130 = vector.broadcast %129 : vector<1x32xf32> to vector<16x32xf32>
    %131 = arith.addf %128, %130 : vector<16x32xf32>
    %132 = vector.shape_cast %131 : vector<16x32xf32> to vector<2x8x32xf32>
    %c0_42 = arith.constant 0 : index
    %c0_43 = arith.constant 0 : index
    %c0_44 = arith.constant 0 : index
    %133 = vector.load %arg15[%c0_42, %c0_43, %c0_44] : memref<2x8x32xf32, #tpu.memory_space<vmem>>, vector<2x8x32xf32>
    tpu.vector_store %arg15[%c0_42, %c0_43, %c0_44], %132 {strides = array<i32>} : memref<2x8x32xf32, #tpu.memory_space<vmem>>, vector<2x8x32xf32>,
    %134 = arith.addf %1, %131 : vector<16x32xf32>
    %c0_45 = arith.constant 0 : index
    %c0_46 = arith.constant 0 : index
    %135 = vector.load %arg6[%c0_45, %c0_46] : memref<1x32xf32, #tpu.memory_space<vmem>>, vector<1x32xf32>
    %c0_47 = arith.constant 0 : index
    %c0_48 = arith.constant 0 : index
    %136 = vector.load %arg7[%c0_47, %c0_48] : memref<1x32xf32, #tpu.memory_space<vmem>>, vector<1x32xf32>
    %cst_49 = arith.constant dense<0.000000e+00> : vector<16xf32>
    %137 = vector.multi_reduction <add>, %134, %cst_49 [1] : vector<16x32xf32> to vector<16xf32>
    %138 = vector.shape_cast %137 : vector<16xf32> to vector<16x1xf32>
    %cst_50 = arith.constant 3.200000e+01 : f32
    %139 = vector.broadcast %cst_50 : f32 to vector<16x1xf32>
    %140 = arith.divf %138, %139 : vector<16x1xf32>
    %141 = vector.broadcast %140 : vector<16x1xf32> to vector<16x32xf32>
    %142 = arith.subf %134, %141 : vector<16x32xf32>
    %143 = arith.mulf %142, %142 : vector<16x32xf32>
    %cst_51 = arith.constant dense<0.000000e+00> : vector<16xf32>
    %144 = vector.multi_reduction <add>, %143, %cst_51 [1] : vector<16x32xf32> to vector<16xf32>
    %145 = vector.shape_cast %144 : vector<16xf32> to vector<16x1xf32>
    %cst_52 = arith.constant 3.200000e+01 : f32
    %146 = vector.broadcast %cst_52 : f32 to vector<16x1xf32>
    %147 = arith.divf %145, %146 : vector<16x1xf32>
    %cst_53 = arith.constant 9.99999996E-13 : f32
    %148 = vector.broadcast %cst_53 : f32 to vector<16x1xf32>
    %149 = arith.addf %147, %148 : vector<16x1xf32>
    %150 = math.rsqrt %149 : vector<16x1xf32>
    %151 = vector.broadcast %150 : vector<16x1xf32> to vector<16x32xf32>
    %152 = arith.mulf %142, %151 : vector<16x32xf32>
    %153 = vector.broadcast %135 : vector<1x32xf32> to vector<16x32xf32>
    %154 = arith.mulf %152, %153 : vector<16x32xf32>
    %155 = vector.broadcast %136 : vector<1x32xf32> to vector<16x32xf32>
    %156 = arith.addf %154, %155 : vector<16x32xf32>
    %157 = arith.truncf %156 : vector<16x32xf32> to vector<16x32xbf16>
    %cst_54 = arith.constant 0.000000e+00 : f32
    %158 = vector.broadcast %cst_54 : f32 to vector<16x32xf32>
    %c0_55 = arith.constant 0 : index
    %c0_56 = arith.constant 0 : index
    %159 = vector.load %arg8[%c0_55, %c0_56] : memref<32x128xbf16, #tpu.memory_space<vmem>>, vector<32x128xbf16>
    %cst_57 = arith.constant dense<0.000000e+00> : vector<16x128xf32>
    %160 = tpu.matmul %157, %159, %cst_57 {dimension_numbers = #tpu.dot_dimension_numbers<[1], [0], [0], [1], [0, 0, 1, 1], [], []>} : vector<16x32xbf16>, vector<32x128xbf16>, vector<16x128xf32> -> vector<16x128xf32>
    %c0_58 = arith.constant 0 : index
    %c0_59 = arith.constant 0 : index
    %161 = vector.load %arg9[%c0_58, %c0_59] : memref<1x128xf32, #tpu.memory_space<vmem>>, vector<1x128xf32>
    %162 = vector.broadcast %161 : vector<1x128xf32> to vector<16x128xf32>
    %163 = arith.addf %160, %162 : vector<16x128xf32>
    %cst_60 = arith.constant 5.000000e-01 : f32
    %164 = vector.broadcast %cst_60 : f32 to vector<16x128xf32>
    %165 = arith.mulf %164, %163 : vector<16x128xf32>
    %cst_61 = arith.constant 0.707106769 : f32
    %166 = vector.broadcast %cst_61 : f32 to vector<16x128xf32>
    %167 = arith.mulf %163, %166 : vector<16x128xf32>
    %168 = math.absf %167 : vector<16x128xf32>
    %cst_62 = arith.constant 0.327591091 : f32
    %169 = vector.broadcast %cst_62 : f32 to vector<16x128xf32>
    %170 = arith.mulf %169, %168 : vector<16x128xf32>
    %cst_63 = arith.constant 1.000000e+00 : f32
    %171 = vector.broadcast %cst_63 : f32 to vector<16x128xf32>
    %172 = arith.addf %171, %170 : vector<16x128xf32>
    %173 = tpu.reciprocal %172 {approx = true} : vector<16x128xf32> -> vector<16x128xf32>
    %cst_64 = arith.constant 1.06140542 : f32
    %174 = vector.broadcast %cst_64 : f32 to vector<16x128xf32>
    %175 = arith.mulf %174, %173 : vector<16x128xf32>
    %cst_65 = arith.constant -1.45315206 : f32
    %176 = vector.broadcast %cst_65 : f32 to vector<16x128xf32>
    %177 = arith.addf %175, %176 : vector<16x128xf32>
    %178 = arith.mulf %177, %173 : vector<16x128xf32>
    %cst_66 = arith.constant 1.42141378 : f32
    %179 = vector.broadcast %cst_66 : f32 to vector<16x128xf32>
    %180 = arith.addf %178, %179 : vector<16x128xf32>
    %181 = arith.mulf %180, %173 : vector<16x128xf32>
    %cst_67 = arith.constant -0.284496725 : f32
    %182 = vector.broadcast %cst_67 : f32 to vector<16x128xf32>
    %183 = arith.addf %181, %182 : vector<16x128xf32>
    %184 = arith.mulf %183, %173 : vector<16x128xf32>
    %cst_68 = arith.constant 0.254829586 : f32
    %185 = vector.broadcast %cst_68 : f32 to vector<16x128xf32>
    %186 = arith.addf %184, %185 : vector<16x128xf32>
    %187 = arith.mulf %186, %173 : vector<16x128xf32>
    %cst_69 = arith.constant 0.000000e+00 : f32
    %188 = vector.broadcast %cst_69 : f32 to vector<16x128xf32>
    %189 = arith.subf %188, %168 : vector<16x128xf32>
    %190 = arith.mulf %189, %168 : vector<16x128xf32>
    %191 = math.exp %190 : vector<16x128xf32>
    %192 = arith.mulf %187, %191 : vector<16x128xf32>
    %cst_70 = arith.constant 1.000000e+00 : f32
    %193 = vector.broadcast %cst_70 : f32 to vector<16x128xf32>
    %194 = arith.subf %193, %192 : vector<16x128xf32>
    %cst_71 = arith.constant 0.000000e+00 : f32
    %195 = vector.broadcast %cst_71 : f32 to vector<16x128xf32>
    %196 = arith.cmpf olt, %167, %195 : vector<16x128xf32>
    %cst_72 = arith.constant 0.000000e+00 : f32
    %197 = vector.broadcast %cst_72 : f32 to vector<16x128xf32>
    %198 = arith.subf %197, %194 : vector<16x128xf32>
    %199 = arith.select %196, %198, %194 : vector<16x128xi1>, vector<16x128xf32>
    %cst_73 = arith.constant 1.000000e+00 : f32
    %200 = vector.broadcast %cst_73 : f32 to vector<16x128xf32>
    %201 = arith.addf %200, %199 : vector<16x128xf32>
    %202 = arith.mulf %165, %201 : vector<16x128xf32>
    %203 = arith.truncf %202 : vector<16x128xf32> to vector<16x128xbf16>
    %c0_74 = arith.constant 0 : index
    %c0_75 = arith.constant 0 : index
    %204 = vector.load %arg10[%c0_74, %c0_75] : memref<128x32xbf16, #tpu.memory_space<vmem>>, vector<128x32xbf16>
    %cst_76 = arith.constant dense<0.000000e+00> : vector<16x32xf32>
    %205 = tpu.matmul %203, %204, %cst_76 {dimension_numbers = #tpu.dot_dimension_numbers<[1], [0], [0], [1], [0, 0, 1, 1], [], []>} : vector<16x128xbf16>, vector<128x32xbf16>, vector<16x32xf32> -> vector<16x32xf32>
    %206 = arith.addf %158, %205 : vector<16x32xf32>
    %c0_77 = arith.constant 0 : index
    %c0_78 = arith.constant 0 : index
    %207 = vector.load %arg11[%c0_77, %c0_78] : memref<1x32xf32, #tpu.memory_space<vmem>>, vector<1x32xf32>
    %208 = vector.broadcast %207 : vector<1x32xf32> to vector<16x32xf32>
    %209 = arith.addf %206, %208 : vector<16x32xf32>
    %210 = arith.addf %156, %209 : vector<16x32xf32>
    %c0_79 = arith.constant 0 : index
    %c0_80 = arith.constant 0 : index
    %211 = vector.load %arg12[%c0_79, %c0_80] : memref<1x32xf32, #tpu.memory_space<vmem>>, vector<1x32xf32>
    %c0_81 = arith.constant 0 : index
    %c0_82 = arith.constant 0 : index
    %212 = vector.load %arg13[%c0_81, %c0_82] : memref<1x32xf32, #tpu.memory_space<vmem>>, vector<1x32xf32>
    %cst_83 = arith.constant dense<0.000000e+00> : vector<16xf32>
    %213 = vector.multi_reduction <add>, %210, %cst_83 [1] : vector<16x32xf32> to vector<16xf32>
    %214 = vector.shape_cast %213 : vector<16xf32> to vector<16x1xf32>
    %cst_84 = arith.constant 3.200000e+01 : f32
    %215 = vector.broadcast %cst_84 : f32 to vector<16x1xf32>
    %216 = arith.divf %214, %215 : vector<16x1xf32>
    %217 = vector.broadcast %216 : vector<16x1xf32> to vector<16x32xf32>
    %218 = arith.subf %210, %217 : vector<16x32xf32>
    %219 = arith.mulf %218, %218 : vector<16x32xf32>
    %cst_85 = arith.constant dense<0.000000e+00> : vector<16xf32>
    %220 = vector.multi_reduction <add>, %219, %cst_85 [1] : vector<16x32xf32> to vector<16xf32>
    %221 = vector.shape_cast %220 : vector<16xf32> to vector<16x1xf32>
    %cst_86 = arith.constant 3.200000e+01 : f32
    %222 = vector.broadcast %cst_86 : f32 to vector<16x1xf32>
    %223 = arith.divf %221, %222 : vector<16x1xf32>
    %cst_87 = arith.constant 9.99999996E-13 : f32
    %224 = vector.broadcast %cst_87 : f32 to vector<16x1xf32>
    %225 = arith.addf %223, %224 : vector<16x1xf32>
    %226 = math.rsqrt %225 : vector<16x1xf32>
    %227 = vector.broadcast %226 : vector<16x1xf32> to vector<16x32xf32>
    %228 = arith.mulf %218, %227 : vector<16x32xf32>
    %229 = vector.broadcast %211 : vector<1x32xf32> to vector<16x32xf32>
    %230 = arith.mulf %228, %229 : vector<16x32xf32>
    %231 = vector.broadcast %212 : vector<1x32xf32> to vector<16x32xf32>
    %232 = arith.addf %230, %231 : vector<16x32xf32>
    %233 = vector.shape_cast %232 : vector<16x32xf32> to vector<2x8x32xf32>
    %c0_88 = arith.constant 0 : index
    %c0_89 = arith.constant 0 : index
    %c0_90 = arith.constant 0 : index
    %234 = vector.load %arg14[%c0_88, %c0_89, %c0_90] : memref<2x8x32xf32, #tpu.memory_space<vmem>>, vector<2x8x32xf32>
    tpu.vector_store %arg14[%c0_88, %c0_89, %c0_90], %233 {strides = array<i32>} : memref<2x8x32xf32, #tpu.memory_space<vmem>>, vector<2x8x32xf32>,
    return
  }
  func.func @transform_0(%arg0: i32) -> (i32, i32, i32) {
    %c0_i32 = arith.constant 0 : i32
    %c0_i32_0 = arith.constant 0 : i32
    %c0_i32_1 = arith.constant 0 : i32
    return %arg0, %c0_i32, %c0_i32_0 : i32, i32, i32
  }
  func.func @transform_1(%arg0: i32) -> (i32, i32) {
    %c0_i32 = arith.constant 0 : i32
    %c0_i32_0 = arith.constant 0 : i32
    %c0_i32_1 = arith.constant 0 : i32
    return %c0_i32, %c0_i32_0 : i32, i32
  }
  func.func @transform_2(%arg0: i32) -> (i32, i32) {
    %c0_i32 = arith.constant 0 : i32
    %c0_i32_0 = arith.constant 0 : i32
    %c0_i32_1 = arith.constant 0 : i32
    return %c0_i32, %c0_i32_0 : i32, i32
  }
  func.func @transform_3(%arg0: i32) -> (i32, i32, i32) {
    %c0_i32 = arith.constant 0 : i32
    %c0_i32_0 = arith.constant 0 : i32
    %c0_i32_1 = arith.constant 0 : i32
    %c0_i32_2 = arith.constant 0 : i32
    return %c0_i32, %c0_i32_0, %c0_i32_1 : i32, i32, i32
  }
  func.func @transform_4(%arg0: i32) -> (i32, i32) {
    %c0_i32 = arith.constant 0 : i32
    %c0_i32_0 = arith.constant 0 : i32
    %c0_i32_1 = arith.constant 0 : i32
    return %c0_i32, %c0_i32_0 : i32, i32
  }
  func.func @transform_5(%arg0: i32) -> (i32, i32) {
    %c0_i32 = arith.constant 0 : i32
    %c0_i32_0 = arith.constant 0 : i32
    %c0_i32_1 = arith.constant 0 : i32
    return %c0_i32, %c0_i32_0 : i32, i32
  }
  func.func @transform_6(%arg0: i32) -> (i32, i32) {
    %c0_i32 = arith.constant 0 : i32
    %c0_i32_0 = arith.constant 0 : i32
    %c0_i32_1 = arith.constant 0 : i32
    return %c0_i32, %c0_i32_0 : i32, i32
  }
  func.func @transform_7(%arg0: i32) -> (i32, i32) {
    %c0_i32 = arith.constant 0 : i32
    %c0_i32_0 = arith.constant 0 : i32
    %c0_i32_1 = arith.constant 0 : i32
    return %c0_i32, %c0_i32_0 : i32, i32
  }
  func.func @transform_8(%arg0: i32) -> (i32, i32) {
    %c0_i32 = arith.constant 0 : i32
    %c0_i32_0 = arith.constant 0 : i32
    %c0_i32_1 = arith.constant 0 : i32
    return %c0_i32, %c0_i32_0 : i32, i32
  }
  func.func @transform_9(%arg0: i32) -> (i32, i32) {
    %c0_i32 = arith.constant 0 : i32
    %c0_i32_0 = arith.constant 0 : i32
    %c0_i32_1 = arith.constant 0 : i32
    return %c0_i32, %c0_i32_0 : i32, i32
  }
  func.func @transform_10(%arg0: i32) -> (i32, i32) {
    %c0_i32 = arith.constant 0 : i32
    %c0_i32_0 = arith.constant 0 : i32
    %c0_i32_1 = arith.constant 0 : i32
    return %c0_i32, %c0_i32_0 : i32, i32
  }
  func.func @transform_11(%arg0: i32) -> (i32, i32) {
    %c0_i32 = arith.constant 0 : i32
    %c0_i32_0 = arith.constant 0 : i32
    %c0_i32_1 = arith.constant 0 : i32
    return %c0_i32, %c0_i32_0 : i32, i32
  }
  func.func @transform_12(%arg0: i32) -> (i32, i32) {
    %c0_i32 = arith.constant 0 : i32
    %c0_i32_0 = arith.constant 0 : i32
    %c0_i32_1 = arith.constant 0 : i32
    return %c0_i32, %c0_i32_0 : i32, i32
  }
  func.func @transform_13(%arg0: i32) -> (i32, i32, i32) {
    %c0_i32 = arith.constant 0 : i32
    %c0_i32_0 = arith.constant 0 : i32
    %c0_i32_1 = arith.constant 0 : i32
    return %arg0, %c0_i32, %c0_i32_0 : i32, i32, i32
  }
  func.func @transform_14(%arg0: i32) -> (i32, i32, i32) {
    %c0_i32 = arith.constant 0 : i32
    %c0_i32_0 = arith.constant 0 : i32
    %c0_i32_1 = arith.constant 0 : i32
    return %arg0, %c0_i32, %c0_i32_0 : i32, i32, i32
  }
}

</mosaic_0001>

<llo_original>
// kernel: tpu_custom_call.1
$region0: #{tpu_custom_call.1}
  #allocation0 [shape = 'u32[]', space=smem, size = 0x4, offset = 0x4, fixed_abs, tag = 'smem constant byte address 0x4 - core index']
  #allocation1 [shape = 'u32[144,128]{1,0:T(1,128)}', space=vmem, size = 0x12000, scoped, tag = 'internal scratch']
  %s0 = inlined_call_operand.vmem [shape: f32[2,8,32], index: 0, kind: input, shape index: {}]
  %s1 = inlined_call_operand.vmem [shape: bf16[32,96], index: 1, kind: input, shape index: {}]
  %s2 = inlined_call_operand.vmem [shape: f32[1,96], index: 2, kind: input, shape index: {}]
  %s3 = inlined_call_operand.vmem [shape: bf16[4,8,32], index: 3, kind: input, shape index: {}]
  %s4 = inlined_call_operand.vmem [shape: f32[1,32], index: 4, kind: input, shape index: {}]
  %s5 = inlined_call_operand.vmem [shape: f32[1,32], index: 5, kind: input, shape index: {}]
  %s6 = inlined_call_operand.vmem [shape: f32[1,32], index: 6, kind: input, shape index: {}]
  %s7 = inlined_call_operand.vmem [shape: bf16[32,128], index: 7, kind: input, shape index: {}]
  %s8 = inlined_call_operand.vmem [shape: f32[1,128], index: 8, kind: input, shape index: {}]
  %s9 = inlined_call_operand.vmem [shape: bf16[128,32], index: 9, kind: input, shape index: {}]
  %s10 = inlined_call_operand.vmem [shape: f32[1,32], index: 10, kind: input, shape index: {}]
  %s11 = inlined_call_operand.vmem [shape: f32[1,32], index: 11, kind: input, shape index: {}]
  %s12 = inlined_call_operand.vmem [shape: f32[1,32], index: 12, kind: input, shape index: {}]
  %s13 = inlined_call_operand.hbm [shape: f32[2,8,32], index: 13, kind: output, shape index: {0}]
  %s14 = inlined_call_operand.hbm [shape: f32[2,8,32], index: 14, kind: output, shape index: {1}]
  %15 = xla_tuple %s13, %s14
  %s16 = sld [smem:[#allocation0]]
  $region70: #{tpu_custom_call.1} parent=0
    _
  %s18 = ssub.s32 1, %s16
  %s19 = scalar_select 0, %s18, %s16
  $region1: #{tpu_custom_call.1} parent=0
    #allocation2 [shape = 'u8[8192]{0}', space=vmem, size = 0x2000, scoped, tag = 'output window, operand 0, single buffered']
    #allocation3 [shape = 's32[1]{0}', space=sflag, size = 0x4, scoped, tag = 'scoped memory for tpu_custom_call.1']
    #allocation4 [shape = 'u8[8192]{0}', space=vmem, size = 0x2000, scoped, tag = 'output window, operand 1, single buffered']
    #allocation5 [shape = 's32[1]{0}', space=sflag, size = 0x4, scoped, tag = 'scoped memory for tpu_custom_call.1']
    %20 = vsyncpa [#allocation3], 0
    %21 = vsyncpa [#allocation5], 0
    // Predicated region
    $region2: #{tpu_custom_call.1} parent=1 // pred_check
      _
    $region3: #{tpu_custom_call.1} parent=1 // pred_check_branch
      %23 = sbr.rel (0) target = $region5
    $region4: #{tpu_custom_call.1} parent=1 // pred_region
      _
    $region5: #{tpu_custom_call.1} parent=1 // pred_fallthru
      _
    // Predicated region
    $region6: #{tpu_custom_call.1} parent=1 // pred_check
      _
    $region7: #{tpu_custom_call.1} parent=1 // pred_check_branch
      %25 = sbr.rel (0) target = $region9
    $region8: #{tpu_custom_call.1} parent=1 // pred_region
      _
    $region9: #{tpu_custom_call.1} parent=1 // pred_fallthru
      _
    // Predicated region
    $region10: #{tpu_custom_call.1} parent=1 // pred_check
      _
    $region11: #{tpu_custom_call.1} parent=1 // pred_check_branch
      %27 = sbr.rel (0) target = $region13
    $region12: #{tpu_custom_call.1} parent=1 // pred_region
      _
    $region13: #{tpu_custom_call.1} parent=1 // pred_fallthru
      _
    // Predicated region
    $region14: #{tpu_custom_call.1} parent=1 // pred_check
      _
    $region15: #{tpu_custom_call.1} parent=1 // pred_check_branch
      %29 = sbr.rel (0) target = $region17
    $region16: #{tpu_custom_call.1} parent=1 // pred_region
      _
    $region17: #{tpu_custom_call.1} parent=1 // pred_fallthru
      _
    // Predicated region
    $region18: #{tpu_custom_call.1} parent=1 // pred_check
      _
    $region19: #{tpu_custom_call.1} parent=1 // pred_check_branch
      %31 = sbr.rel (0) target = $region21
    $region20: #{tpu_custom_call.1} parent=1 // pred_region
      _
    $region21: #{tpu_custom_call.1} parent=1 // pred_fallthru
      _
    // Predicated region
    $region22: #{tpu_custom_call.1} parent=1 // pred_check
      _
    $region23: #{tpu_custom_call.1} parent=1 // pred_check_branch
      %33 = sbr.rel (0) target = $region25
    $region24: #{tpu_custom_call.1} parent=1 // pred_region
      _
    $region25: #{tpu_custom_call.1} parent=1 // pred_fallthru
      _
    // Predicated region
    $region26: #{tpu_custom_call.1} parent=1 // pred_check
      _
    $region27: #{tpu_custom_call.1} parent=1 // pred_check_branch
      %35 = sbr.rel (0) target = $region29
    $region28: #{tpu_custom_call.1} parent=1 // pred_region
      _
    $region29: #{tpu_custom_call.1} parent=1 // pred_fallthru
      _
    // Predicated region
    $region30: #{tpu_custom_call.1} parent=1 // pred_check
      _
    $region31: #{tpu_custom_call.1} parent=1 // pred_check_branch
      %37 = sbr.rel (0) target = $region33
    $region32: #{tpu_custom_call.1} parent=1 // pred_region
      _
    $region33: #{tpu_custom_call.1} parent=1 // pred_fallthru
      _
    // Predicated region
    $region34: #{tpu_custom_call.1} parent=1 // pred_check
      _
    $region35: #{tpu_custom_call.1} parent=1 // pred_check_branch
      %39 = sbr.rel (0) target = $region37
    $region36: #{tpu_custom_call.1} parent=1 // pred_region
      _
    $region37: #{tpu_custom_call.1} parent=1 // pred_fallthru
      _
    // Predicated region
    $region38: #{tpu_custom_call.1} parent=1 // pred_check
      _
    $region39: #{tpu_custom_call.1} parent=1 // pred_check_branch
      %41 = sbr.rel (0) target = $region41
    $region40: #{tpu_custom_call.1} parent=1 // pred_region
      _
    $region41: #{tpu_custom_call.1} parent=1 // pred_fallthru
      _
    // Predicated region
    $region42: #{tpu_custom_call.1} parent=1 // pred_check
      _
    $region43: #{tpu_custom_call.1} parent=1 // pred_check_branch
      %43 = sbr.rel (0) target = $region45
    $region44: #{tpu_custom_call.1} parent=1 // pred_region
      _
    $region45: #{tpu_custom_call.1} parent=1 // pred_fallthru
      _
    // Predicated region
    $region46: #{tpu_custom_call.1} parent=1 // pred_check
      _
    $region47: #{tpu_custom_call.1} parent=1 // pred_check_branch
      %45 = sbr.rel (0) target = $region49
    $region48: #{tpu_custom_call.1} parent=1 // pred_region
      _
    $region49: #{tpu_custom_call.1} parent=1 // pred_fallthru
      _
    // Predicated region
    $region50: #{tpu_custom_call.1} parent=1 // pred_check
      _
    $region51: #{tpu_custom_call.1} parent=1 // pred_check_branch
      %47 = sbr.rel (0) target = $region53
    $region52: #{tpu_custom_call.1} parent=1 // pred_region
      _
    $region53: #{tpu_custom_call.1} parent=1 // pred_fallthru
      _
    %v49 = vld [vmem:[%s0] sm:$0xff]
    %v50 = vld [vmem:[%s0 + $0x8] sm:$0xff]
    %v51 = vpack.c.bf16 %v50, %v49
    %v52 = vld [vmem:[%s1] sm:$0xf]
    %v53 = vld [vmem:[%s1 + $0x4] sm:$0xf]
    %v54 = vld [vmem:[%s1 + $0x8] sm:$0xf]
    %v55 = vld [vmem:[%s1 + $0xc] sm:$0xf]
    %v56 = vld [vmem:[%s2] sm:$0x1]
    %v58 = vlaneseq
    %v59 = vshrl.u32 %v58, 7
    %v60 = vsub.s32 0, %v59
    %v61 = vrot.slane %v56, %v60
    %v67 = vunpack.c.l.b16 %v52
    %v68 = vunpack.c.l.b16 %v53
    %v69 = vunpack.c.l.b16 %v54
    %v70 = vunpack.c.l.b16 %v55
    %v71 = vpack.c.b16 %v68, %v67
    %v72 = vpack.c.b16 %v70, %v69
    %vm75 = vcmask 261120
    %v77 = vsel %vm75, %v51, 0
    %79 = vmatprep.subr.bf16.mxu0 0
    %80 = vmatpush1.bf16.msra.mxu0 0
    %81 = vmatprep.subr.bf16.mxu0 0
    %82 = vmatpush1.bf16.msra.mxu0 0
    %83 = vmatprep.subr.bf16.mxu0 0
    %84 = vmatpush1.bf16.msra.mxu0 0
    %85 = vmatprep.subr.bf16.mxu0 0
    %86 = vmatpush1.bf16.msra.mxu0 0
    %87 = vmatprep.subr.bf16.mxu0 0
    %88 = vmatpush1.bf16.msra.mxu0 0
    %89 = vmatprep.subr.bf16.mxu0 0
    %90 = vmatpush1.bf16.msra.mxu0 0
    %91 = vmatprep.subr.bf16.mxu0 0
    %92 = vmatpush1.bf16.msra.mxu0 %v72
    %93 = vmatprep.subr.bf16.mxu0 0
    %94 = vmatpush1.bf16.msra.mxu0 %v71
    %95 = vmatprep.subr.bf16.mxu0 0
    %96 = vmatpush2.bf16.msra.mxu0 0
    %97 = vmatprep.subr.bf16.mxu0 0
    %98 = vmatpush2.bf16.msra.mxu0 0
    %99 = vmatprep.subr.bf16.mxu0 0
    %100 = vmatpush2.bf16.msra.mxu0 0
    %101 = vmatprep.subr.bf16.mxu0 0
    %102 = vmatpush2.bf16.msra.mxu0 0
    %103 = vmatprep.subr.bf16.mxu0 0
    %104 = vmatpush2.bf16.msra.mxu0 0
    %105 = vmatprep.subr.bf16.mxu0 0
    %106 = vmatpush2.bf16.msra.mxu0 0
    %107 = vmatprep.subr.bf16.mxu0 0
    %108 = vmatpush2.bf16.msra.mxu0 0
    %109 = vmatprep.subr.bf16.mxu0 0
    %110 = vmatpush2.bf16.msra.mxu0 0
    %111 = vmatprep.mubr.bf16.mxu0 0
    %112 = vmatmul.mubr.bf16.gmra.mxu0 %v77
    %v113 = vpop.f32.mrf.mxu0
    %v114 = vadd.f32 %v61, %v113
    %v115 = vpop.f32.mrf.mxu0
    %v116 = vpop.f32.mrf.mxu0
    %v117 = vadd.f32 %v61, %v116
    %v118 = vpop.f32.mrf.mxu0
    %119 = vdwg.mxu0
    %v120 = vpack.c.bf16 %v114, %v114
    %v121 = vpack.c.bf16 %v117, %v117
    %123 = vrot.lane.b32.xlu0 %v120, 96
    %v124 = vpop.permute.xlu0 %123
    %vm125 = vcmask 64512
    %v127 = vsel %vm125, %v120, 0
    %v130 = vsel %vm125, %v124, 0
    %132 = vmatprep.subr.bf16.mxu0 0
    %133 = vmatpush1.bf16.xpose.msra.mxu0 0
    %134 = vmatprep.subr.bf16.mxu0 0
    %135 = vmatpush1.bf16.xpose.msra.mxu0 0
    %136 = vmatprep.subr.bf16.mxu0 0
    %137 = vmatpush1.bf16.xpose.msra.mxu0 0
    %138 = vmatprep.subr.bf16.mxu0 0
    %139 = vmatpush1.bf16.xpose.msra.mxu0 0
    %140 = vmatprep.subr.bf16.mxu0 0
    %141 = vmatpush1.bf16.xpose.msra.mxu0 0
    %142 = vmatprep.subr.bf16.mxu0 0
    %143 = vmatpush1.bf16.xpose.msra.mxu0 0
    %144 = vmatprep.subr.bf16.mxu0 0
    %145 = vmatpush1.bf16.xpose.msra.mxu0 0
    %146 = vmatprep.subr.bf16.mxu0 0
    %147 = vmatpush1.bf16.xpose.msra.mxu0 %v130
    %148 = vmatprep.subr.bf16.mxu0 0
    %149 = vmatpush2.bf16.xpose.msra.mxu0 0
    %150 = vmatprep.subr.bf16.mxu0 0
    %151 = vmatpush2.bf16.xpose.msra.mxu0 0
    %152 = vmatprep.subr.bf16.mxu0 0
    %153 = vmatpush2.bf16.xpose.msra.mxu0 0
    %154 = vmatprep.subr.bf16.mxu0 0
    %155 = vmatpush2.bf16.xpose.msra.mxu0 0
    %156 = vmatprep.subr.bf16.mxu0 0
    %157 = vmatpush2.bf16.xpose.msra.mxu0 0
    %158 = vmatprep.subr.bf16.mxu0 0
    %159 = vmatpush2.bf16.xpose.msra.mxu0 0
    %160 = vmatprep.subr.bf16.mxu0 0
    %161 = vmatpush2.bf16.xpose.msra.mxu0 0
    %162 = vmatprep.subr.bf16.mxu0 0
    %163 = vmatpush2.bf16.xpose.msra.mxu0 0
    %164 = vmatprep.mubr.bf16.mxu0 0
    %165 = vmatmul.mubr.bf16.gmra.mxu0 %v127
    %v166 = vpop.f32.mrf.mxu0
    %v167 = vadd.f32 0.0, %v166
    %v168 = vpop.f32.mrf.mxu0
    %v169 = vpop.f32.mrf.mxu0
    %v170 = vpop.f32.mrf.mxu0
    %171 = vdwg.mxu0
    %173 = vrot.lane.b32.xlu0 %v121, 96
    %v174 = vpop.permute.xlu0 %173
    %v176 = vsel %vm125, %v121, 0
    %v179 = vsel %vm125, %v174, 0
    %181 = vmatprep.subr.bf16.mxu0 0
    %182 = vmatpush1.bf16.xpose.msra.mxu0 0
    %183 = vmatprep.subr.bf16.mxu0 0
    %184 = vmatpush1.bf16.xpose.msra.mxu0 0
    %185 = vmatprep.subr.bf16.mxu0 0
    %186 = vmatpush1.bf16.xpose.msra.mxu0 0
    %187 = vmatprep.subr.bf16.mxu0 0
    %188 = vmatpush1.bf16.xpose.msra.mxu0 0
    %189 = vmatprep.subr.bf16.mxu0 0
    %190 = vmatpush1.bf16.xpose.msra.mxu0 0
    %191 = vmatprep.subr.bf16.mxu0 0
    %192 = vmatpush1.bf16.xpose.msra.mxu0 0
    %193 = vmatprep.subr.bf16.mxu0 0
    %194 = vmatpush1.bf16.xpose.msra.mxu0 0
    %195 = vmatprep.subr.bf16.mxu0 0
    %196 = vmatpush1.bf16.xpose.msra.mxu0 %v179
    %197 = vmatprep.subr.bf16.mxu0 0
    %198 = vmatpush2.bf16.xpose.msra.mxu0 0
    %199 = vmatprep.subr.bf16.mxu0 0
    %200 = vmatpush2.bf16.xpose.msra.mxu0 0
    %201 = vmatprep.subr.bf16.mxu0 0
    %202 = vmatpush2.bf16.xpose.msra.mxu0 0
    %203 = vmatprep.subr.bf16.mxu0 0
    %204 = vmatpush2.bf16.xpose.msra.mxu0 0
    %205 = vmatprep.subr.bf16.mxu0 0
    %206 = vmatpush2.bf16.xpose.msra.mxu0 0
    %207 = vmatprep.subr.bf16.mxu0 0
    %208 = vmatpush2.bf16.xpose.msra.mxu0 0
    %209 = vmatprep.subr.bf16.mxu0 0
    %210 = vmatpush2.bf16.xpose.msra.mxu0 0
    %211 = vmatprep.subr.bf16.mxu0 0
    %212 = vmatpush2.bf16.xpose.msra.mxu0 0
    %213 = vmatprep.mubr.bf16.mxu0 0
    %214 = vmatmul.mubr.bf16.gmra.mxu0 %v176
    %v215 = vpop.f32.mrf.mxu0
    %v216 = vadd.f32 0.0, %v215
    %v217 = vpop.f32.mrf.mxu0
    %v218 = vpop.f32.mrf.mxu0
    %v219 = vpop.f32.mrf.mxu0
    %220 = vdwg.mxu0
    %v221 = vmul.f32 %v167, 0.35355338
    %v222 = vmul.f32 %v216, 0.35355338
    %v223 = vsel %vm125, %v221, -inf
    %224 = vmax.xlane.f32.xlu0 %v223
    %v225 = vpop.xlane.xlu0 %224
    %v226 = vsel %vm125, %v222, -inf
    %227 = vmax.xlane.f32.xlu0 %v226
    %v228 = vpop.xlane.xlu0 %227
    %v229 = vsub.f32 %v221, %v225
    %v230 = vsub.f32 %v222, %v228
    %v231 = vmul.f32 %v229, 1.442695
    %v232 = vpow.pop %v231
    %v233 = vmul.f32 %v230, 1.442695
    %v234 = vpow.pop %v233
    %v235 = vsel %vm125, %v232, 0.0
    %236 = vadd.xlane.f32.xlu0 %v235
    %v237 = vpop.xlane.xlu0 %236
    %v238 = vsel %vm125, %v234, 0.0
    %239 = vadd.xlane.f32.xlu0 %v238
    %v240 = vpop.xlane.xlu0 %239
    %v241 = vrcp.pop %v237
    %v242 = vrcp.pop %v240
    %v243 = vmul.f32 %v232, %v241
    %v244 = vmul.f32 %v234, %v242
    %v245 = vpack.c.bf16 %v243, %v243
    %v246 = vpack.c.bf16 %v244, %v244
    %247 = vrot.lane.b32.xlu0 %v120, 64
    %v248 = vpop.permute.xlu0 %247
    %v250 = vsel %vm125, %v245, 0
    %vm252 = vcmask 1043456
    %v254 = vsel %vm252, %v248, 0
    %256 = vmatprep.subr.bf16.mxu0 0
    %257 = vmatpush1.bf16.msra.mxu0 0
    %258 = vmatprep.subr.bf16.mxu0 0
    %259 = vmatpush1.bf16.msra.mxu0 0
    %260 = vmatprep.subr.bf16.mxu0 0
    %261 = vmatpush1.bf16.msra.mxu0 0
    %262 = vmatprep.subr.bf16.mxu0 0
    %263 = vmatpush1.bf16.msra.mxu0 0
    %264 = vmatprep.subr.bf16.mxu0 0
    %265 = vmatpush1.bf16.msra.mxu0 0
    %266 = vmatprep.subr.bf16.mxu0 0
    %267 = vmatpush1.bf16.msra.mxu0 0
    %268 = vmatprep.subr.bf16.mxu0 0
    %269 = vmatpush1.bf16.msra.mxu0 0
    %270 = vmatprep.subr.bf16.mxu0 0
    %271 = vmatpush1.bf16.msra.mxu0 %v254
    %272 = vmatprep.subr.bf16.mxu0 0
    %273 = vmatpush2.bf16.msra.mxu0 0
    %274 = vmatprep.subr.bf16.mxu0 0
    %275 = vmatpush2.bf16.msra.mxu0 0
    %276 = vmatprep.subr.bf16.mxu0 0
    %277 = vmatpush2.bf16.msra.mxu0 0
    %278 = vmatprep.subr.bf16.mxu0 0
    %279 = vmatpush2.bf16.msra.mxu0 0
    %280 = vmatprep.subr.bf16.mxu0 0
    %281 = vmatpush2.bf16.msra.mxu0 0
    %282 = vmatprep.subr.bf16.mxu0 0
    %283 = vmatpush2.bf16.msra.mxu0 0
    %284 = vmatprep.subr.bf16.mxu0 0
    %285 = vmatpush2.bf16.msra.mxu0 0
    %286 = vmatprep.subr.bf16.mxu0 0
    %287 = vmatpush2.bf16.msra.mxu0 0
    %288 = vmatprep.mubr.bf16.mxu0 0
    %289 = vmatmul.mubr.bf16.gmra.mxu0 %v250
    %v290 = vpop.f32.mrf.mxu0
    %v291 = vadd.f32 0.0, %v290
    %v292 = vpop.f32.mrf.mxu0
    %v293 = vpop.f32.mrf.mxu0
    %v294 = vpop.f32.mrf.mxu0
    %295 = vdwg.mxu0
    %296 = vrot.lane.b32.xlu0 %v121, 64
    %v297 = vpop.permute.xlu0 %296
    %v299 = vsel %vm125, %v246, 0
    %v302 = vsel %vm252, %v297, 0
    %304 = vmatprep.subr.bf16.mxu0 0
    %305 = vmatpush1.bf16.msra.mxu0 0
    %306 = vmatprep.subr.bf16.mxu0 0
    %307 = vmatpush1.bf16.msra.mxu0 0
    %308 = vmatprep.subr.bf16.mxu0 0
    %309 = vmatpush1.bf16.msra.mxu0 0
    %310 = vmatprep.subr.bf16.mxu0 0
    %311 = vmatpush1.bf16.msra.mxu0 0
    %312 = vmatprep.subr.bf16.mxu0 0
    %313 = vmatpush1.bf16.msra.mxu0 0
    %314 = vmatprep.subr.bf16.mxu0 0
    %315 = vmatpush1.bf16.msra.mxu0 0
    %316 = vmatprep.subr.bf16.mxu0 0
    %317 = vmatpush1.bf16.msra.mxu0 0
    %318 = vmatprep.subr.bf16.mxu0 0
    %319 = vmatpush1.bf16.msra.mxu0 %v302
    %320 = vmatprep.subr.bf16.mxu0 0
    %321 = vmatpush2.bf16.msra.mxu0 0
    %322 = vmatprep.subr.bf16.mxu0 0
    %323 = vmatpush2.bf16.msra.mxu0 0
    %324 = vmatprep.subr.bf16.mxu0 0
    %325 = vmatpush2.bf16.msra.mxu0 0
    %326 = vmatprep.subr.bf16.mxu0 0
    %327 = vmatpush2.bf16.msra.mxu0 0
    %328 = vmatprep.subr.bf16.mxu0 0
    %329 = vmatpush2.bf16.msra.mxu0 0
    %330 = vmatprep.subr.bf16.mxu0 0
    %331 = vmatpush2.bf16.msra.mxu0 0
    %332 = vmatprep.subr.bf16.mxu0 0
    %333 = vmatpush2.bf16.msra.mxu0 0
    %334 = vmatprep.subr.bf16.mxu0 0
    %335 = vmatpush2.bf16.msra.mxu0 0
    %336 = vmatprep.mubr.bf16.mxu0 0
    %337 = vmatmul.mubr.bf16.gmra.mxu0 %v299
    %v338 = vpop.f32.mrf.mxu0
    %v339 = vadd.f32 0.0, %v338
    %v340 = vpop.f32.mrf.mxu0
    %v341 = vpop.f32.mrf.mxu0
    %v342 = vpop.f32.mrf.mxu0
    %343 = vdwg.mxu0
    %v344 = vpack.c.bf16 %v339, %v291
    %v345 = vld [vmem:[%s3] sm:$0xf]
    %346 = vrot.lane.b32.xlu0 %v120, 120
    %v347 = vpop.permute.xlu0 %346
    %348 = vrot.lane.b32.xlu0 %v120, 88
    %v349 = vpop.permute.xlu0 %348
    %v351 = vsel %vm125, %v347, 0
    %v354 = vsel %vm125, %v349, 0
    %356 = vmatprep.subr.bf16.mxu0 0
    %357 = vmatpush1.bf16.xpose.msra.mxu0 0
    %358 = vmatprep.subr.bf16.mxu0 0
    %359 = vmatpush1.bf16.xpose.msra.mxu0 0
    %360 = vmatprep.subr.bf16.mxu0 0
    %361 = vmatpush1.bf16.xpose.msra.mxu0 0
    %362 = vmatprep.subr.bf16.mxu0 0
    %363 = vmatpush1.bf16.xpose.msra.mxu0 0
    %364 = vmatprep.subr.bf16.mxu0 0
    %365 = vmatpush1.bf16.xpose.msra.mxu0 0
    %366 = vmatprep.subr.bf16.mxu0 0
    %367 = vmatpush1.bf16.xpose.msra.mxu0 0
    %368 = vmatprep.subr.bf16.mxu0 0
    %369 = vmatpush1.bf16.xpose.msra.mxu0 0
    %370 = vmatprep.subr.bf16.mxu0 0
    %371 = vmatpush1.bf16.xpose.msra.mxu0 %v354
    %372 = vmatprep.subr.bf16.mxu0 0
    %373 = vmatpush2.bf16.xpose.msra.mxu0 0
    %374 = vmatprep.subr.bf16.mxu0 0
    %375 = vmatpush2.bf16.xpose.msra.mxu0 0
    %376 = vmatprep.subr.bf16.mxu0 0
    %377 = vmatpush2.bf16.xpose.msra.mxu0 0
    %378 = vmatprep.subr.bf16.mxu0 0
    %379 = vmatpush2.bf16.xpose.msra.mxu0 0
    %380 = vmatprep.subr.bf16.mxu0 0
    %381 = vmatpush2.bf16.xpose.msra.mxu0 0
    %382 = vmatprep.subr.bf16.mxu0 0
    %383 = vmatpush2.bf16.xpose.msra.mxu0 0
    %384 = vmatprep.subr.bf16.mxu0 0
    %385 = vmatpush2.bf16.xpose.msra.mxu0 0
    %386 = vmatprep.subr.bf16.mxu0 0
    %387 = vmatpush2.bf16.xpose.msra.mxu0 0
    %388 = vmatprep.mubr.bf16.mxu0 0
    %389 = vmatmul.mubr.bf16.gmra.mxu0 %v351
    %v390 = vpop.f32.mrf.mxu0
    %v391 = vadd.f32 0.0, %v390
    %v392 = vpop.f32.mrf.mxu0
    %v393 = vpop.f32.mrf.mxu0
    %v394 = vpop.f32.mrf.mxu0
    %395 = vdwg.mxu0
    %396 = vrot.lane.b32.xlu0 %v121, 120
    %v397 = vpop.permute.xlu0 %396
    %398 = vrot.lane.b32.xlu0 %v121, 88
    %v399 = vpop.permute.xlu0 %398
    %v401 = vsel %vm125, %v397, 0
    %v404 = vsel %vm125, %v399, 0
    %406 = vmatprep.subr.bf16.mxu0 0
    %407 = vmatpush1.bf16.xpose.msra.mxu0 0
    %408 = vmatprep.subr.bf16.mxu0 0
    %409 = vmatpush1.bf16.xpose.msra.mxu0 0
    %410 = vmatprep.subr.bf16.mxu0 0
    %411 = vmatpush1.bf16.xpose.msra.mxu0 0
    %412 = vmatprep.subr.bf16.mxu0 0
    %413 = vmatpush1.bf16.xpose.msra.mxu0 0
    %414 = vmatprep.subr.bf16.mxu0 0
    %415 = vmatpush1.bf16.xpose.msra.mxu0 0
    %416 = vmatprep.subr.bf16.mxu0 0
    %417 = vmatpush1.bf16.xpose.msra.mxu0 0
    %418 = vmatprep.subr.bf16.mxu0 0
    %419 = vmatpush1.bf16.xpose.msra.mxu0 0
    %420 = vmatprep.subr.bf16.mxu0 0
    %421 = vmatpush1.bf16.xpose.msra.mxu0 %v404
    %422 = vmatprep.subr.bf16.mxu0 0
    %423 = vmatpush2.bf16.xpose.msra.mxu0 0
    %424 = vmatprep.subr.bf16.mxu0 0
    %425 = vmatpush2.bf16.xpose.msra.mxu0 0
    %426 = vmatprep.subr.bf16.mxu0 0
    %427 = vmatpush2.bf16.xpose.msra.mxu0 0
    %428 = vmatprep.subr.bf16.mxu0 0
    %429 = vmatpush2.bf16.xpose.msra.mxu0 0
    %430 = vmatprep.subr.bf16.mxu0 0
    %431 = vmatpush2.bf16.xpose.msra.mxu0 0
    %432 = vmatprep.subr.bf16.mxu0 0
    %433 = vmatpush2.bf16.xpose.msra.mxu0 0
    %434 = vmatprep.subr.bf16.mxu0 0
    %435 = vmatpush2.bf16.xpose.msra.mxu0 0
    %436 = vmatprep.subr.bf16.mxu0 0
    %437 = vmatpush2.bf16.xpose.msra.mxu0 0
    %438 = vmatprep.mubr.bf16.mxu0 0
    %439 = vmatmul.mubr.bf16.gmra.mxu0 %v401
    %v440 = vpop.f32.mrf.mxu0
    %v441 = vadd.f32 0.0, %v440
    %v442 = vpop.f32.mrf.mxu0
    %v443 = vpop.f32.mrf.mxu0
    %v444 = vpop.f32.mrf.mxu0
    %445 = vdwg.mxu0
    %v446 = vmul.f32 %v391, 0.35355338
    %v447 = vmul.f32 %v441, 0.35355338
    %v448 = vsel %vm125, %v446, -inf
    %449 = vmax.xlane.f32.xlu0 %v448
    %v450 = vpop.xlane.xlu0 %449
    %v451 = vsel %vm125, %v447, -inf
    %452 = vmax.xlane.f32.xlu0 %v451
    %v453 = vpop.xlane.xlu0 %452
    %v454 = vsub.f32 %v446, %v450
    %v455 = vsub.f32 %v447, %v453
    %v456 = vmul.f32 %v454, 1.442695
    %v457 = vpow.pop %v456
    %v458 = vmul.f32 %v455, 1.442695
    %v459 = vpow.pop %v458
    %v460 = vsel %vm125, %v457, 0.0
    %461 = vadd.xlane.f32.xlu0 %v460
    %v462 = vpop.xlane.xlu0 %461
    %v463 = vsel %vm125, %v459, 0.0
    %464 = vadd.xlane.f32.xlu0 %v463
    %v465 = vpop.xlane.xlu0 %464
    %v466 = vrcp.pop %v462
    %v467 = vrcp.pop %v465
    %v468 = vmul.f32 %v457, %v466
    %v469 = vmul.f32 %v459, %v467
    %v470 = vpack.c.bf16 %v468, %v468
    %v471 = vpack.c.bf16 %v469, %v469
    %472 = vrot.lane.b32.xlu0 %v120, 56
    %v473 = vpop.permute.xlu0 %472
    %v475 = vsel %vm125, %v470, 0
    %v478 = vsel %vm252, %v473, 0
    %480 = vmatprep.subr.bf16.mxu0 0
    %481 = vmatpush1.bf16.msra.mxu0 0
    %482 = vmatprep.subr.bf16.mxu0 0
    %483 = vmatpush1.bf16.msra.mxu0 0
    %484 = vmatprep.subr.bf16.mxu0 0
    %485 = vmatpush1.bf16.msra.mxu0 0
    %486 = vmatprep.subr.bf16.mxu0 0
    %487 = vmatpush1.bf16.msra.mxu0 0
    %488 = vmatprep.subr.bf16.mxu0 0
    %489 = vmatpush1.bf16.msra.mxu0 0
    %490 = vmatprep.subr.bf16.mxu0 0
    %491 = vmatpush1.bf16.msra.mxu0 0
    %492 = vmatprep.subr.bf16.mxu0 0
    %493 = vmatpush1.bf16.msra.mxu0 0
    %494 = vmatprep.subr.bf16.mxu0 0
    %495 = vmatpush1.bf16.msra.mxu0 %v478
    %496 = vmatprep.subr.bf16.mxu0 0
    %497 = vmatpush2.bf16.msra.mxu0 0
    %498 = vmatprep.subr.bf16.mxu0 0
    %499 = vmatpush2.bf16.msra.mxu0 0
    %500 = vmatprep.subr.bf16.mxu0 0
    %501 = vmatpush2.bf16.msra.mxu0 0
    %502 = vmatprep.subr.bf16.mxu0 0
    %503 = vmatpush2.bf16.msra.mxu0 0
    %504 = vmatprep.subr.bf16.mxu0 0
    %505 = vmatpush2.bf16.msra.mxu0 0
    %506 = vmatprep.subr.bf16.mxu0 0
    %507 = vmatpush2.bf16.msra.mxu0 0
    %508 = vmatprep.subr.bf16.mxu0 0
    %509 = vmatpush2.bf16.msra.mxu0 0
    %510 = vmatprep.subr.bf16.mxu0 0
    %511 = vmatpush2.bf16.msra.mxu0 0
    %512 = vmatprep.mubr.bf16.mxu0 0
    %513 = vmatmul.mubr.bf16.gmra.mxu0 %v475
    %v514 = vpop.f32.mrf.mxu0
    %v515 = vadd.f32 0.0, %v514
    %v516 = vpop.f32.mrf.mxu0
    %v517 = vpop.f32.mrf.mxu0
    %v518 = vpop.f32.mrf.mxu0
    %519 = vdwg.mxu0
    %520 = vrot.lane.b32.xlu0 %v121, 56
    %v521 = vpop.permute.xlu0 %520
    %v523 = vsel %vm125, %v471, 0
    %v526 = vsel %vm252, %v521, 0
    %528 = vmatprep.subr.bf16.mxu0 0
    %529 = vmatpush1.bf16.msra.mxu0 0
    %530 = vmatprep.subr.bf16.mxu0 0
    %531 = vmatpush1.bf16.msra.mxu0 0
    %532 = vmatprep.subr.bf16.mxu0 0
    %533 = vmatpush1.bf16.msra.mxu0 0
    %534 = vmatprep.subr.bf16.mxu0 0
    %535 = vmatpush1.bf16.msra.mxu0 0
    %536 = vmatprep.subr.bf16.mxu0 0
    %537 = vmatpush1.bf16.msra.mxu0 0
    %538 = vmatprep.subr.bf16.mxu0 0
    %539 = vmatpush1.bf16.msra.mxu0 0
    %540 = vmatprep.subr.bf16.mxu0 0
    %541 = vmatpush1.bf16.msra.mxu0 0
    %542 = vmatprep.subr.bf16.mxu0 0
    %543 = vmatpush1.bf16.msra.mxu0 %v526
    %544 = vmatprep.subr.bf16.mxu0 0
    %545 = vmatpush2.bf16.msra.mxu0 0
    %546 = vmatprep.subr.bf16.mxu0 0
    %547 = vmatpush2.bf16.msra.mxu0 0
    %548 = vmatprep.subr.bf16.mxu0 0
    %549 = vmatpush2.bf16.msra.mxu0 0
    %550 = vmatprep.subr.bf16.mxu0 0
    %551 = vmatpush2.bf16.msra.mxu0 0
    %552 = vmatprep.subr.bf16.mxu0 0
    %553 = vmatpush2.bf16.msra.mxu0 0
    %554 = vmatprep.subr.bf16.mxu0 0
    %555 = vmatpush2.bf16.msra.mxu0 0
    %556 = vmatprep.subr.bf16.mxu0 0
    %557 = vmatpush2.bf16.msra.mxu0 0
    %558 = vmatprep.subr.bf16.mxu0 0
    %559 = vmatpush2.bf16.msra.mxu0 0
    %560 = vmatprep.mubr.bf16.mxu0 0
    %561 = vmatmul.mubr.bf16.gmra.mxu0 %v523
    %v562 = vpop.f32.mrf.mxu0
    %v563 = vadd.f32 0.0, %v562
    %v564 = vpop.f32.mrf.mxu0
    %v565 = vpop.f32.mrf.mxu0
    %v566 = vpop.f32.mrf.mxu0
    %567 = vdwg.mxu0
    %v568 = vpack.c.bf16 %v563, %v515
    %s569 = scalar_lea.vmem %s3, 4
    %v570 = vld [vmem:[%s569] sm:$0xf]
    %v572 = vsel %vm125, %v568, 0
    %v575 = vsel %vm252, %v570, 0
    %577 = vmatprep.subr.bf16.mxu0 0
    %578 = vmatpush1.bf16.msra.mxu0 0
    %579 = vmatprep.subr.bf16.mxu0 0
    %580 = vmatpush1.bf16.msra.mxu0 0
    %581 = vmatprep.subr.bf16.mxu0 0
    %582 = vmatpush1.bf16.msra.mxu0 0
    %583 = vmatprep.subr.bf16.mxu0 0
    %584 = vmatpush1.bf16.msra.mxu0 0
    %585 = vmatprep.subr.bf16.mxu0 0
    %586 = vmatpush1.bf16.msra.mxu0 0
    %587 = vmatprep.subr.bf16.mxu0 0
    %588 = vmatpush1.bf16.msra.mxu0 0
    %589 = vmatprep.subr.bf16.mxu0 0
    %590 = vmatpush1.bf16.msra.mxu0 0
    %591 = vmatprep.subr.bf16.mxu0 0
    %592 = vmatpush1.bf16.msra.mxu0 %v575
    %593 = vmatprep.subr.bf16.mxu0 0
    %594 = vmatpush2.bf16.msra.mxu0 0
    %595 = vmatprep.subr.bf16.mxu0 0
    %596 = vmatpush2.bf16.msra.mxu0 0
    %597 = vmatprep.subr.bf16.mxu0 0
    %598 = vmatpush2.bf16.msra.mxu0 0
    %599 = vmatprep.subr.bf16.mxu0 0
    %600 = vmatpush2.bf16.msra.mxu0 0
    %601 = vmatprep.subr.bf16.mxu0 0
    %602 = vmatpush2.bf16.msra.mxu0 0
    %603 = vmatprep.subr.bf16.mxu0 0
    %604 = vmatpush2.bf16.msra.mxu0 0
    %605 = vmatprep.subr.bf16.mxu0 0
    %606 = vmatpush2.bf16.msra.mxu0 0
    %607 = vmatprep.subr.bf16.mxu0 0
    %608 = vmatpush2.bf16.msra.mxu0 0
    %609 = vmatprep.mubr.bf16.mxu0 0
    %610 = vmatmul.mubr.bf16.gmra.mxu0 %v572
    %v611 = vpop.f32.mrf.mxu0
    %v612 = vadd.f32 0.0, %v611
    %v613 = vpop.f32.mrf.mxu0
    %v614 = vpop.f32.mrf.mxu0
    %v615 = vadd.f32 0.0, %v614
    %v616 = vpop.f32.mrf.mxu0
    %617 = vdwg.mxu0
    %v619 = vsel %vm125, %v344, 0
    %v622 = vsel %vm252, %v345, 0
    %624 = vmatprep.subr.bf16.mxu0 0
    %625 = vmatpush1.bf16.msra.mxu0 0
    %626 = vmatprep.subr.bf16.mxu0 0
    %627 = vmatpush1.bf16.msra.mxu0 0
    %628 = vmatprep.subr.bf16.mxu0 0
    %629 = vmatpush1.bf16.msra.mxu0 0
    %630 = vmatprep.subr.bf16.mxu0 0
    %631 = vmatpush1.bf16.msra.mxu0 0
    %632 = vmatprep.subr.bf16.mxu0 0
    %633 = vmatpush1.bf16.msra.mxu0 0
    %634 = vmatprep.subr.bf16.mxu0 0
    %635 = vmatpush1.bf16.msra.mxu0 0
    %636 = vmatprep.subr.bf16.mxu0 0
    %637 = vmatpush1.bf16.msra.mxu0 0
    %638 = vmatprep.subr.bf16.mxu0 0
    %639 = vmatpush1.bf16.msra.mxu0 %v622
    %640 = vmatprep.subr.bf16.mxu0 0
    %641 = vmatpush2.bf16.msra.mxu0 0
    %642 = vmatprep.subr.bf16.mxu0 0
    %643 = vmatpush2.bf16.msra.mxu0 0
    %644 = vmatprep.subr.bf16.mxu0 0
    %645 = vmatpush2.bf16.msra.mxu0 0
    %646 = vmatprep.subr.bf16.mxu0 0
    %647 = vmatpush2.bf16.msra.mxu0 0
    %648 = vmatprep.subr.bf16.mxu0 0
    %649 = vmatpush2.bf16.msra.mxu0 0
    %650 = vmatprep.subr.bf16.mxu0 0
    %651 = vmatpush2.bf16.msra.mxu0 0
    %652 = vmatprep.subr.bf16.mxu0 0
    %653 = vmatpush2.bf16.msra.mxu0 0
    %654 = vmatprep.subr.bf16.mxu0 0
    %655 = vmatpush2.bf16.msra.mxu0 0
    %656 = vmatprep.mubr.bf16.mxu0 0
    %657 = vmatmul.mubr.bf16.gmra.mxu0 %v619
    %v658 = vpop.f32.mrf.mxu0
    %v659 = vadd.f32 %v612, %v658
    %v660 = vpop.f32.mrf.mxu0
    %v661 = vpop.f32.mrf.mxu0
    %v662 = vadd.f32 %v615, %v661
    %v663 = vpop.f32.mrf.mxu0
    %664 = vdwg.mxu0
    %665 = vrot.lane.b32.xlu0 %v120, 112
    %v666 = vpop.permute.xlu0 %665
    %667 = vrot.lane.b32.xlu0 %v120, 80
    %v668 = vpop.permute.xlu0 %667
    %v670 = vsel %vm125, %v666, 0
    %v673 = vsel %vm125, %v668, 0
    %675 = vmatprep.subr.bf16.mxu0 0
    %676 = vmatpush1.bf16.xpose.msra.mxu0 0
    %677 = vmatprep.subr.bf16.mxu0 0
    %678 = vmatpush1.bf16.xpose.msra.mxu0 0
    %679 = vmatprep.subr.bf16.mxu0 0
    %680 = vmatpush1.bf16.xpose.msra.mxu0 0
    %681 = vmatprep.subr.bf16.mxu0 0
    %682 = vmatpush1.bf16.xpose.msra.mxu0 0
    %683 = vmatprep.subr.bf16.mxu0 0
    %684 = vmatpush1.bf16.xpose.msra.mxu0 0
    %685 = vmatprep.subr.bf16.mxu0 0
    %686 = vmatpush1.bf16.xpose.msra.mxu0 0
    %687 = vmatprep.subr.bf16.mxu0 0
    %688 = vmatpush1.bf16.xpose.msra.mxu0 0
    %689 = vmatprep.subr.bf16.mxu0 0
    %690 = vmatpush1.bf16.xpose.msra.mxu0 %v673
    %691 = vmatprep.subr.bf16.mxu0 0
    %692 = vmatpush2.bf16.xpose.msra.mxu0 0
    %693 = vmatprep.subr.bf16.mxu0 0
    %694 = vmatpush2.bf16.xpose.msra.mxu0 0
    %695 = vmatprep.subr.bf16.mxu0 0
    %696 = vmatpush2.bf16.xpose.msra.mxu0 0
    %697 = vmatprep.subr.bf16.mxu0 0
    %698 = vmatpush2.bf16.xpose.msra.mxu0 0
    %699 = vmatprep.subr.bf16.mxu0 0
    %700 = vmatpush2.bf16.xpose.msra.mxu0 0
    %701 = vmatprep.subr.bf16.mxu0 0
    %702 = vmatpush2.bf16.xpose.msra.mxu0 0
    %703 = vmatprep.subr.bf16.mxu0 0
    %704 = vmatpush2.bf16.xpose.msra.mxu0 0
    %705 = vmatprep.subr.bf16.mxu0 0
    %706 = vmatpush2.bf16.xpose.msra.mxu0 0
    %707 = vmatprep.mubr.bf16.mxu0 0
    %708 = vmatmul.mubr.bf16.gmra.mxu0 %v670
    %v709 = vpop.f32.mrf.mxu0
    %v710 = vadd.f32 0.0, %v709
    %v711 = vpop.f32.mrf.mxu0
    %v712 = vpop.f32.mrf.mxu0
    %v713 = vpop.f32.mrf.mxu0
    %714 = vdwg.mxu0
    %715 = vrot.lane.b32.xlu0 %v121, 112
    %v716 = vpop.permute.xlu0 %715
    %717 = vrot.lane.b32.xlu0 %v121, 80
    %v718 = vpop.permute.xlu0 %717
    %v720 = vsel %vm125, %v716, 0
    %v723 = vsel %vm125, %v718, 0
    %725 = vmatprep.subr.bf16.mxu0 0
    %726 = vmatpush1.bf16.xpose.msra.mxu0 0
    %727 = vmatprep.subr.bf16.mxu0 0
    %728 = vmatpush1.bf16.xpose.msra.mxu0 0
    %729 = vmatprep.subr.bf16.mxu0 0
    %730 = vmatpush1.bf16.xpose.msra.mxu0 0
    %731 = vmatprep.subr.bf16.mxu0 0
    %732 = vmatpush1.bf16.xpose.msra.mxu0 0
    %733 = vmatprep.subr.bf16.mxu0 0
    %734 = vmatpush1.bf16.xpose.msra.mxu0 0
    %735 = vmatprep.subr.bf16.mxu0 0
    %736 = vmatpush1.bf16.xpose.msra.mxu0 0
    %737 = vmatprep.subr.bf16.mxu0 0
    %738 = vmatpush1.bf16.xpose.msra.mxu0 0
    %739 = vmatprep.subr.bf16.mxu0 0
    %740 = vmatpush1.bf16.xpose.msra.mxu0 %v723
    %741 = vmatprep.subr.bf16.mxu0 0
    %742 = vmatpush2.bf16.xpose.msra.mxu0 0
    %743 = vmatprep.subr.bf16.mxu0 0
    %744 = vmatpush2.bf16.xpose.msra.mxu0 0
    %745 = vmatprep.subr.bf16.mxu0 0
    %746 = vmatpush2.bf16.xpose.msra.mxu0 0
    %747 = vmatprep.subr.bf16.mxu0 0
    %748 = vmatpush2.bf16.xpose.msra.mxu0 0
    %749 = vmatprep.subr.bf16.mxu0 0
    %750 = vmatpush2.bf16.xpose.msra.mxu0 0
    %751 = vmatprep.subr.bf16.mxu0 0
    %752 = vmatpush2.bf16.xpose.msra.mxu0 0
    %753 = vmatprep.subr.bf16.mxu0 0
    %754 = vmatpush2.bf16.xpose.msra.mxu0 0
    %755 = vmatprep.subr.bf16.mxu0 0
    %756 = vmatpush2.bf16.xpose.msra.mxu0 0
    %757 = vmatprep.mubr.bf16.mxu0 0
    %758 = vmatmul.mubr.bf16.gmra.mxu0 %v720
    %v759 = vpop.f32.mrf.mxu0
    %v760 = vadd.f32 0.0, %v759
    %v761 = vpop.f32.mrf.mxu0
    %v762 = vpop.f32.mrf.mxu0
    %v763 = vpop.f32.mrf.mxu0
    %764 = vdwg.mxu0
    %v765 = vmul.f32 %v710, 0.35355338
    %v766 = vmul.f32 %v760, 0.35355338
    %v767 = vsel %vm125, %v765, -inf
    %768 = vmax.xlane.f32.xlu0 %v767
    %v769 = vpop.xlane.xlu0 %768
    %v770 = vsel %vm125, %v766, -inf
    %771 = vmax.xlane.f32.xlu0 %v770
    %v772 = vpop.xlane.xlu0 %771
    %v773 = vsub.f32 %v765, %v769
    %v774 = vsub.f32 %v766, %v772
    %v775 = vmul.f32 %v773, 1.442695
    %v776 = vpow.pop %v775
    %v777 = vmul.f32 %v774, 1.442695
    %v778 = vpow.pop %v777
    %v779 = vsel %vm125, %v776, 0.0
    %780 = vadd.xlane.f32.xlu0 %v779
    %v781 = vpop.xlane.xlu0 %780
    %v782 = vsel %vm125, %v778, 0.0
    %783 = vadd.xlane.f32.xlu0 %v782
    %v784 = vpop.xlane.xlu0 %783
    %v785 = vrcp.pop %v781
    %v786 = vrcp.pop %v784
    %v787 = vmul.f32 %v776, %v785
    %v788 = vmul.f32 %v778, %v786
    %v789 = vpack.c.bf16 %v787, %v787
    %v790 = vpack.c.bf16 %v788, %v788
    %791 = vrot.lane.b32.xlu0 %v120, 48
    %v792 = vpop.permute.xlu0 %791
    %v794 = vsel %vm125, %v789, 0
    %v797 = vsel %vm252, %v792, 0
    %799 = vmatprep.subr.bf16.mxu0 0
    %800 = vmatpush1.bf16.msra.mxu0 0
    %801 = vmatprep.subr.bf16.mxu0 0
    %802 = vmatpush1.bf16.msra.mxu0 0
    %803 = vmatprep.subr.bf16.mxu0 0
    %804 = vmatpush1.bf16.msra.mxu0 0
    %805 = vmatprep.subr.bf16.mxu0 0
    %806 = vmatpush1.bf16.msra.mxu0 0
    %807 = vmatprep.subr.bf16.mxu0 0
    %808 = vmatpush1.bf16.msra.mxu0 0
    %809 = vmatprep.subr.bf16.mxu0 0
    %810 = vmatpush1.bf16.msra.mxu0 0
    %811 = vmatprep.subr.bf16.mxu0 0
    %812 = vmatpush1.bf16.msra.mxu0 0
    %813 = vmatprep.subr.bf16.mxu0 0
    %814 = vmatpush1.bf16.msra.mxu0 %v797
    %815 = vmatprep.subr.bf16.mxu0 0
    %816 = vmatpush2.bf16.msra.mxu0 0
    %817 = vmatprep.subr.bf16.mxu0 0
    %818 = vmatpush2.bf16.msra.mxu0 0
    %819 = vmatprep.subr.bf16.mxu0 0
    %820 = vmatpush2.bf16.msra.mxu0 0
    %821 = vmatprep.subr.bf16.mxu0 0
    %822 = vmatpush2.bf16.msra.mxu0 0
    %823 = vmatprep.subr.bf16.mxu0 0
    %824 = vmatpush2.bf16.msra.mxu0 0
    %825 = vmatprep.subr.bf16.mxu0 0
    %826 = vmatpush2.bf16.msra.mxu0 0
    %827 = vmatprep.subr.bf16.mxu0 0
    %828 = vmatpush2.bf16.msra.mxu0 0
    %829 = vmatprep.subr.bf16.mxu0 0
    %830 = vmatpush2.bf16.msra.mxu0 0
    %831 = vmatprep.mubr.bf16.mxu0 0
    %832 = vmatmul.mubr.bf16.gmra.mxu0 %v794
    %v833 = vpop.f32.mrf.mxu0
    %v834 = vadd.f32 0.0, %v833
    %v835 = vpop.f32.mrf.mxu0
    %v836 = vpop.f32.mrf.mxu0
    %v837 = vpop.f32.mrf.mxu0
    %838 = vdwg.mxu0
    %839 = vrot.lane.b32.xlu0 %v121, 48
    %v840 = vpop.permute.xlu0 %839
    %v842 = vsel %vm125, %v790, 0
    %v845 = vsel %vm252, %v840, 0
    %847 = vmatprep.subr.bf16.mxu0 0
    %848 = vmatpush1.bf16.msra.mxu0 0
    %849 = vmatprep.subr.bf16.mxu0 0
    %850 = vmatpush1.bf16.msra.mxu0 0
    %851 = vmatprep.subr.bf16.mxu0 0
    %852 = vmatpush1.bf16.msra.mxu0 0
    %853 = vmatprep.subr.bf16.mxu0 0
    %854 = vmatpush1.bf16.msra.mxu0 0
    %855 = vmatprep.subr.bf16.mxu0 0
    %856 = vmatpush1.bf16.msra.mxu0 0
    %857 = vmatprep.subr.bf16.mxu0 0
    %858 = vmatpush1.bf16.msra.mxu0 0
    %859 = vmatprep.subr.bf16.mxu0 0
    %860 = vmatpush1.bf16.msra.mxu0 0
    %861 = vmatprep.subr.bf16.mxu0 0
    %862 = vmatpush1.bf16.msra.mxu0 %v845
    %863 = vmatprep.subr.bf16.mxu0 0
    %864 = vmatpush2.bf16.msra.mxu0 0
    %865 = vmatprep.subr.bf16.mxu0 0
    %866 = vmatpush2.bf16.msra.mxu0 0
    %867 = vmatprep.subr.bf16.mxu0 0
    %868 = vmatpush2.bf16.msra.mxu0 0
    %869 = vmatprep.subr.bf16.mxu0 0
    %870 = vmatpush2.bf16.msra.mxu0 0
    %871 = vmatprep.subr.bf16.mxu0 0
    %872 = vmatpush2.bf16.msra.mxu0 0
    %873 = vmatprep.subr.bf16.mxu0 0
    %874 = vmatpush2.bf16.msra.mxu0 0
    %875 = vmatprep.subr.bf16.mxu0 0
    %876 = vmatpush2.bf16.msra.mxu0 0
    %877 = vmatprep.subr.bf16.mxu0 0
    %878 = vmatpush2.bf16.msra.mxu0 0
    %879 = vmatprep.mubr.bf16.mxu0 0
    %880 = vmatmul.mubr.bf16.gmra.mxu0 %v842
    %v881 = vpop.f32.mrf.mxu0
    %v882 = vadd.f32 0.0, %v881
    %v883 = vpop.f32.mrf.mxu0
    %v884 = vpop.f32.mrf.mxu0
    %v885 = vpop.f32.mrf.mxu0
    %886 = vdwg.mxu0
    %v887 = vpack.c.bf16 %v882, %v834
    %s888 = scalar_lea.vmem %s3, 8
    %v889 = vld [vmem:[%s888] sm:$0xf]
    %v891 = vsel %vm125, %v887, 0
    %v894 = vsel %vm252, %v889, 0
    %896 = vmatprep.subr.bf16.mxu0 0
    %897 = vmatpush1.bf16.msra.mxu0 0
    %898 = vmatprep.subr.bf16.mxu0 0
    %899 = vmatpush1.bf16.msra.mxu0 0
    %900 = vmatprep.subr.bf16.mxu0 0
    %901 = vmatpush1.bf16.msra.mxu0 0
    %902 = vmatprep.subr.bf16.mxu0 0
    %903 = vmatpush1.bf16.msra.mxu0 0
    %904 = vmatprep.subr.bf16.mxu0 0
    %905 = vmatpush1.bf16.msra.mxu0 0
    %906 = vmatprep.subr.bf16.mxu0 0
    %907 = vmatpush1.bf16.msra.mxu0 0
    %908 = vmatprep.subr.bf16.mxu0 0
    %909 = vmatpush1.bf16.msra.mxu0 0
    %910 = vmatprep.subr.bf16.mxu0 0
    %911 = vmatpush1.bf16.msra.mxu0 %v894
    %912 = vmatprep.subr.bf16.mxu0 0
    %913 = vmatpush2.bf16.msra.mxu0 0
    %914 = vmatprep.subr.bf16.mxu0 0
    %915 = vmatpush2.bf16.msra.mxu0 0
    %916 = vmatprep.subr.bf16.mxu0 0
    %917 = vmatpush2.bf16.msra.mxu0 0
    %918 = vmatprep.subr.bf16.mxu0 0
    %919 = vmatpush2.bf16.msra.mxu0 0
    %920 = vmatprep.subr.bf16.mxu0 0
    %921 = vmatpush2.bf16.msra.mxu0 0
    %922 = vmatprep.subr.bf16.mxu0 0
    %923 = vmatpush2.bf16.msra.mxu0 0
    %924 = vmatprep.subr.bf16.mxu0 0
    %925 = vmatpush2.bf16.msra.mxu0 0
    %926 = vmatprep.subr.bf16.mxu0 0
    %927 = vmatpush2.bf16.msra.mxu0 0
    %928 = vmatprep.mubr.bf16.mxu0 0
    %929 = vmatmul.mubr.bf16.gmra.mxu0 %v891
    %v930 = vpop.f32.mrf.mxu0
    %v931 = vadd.f32 0.0, %v930
    %v932 = vpop.f32.mrf.mxu0
    %v933 = vpop.f32.mrf.mxu0
    %v934 = vadd.f32 0.0, %v933
    %v935 = vpop.f32.mrf.mxu0
    %936 = vdwg.mxu0
    %v937 = vadd.f32 %v659, %v931
    %v938 = vadd.f32 %v662, %v934
    %939 = vrot.lane.b32.xlu0 %v120, 104
    %v940 = vpop.permute.xlu0 %939
    %941 = vrot.lane.b32.xlu0 %v120, 72
    %v942 = vpop.permute.xlu0 %941
    %v944 = vsel %vm125, %v940, 0
    %v947 = vsel %vm125, %v942, 0
    %949 = vmatprep.subr.bf16.mxu0 0
    %950 = vmatpush1.bf16.xpose.msra.mxu0 0
    %951 = vmatprep.subr.bf16.mxu0 0
    %952 = vmatpush1.bf16.xpose.msra.mxu0 0
    %953 = vmatprep.subr.bf16.mxu0 0
    %954 = vmatpush1.bf16.xpose.msra.mxu0 0
    %955 = vmatprep.subr.bf16.mxu0 0
    %956 = vmatpush1.bf16.xpose.msra.mxu0 0
    %957 = vmatprep.subr.bf16.mxu0 0
    %958 = vmatpush1.bf16.xpose.msra.mxu0 0
    %959 = vmatprep.subr.bf16.mxu0 0
    %960 = vmatpush1.bf16.xpose.msra.mxu0 0
    %961 = vmatprep.subr.bf16.mxu0 0
    %962 = vmatpush1.bf16.xpose.msra.mxu0 0
    %963 = vmatprep.subr.bf16.mxu0 0
    %964 = vmatpush1.bf16.xpose.msra.mxu0 %v947
    %965 = vmatprep.subr.bf16.mxu0 0
    %966 = vmatpush2.bf16.xpose.msra.mxu0 0
    %967 = vmatprep.subr.bf16.mxu0 0
    %968 = vmatpush2.bf16.xpose.msra.mxu0 0
    %969 = vmatprep.subr.bf16.mxu0 0
    %970 = vmatpush2.bf16.xpose.msra.mxu0 0
    %971 = vmatprep.subr.bf16.mxu0 0
    %972 = vmatpush2.bf16.xpose.msra.mxu0 0
    %973 = vmatprep.subr.bf16.mxu0 0
    %974 = vmatpush2.bf16.xpose.msra.mxu0 0
    %975 = vmatprep.subr.bf16.mxu0 0
    %976 = vmatpush2.bf16.xpose.msra.mxu0 0
    %977 = vmatprep.subr.bf16.mxu0 0
    %978 = vmatpush2.bf16.xpose.msra.mxu0 0
    %979 = vmatprep.subr.bf16.mxu0 0
    %980 = vmatpush2.bf16.xpose.msra.mxu0 0
    %981 = vmatprep.mubr.bf16.mxu0 0
    %982 = vmatmul.mubr.bf16.gmra.mxu0 %v944
    %v983 = vpop.f32.mrf.mxu0
    %v984 = vadd.f32 0.0, %v983
    %v985 = vpop.f32.mrf.mxu0
    %v986 = vpop.f32.mrf.mxu0
    %v987 = vpop.f32.mrf.mxu0
    %988 = vdwg.mxu0
    %989 = vrot.lane.b32.xlu0 %v121, 104
    %v990 = vpop.permute.xlu0 %989
    %991 = vrot.lane.b32.xlu0 %v121, 72
    %v992 = vpop.permute.xlu0 %991
    %v994 = vsel %vm125, %v990, 0
    %v997 = vsel %vm125, %v992, 0
    %999 = vmatprep.subr.bf16.mxu0 0
    %1000 = vmatpush1.bf16.xpose.msra.mxu0 0
    %1001 = vmatprep.subr.bf16.mxu0 0
    %1002 = vmatpush1.bf16.xpose.msra.mxu0 0
    %1003 = vmatprep.subr.bf16.mxu0 0
    %1004 = vmatpush1.bf16.xpose.msra.mxu0 0
    %1005 = vmatprep.subr.bf16.mxu0 0
    %1006 = vmatpush1.bf16.xpose.msra.mxu0 0
    %1007 = vmatprep.subr.bf16.mxu0 0
    %1008 = vmatpush1.bf16.xpose.msra.mxu0 0
    %1009 = vmatprep.subr.bf16.mxu0 0
    %1010 = vmatpush1.bf16.xpose.msra.mxu0 0
    %1011 = vmatprep.subr.bf16.mxu0 0
    %1012 = vmatpush1.bf16.xpose.msra.mxu0 0
    %1013 = vmatprep.subr.bf16.mxu0 0
    %1014 = vmatpush1.bf16.xpose.msra.mxu0 %v997
    %1015 = vmatprep.subr.bf16.mxu0 0
    %1016 = vmatpush2.bf16.xpose.msra.mxu0 0
    %1017 = vmatprep.subr.bf16.mxu0 0
    %1018 = vmatpush2.bf16.xpose.msra.mxu0 0
    %1019 = vmatprep.subr.bf16.mxu0 0
    %1020 = vmatpush2.bf16.xpose.msra.mxu0 0
    %1021 = vmatprep.subr.bf16.mxu0 0
    %1022 = vmatpush2.bf16.xpose.msra.mxu0 0
    %1023 = vmatprep.subr.bf16.mxu0 0
    %1024 = vmatpush2.bf16.xpose.msra.mxu0 0
    %1025 = vmatprep.subr.bf16.mxu0 0
    %1026 = vmatpush2.bf16.xpose.msra.mxu0 0
    %1027 = vmatprep.subr.bf16.mxu0 0
    %1028 = vmatpush2.bf16.xpose.msra.mxu0 0
    %1029 = vmatprep.subr.bf16.mxu0 0
    %1030 = vmatpush2.bf16.xpose.msra.mxu0 0
    %1031 = vmatprep.mubr.bf16.mxu0 0
    %1032 = vmatmul.mubr.bf16.gmra.mxu0 %v994
    %v1033 = vpop.f32.mrf.mxu0
    %v1034 = vadd.f32 0.0, %v1033
    %v1035 = vpop.f32.mrf.mxu0
    %v1036 = vpop.f32.mrf.mxu0
    %v1037 = vpop.f32.mrf.mxu0
    %1038 = vdwg.mxu0
    %v1039 = vmul.f32 %v984, 0.35355338
    %v1040 = vmul.f32 %v1034, 0.35355338
    %v1041 = vsel %vm125, %v1039, -inf
    %1042 = vmax.xlane.f32.xlu0 %v1041
    %v1043 = vpop.xlane.xlu0 %1042
    %v1044 = vsel %vm125, %v1040, -inf
    %1045 = vmax.xlane.f32.xlu0 %v1044
    %v1046 = vpop.xlane.xlu0 %1045
    %v1047 = vsub.f32 %v1039, %v1043
    %v1048 = vsub.f32 %v1040, %v1046
    %v1049 = vmul.f32 %v1047, 1.442695
    %v1050 = vpow.pop %v1049
    %v1051 = vmul.f32 %v1048, 1.442695
    %v1052 = vpow.pop %v1051
    %v1053 = vsel %vm125, %v1050, 0.0
    %1054 = vadd.xlane.f32.xlu0 %v1053
    %v1055 = vpop.xlane.xlu0 %1054
    %v1056 = vsel %vm125, %v1052, 0.0
    %1057 = vadd.xlane.f32.xlu0 %v1056
    %v1058 = vpop.xlane.xlu0 %1057
    %v1059 = vrcp.pop %v1055
    %v1060 = vrcp.pop %v1058
    %v1061 = vmul.f32 %v1050, %v1059
    %v1062 = vmul.f32 %v1052, %v1060
    %v1063 = vpack.c.bf16 %v1061, %v1061
    %v1064 = vpack.c.bf16 %v1062, %v1062
    %1065 = vrot.lane.b32.xlu0 %v120, 40
    %v1066 = vpop.permute.xlu0 %1065
    %v1068 = vsel %vm125, %v1063, 0
    %v1071 = vsel %vm252, %v1066, 0
    %1073 = vmatprep.subr.bf16.mxu0 0
    %1074 = vmatpush1.bf16.msra.mxu0 0
    %1075 = vmatprep.subr.bf16.mxu0 0
    %1076 = vmatpush1.bf16.msra.mxu0 0
    %1077 = vmatprep.subr.bf16.mxu0 0
    %1078 = vmatpush1.bf16.msra.mxu0 0
    %1079 = vmatprep.subr.bf16.mxu0 0
    %1080 = vmatpush1.bf16.msra.mxu0 0
    %1081 = vmatprep.subr.bf16.mxu0 0
    %1082 = vmatpush1.bf16.msra.mxu0 0
    %1083 = vmatprep.subr.bf16.mxu0 0
    %1084 = vmatpush1.bf16.msra.mxu0 0
    %1085 = vmatprep.subr.bf16.mxu0 0
    %1086 = vmatpush1.bf16.msra.mxu0 0
    %1087 = vmatprep.subr.bf16.mxu0 0
    %1088 = vmatpush1.bf16.msra.mxu0 %v1071
    %1089 = vmatprep.subr.bf16.mxu0 0
    %1090 = vmatpush2.bf16.msra.mxu0 0
    %1091 = vmatprep.subr.bf16.mxu0 0
    %1092 = vmatpush2.bf16.msra.mxu0 0
    %1093 = vmatprep.subr.bf16.mxu0 0
    %1094 = vmatpush2.bf16.msra.mxu0 0
    %1095 = vmatprep.subr.bf16.mxu0 0
    %1096 = vmatpush2.bf16.msra.mxu0 0
    %1097 = vmatprep.subr.bf16.mxu0 0
    %1098 = vmatpush2.bf16.msra.mxu0 0
    %1099 = vmatprep.subr.bf16.mxu0 0
    %1100 = vmatpush2.bf16.msra.mxu0 0
    %1101 = vmatprep.subr.bf16.mxu0 0
    %1102 = vmatpush2.bf16.msra.mxu0 0
    %1103 = vmatprep.subr.bf16.mxu0 0
    %1104 = vmatpush2.bf16.msra.mxu0 0
    %1105 = vmatprep.mubr.bf16.mxu0 0
    %1106 = vmatmul.mubr.bf16.gmra.mxu0 %v1068
    %v1107 = vpop.f32.mrf.mxu0
    %v1108 = vadd.f32 0.0, %v1107
    %v1109 = vpop.f32.mrf.mxu0
    %v1110 = vpop.f32.mrf.mxu0
    %v1111 = vpop.f32.mrf.mxu0
    %1112 = vdwg.mxu0
    %1113 = vrot.lane.b32.xlu0 %v121, 40
    %v1114 = vpop.permute.xlu0 %1113
    %v1116 = vsel %vm125, %v1064, 0
    %v1119 = vsel %vm252, %v1114, 0
    %1121 = vmatprep.subr.bf16.mxu0 0
    %1122 = vmatpush1.bf16.msra.mxu0 0
    %1123 = vmatprep.subr.bf16.mxu0 0
    %1124 = vmatpush1.bf16.msra.mxu0 0
    %1125 = vmatprep.subr.bf16.mxu0 0
    %1126 = vmatpush1.bf16.msra.mxu0 0
    %1127 = vmatprep.subr.bf16.mxu0 0
    %1128 = vmatpush1.bf16.msra.mxu0 0
    %1129 = vmatprep.subr.bf16.mxu0 0
    %1130 = vmatpush1.bf16.msra.mxu0 0
    %1131 = vmatprep.subr.bf16.mxu0 0
    %1132 = vmatpush1.bf16.msra.mxu0 0
    %1133 = vmatprep.subr.bf16.mxu0 0
    %1134 = vmatpush1.bf16.msra.mxu0 0
    %1135 = vmatprep.subr.bf16.mxu0 0
    %1136 = vmatpush1.bf16.msra.mxu0 %v1119
    %1137 = vmatprep.subr.bf16.mxu0 0
    %1138 = vmatpush2.bf16.msra.mxu0 0
    %1139 = vmatprep.subr.bf16.mxu0 0
    %1140 = vmatpush2.bf16.msra.mxu0 0
    %1141 = vmatprep.subr.bf16.mxu0 0
    %1142 = vmatpush2.bf16.msra.mxu0 0
    %1143 = vmatprep.subr.bf16.mxu0 0
    %1144 = vmatpush2.bf16.msra.mxu0 0
    %1145 = vmatprep.subr.bf16.mxu0 0
    %1146 = vmatpush2.bf16.msra.mxu0 0
    %1147 = vmatprep.subr.bf16.mxu0 0
    %1148 = vmatpush2.bf16.msra.mxu0 0
    %1149 = vmatprep.subr.bf16.mxu0 0
    %1150 = vmatpush2.bf16.msra.mxu0 0
    %1151 = vmatprep.subr.bf16.mxu0 0
    %1152 = vmatpush2.bf16.msra.mxu0 0
    %1153 = vmatprep.mubr.bf16.mxu0 0
    %1154 = vmatmul.mubr.bf16.gmra.mxu0 %v1116
    %v1155 = vpop.f32.mrf.mxu0
    %v1156 = vadd.f32 0.0, %v1155
    %v1157 = vpop.f32.mrf.mxu0
    %v1158 = vpop.f32.mrf.mxu0
    %v1159 = vpop.f32.mrf.mxu0
    %1160 = vdwg.mxu0
    %v1161 = vpack.c.bf16 %v1156, %v1108
    %s1162 = scalar_lea.vmem %s3, 12
    %v1163 = vld [vmem:[%s1162] sm:$0xf]
    %v1165 = vsel %vm125, %v1161, 0
    %v1168 = vsel %vm252, %v1163, 0
    %1170 = vmatprep.subr.bf16.mxu0 0
    %1171 = vmatpush1.bf16.msra.mxu0 0
    %1172 = vmatprep.subr.bf16.mxu0 0
    %1173 = vmatpush1.bf16.msra.mxu0 0
    %1174 = vmatprep.subr.bf16.mxu0 0
    %1175 = vmatpush1.bf16.msra.mxu0 0
    %1176 = vmatprep.subr.bf16.mxu0 0
    %1177 = vmatpush1.bf16.msra.mxu0 0
    %1178 = vmatprep.subr.bf16.mxu0 0
    %1179 = vmatpush1.bf16.msra.mxu0 0
    %1180 = vmatprep.subr.bf16.mxu0 0
    %1181 = vmatpush1.bf16.msra.mxu0 0
    %1182 = vmatprep.subr.bf16.mxu0 0
    %1183 = vmatpush1.bf16.msra.mxu0 0
    %1184 = vmatprep.subr.bf16.mxu0 0
    %1185 = vmatpush1.bf16.msra.mxu0 %v1168
    %1186 = vmatprep.subr.bf16.mxu0 0
    %1187 = vmatpush2.bf16.msra.mxu0 0
    %1188 = vmatprep.subr.bf16.mxu0 0
    %1189 = vmatpush2.bf16.msra.mxu0 0
    %1190 = vmatprep.subr.bf16.mxu0 0
    %1191 = vmatpush2.bf16.msra.mxu0 0
    %1192 = vmatprep.subr.bf16.mxu0 0
    %1193 = vmatpush2.bf16.msra.mxu0 0
    %1194 = vmatprep.subr.bf16.mxu0 0
    %1195 = vmatpush2.bf16.msra.mxu0 0
    %1196 = vmatprep.subr.bf16.mxu0 0
    %1197 = vmatpush2.bf16.msra.mxu0 0
    %1198 = vmatprep.subr.bf16.mxu0 0
    %1199 = vmatpush2.bf16.msra.mxu0 0
    %1200 = vmatprep.subr.bf16.mxu0 0
    %1201 = vmatpush2.bf16.msra.mxu0 0
    %1202 = vmatprep.mubr.bf16.mxu0 0
    %1203 = vmatmul.mubr.bf16.gmra.mxu0 %v1165
    %v1204 = vpop.f32.mrf.mxu0
    %v1205 = vadd.f32 0.0, %v1204
    %v1206 = vpop.f32.mrf.mxu0
    %v1207 = vpop.f32.mrf.mxu0
    %v1208 = vadd.f32 0.0, %v1207
    %v1209 = vpop.f32.mrf.mxu0
    %1210 = vdwg.mxu0
    %v1211 = vadd.f32 %v937, %v1205
    %v1212 = vadd.f32 %v938, %v1208
    %v1213 = vld [vmem:[%s4] sm:$0x1]
    %v1215 = vlaneseq
    %v1216 = vshrl.u32 %v1215, 7
    %v1217 = vsub.s32 0, %v1216
    %v1218 = vrot.slane %v1213, %v1217
    %v1220 = vadd.f32 %v1211, %v1218
    %v1221 = vadd.f32 %v1212, %v1218
    %1222 = vst.msk [vmem:[#allocation4] sm:$0xff] %vm75, %v1220
    %1223 = vst.msk [vmem:[#allocation4 + $0x8] sm:$0xff] %vm75, %v1221
    %v1224 = vadd.f32 %v49, %v1220
    %v1225 = vadd.f32 %v50, %v1221
    %v1226 = vld [vmem:[%s5] sm:$0x1]
    %v1227 = vld [vmem:[%s6] sm:$0x1]
    %v1228 = vsel %vm75, %v1224, 0.0
    %1229 = vadd.xlane.f32.xlu0 %v1228
    %v1230 = vpop.xlane.xlu0 %1229
    %v1231 = vsel %vm75, %v1225, 0.0
    %1232 = vadd.xlane.f32.xlu0 %v1231
    %v1233 = vpop.xlane.xlu0 %1232
    %v1234 = vrcp.pop 32.0
    %v1235 = vmul.f32 %v1230, %v1234
    %v1236 = vmul.f32 %v1233, %v1234
    %v1237 = vsub.f32 %v1224, %v1235
    %v1238 = vsub.f32 %v1225, %v1236
    %v1239 = vmul.f32 %v1237, %v1237
    %v1240 = vmul.f32 %v1238, %v1238
    %v1241 = vsel %vm75, %v1239, 0.0
    %1242 = vadd.xlane.f32.xlu0 %v1241
    %v1243 = vpop.xlane.xlu0 %1242
    %v1244 = vsel %vm75, %v1240, 0.0
    %1245 = vadd.xlane.f32.xlu0 %v1244
    %v1246 = vpop.xlane.xlu0 %1245
    %v1247 = vmul.f32 %v1243, %v1234
    %v1248 = vmul.f32 %v1246, %v1234
    %v1249 = vadd.f32 %v1247, 1e-12
    %v1250 = vadd.f32 %v1248, 1e-12
    %v1251 = vrsqrt.pop %v1249
    %v1252 = vrsqrt.pop %v1250
    %v1253 = vmul.f32 %v1237, %v1251
    %v1254 = vmul.f32 %v1238, %v1252
    %v1256 = vlaneseq
    %v1257 = vshrl.u32 %v1256, 7
    %v1258 = vsub.s32 0, %v1257
    %v1259 = vrot.slane %v1226, %v1258
    %v1261 = vmul.f32 %v1253, %v1259
    %v1262 = vmul.f32 %v1254, %v1259
    %v1264 = vlaneseq
    %v1265 = vshrl.u32 %v1264, 7
    %v1266 = vsub.s32 0, %v1265
    %v1267 = vrot.slane %v1227, %v1266
    %v1269 = vadd.f32 %v1261, %v1267
    %v1270 = vadd.f32 %v1262, %v1267
    %v1271 = vpack.c.bf16 %v1270, %v1269
    %v1272 = vld [vmem:[%s7] sm:$0xf]
    %v1273 = vld [vmem:[%s7 + $0x4] sm:$0xf]
    %v1274 = vld [vmem:[%s7 + $0x8] sm:$0xf]
    %v1275 = vld [vmem:[%s7 + $0xc] sm:$0xf]
    %v1276 = vld [vmem:[%s8] sm:$0x1]
    %v1278 = vlaneseq
    %v1279 = vshrl.u32 %v1278, 7
    %v1280 = vsub.s32 0, %v1279
    %v1281 = vrot.slane %v1276, %v1280
    %v1287 = vunpack.c.l.b16 %v1272
    %v1288 = vunpack.c.l.b16 %v1273
    %v1289 = vunpack.c.l.b16 %v1274
    %v1290 = vunpack.c.l.b16 %v1275
    %v1291 = vpack.c.b16 %v1288, %v1287
    %v1292 = vpack.c.b16 %v1290, %v1289
    %v1296 = vsel %vm75, %v1271, 0
    %1298 = vmatprep.subr.bf16.mxu0 0
    %1299 = vmatpush1.bf16.msra.mxu0 0
    %1300 = vmatprep.subr.bf16.mxu0 0
    %1301 = vmatpush1.bf16.msra.mxu0 0
    %1302 = vmatprep.subr.bf16.mxu0 0
    %1303 = vmatpush1.bf16.msra.mxu0 0
    %1304 = vmatprep.subr.bf16.mxu0 0
    %1305 = vmatpush1.bf16.msra.mxu0 0
    %1306 = vmatprep.subr.bf16.mxu0 0
    %1307 = vmatpush1.bf16.msra.mxu0 0
    %1308 = vmatprep.subr.bf16.mxu0 0
    %1309 = vmatpush1.bf16.msra.mxu0 0
    %1310 = vmatprep.subr.bf16.mxu0 0
    %1311 = vmatpush1.bf16.msra.mxu0 %v1292
    %1312 = vmatprep.subr.bf16.mxu0 0
    %1313 = vmatpush1.bf16.msra.mxu0 %v1291
    %1314 = vmatprep.subr.bf16.mxu0 0
    %1315 = vmatpush2.bf16.msra.mxu0 0
    %1316 = vmatprep.subr.bf16.mxu0 0
    %1317 = vmatpush2.bf16.msra.mxu0 0
    %1318 = vmatprep.subr.bf16.mxu0 0
    %1319 = vmatpush2.bf16.msra.mxu0 0
    %1320 = vmatprep.subr.bf16.mxu0 0
    %1321 = vmatpush2.bf16.msra.mxu0 0
    %1322 = vmatprep.subr.bf16.mxu0 0
    %1323 = vmatpush2.bf16.msra.mxu0 0
    %1324 = vmatprep.subr.bf16.mxu0 0
    %1325 = vmatpush2.bf16.msra.mxu0 0
    %1326 = vmatprep.subr.bf16.mxu0 0
    %1327 = vmatpush2.bf16.msra.mxu0 0
    %1328 = vmatprep.subr.bf16.mxu0 0
    %1329 = vmatpush2.bf16.msra.mxu0 0
    %1330 = vmatprep.mubr.bf16.mxu0 0
    %1331 = vmatmul.mubr.bf16.gmra.mxu0 %v1296
    %v1332 = vpop.f32.mrf.mxu0
    %v1333 = vadd.f32 %v1281, %v1332
    %v1334 = vpop.f32.mrf.mxu0
    %v1335 = vpop.f32.mrf.mxu0
    %v1336 = vadd.f32 %v1281, %v1335
    %v1337 = vpop.f32.mrf.mxu0
    %1338 = vdwg.mxu0
    %v1339 = vmul.f32 %v1333, 0.5
    %v1340 = vmul.f32 %v1336, 0.5
    %v1341 = vmul.f32 %v1333, 0.70710677
    %v1342 = vmul.f32 %v1336, 0.70710677
    %v1343 = vand.u32 2147483647, %v1341
    %v1344 = vand.u32 2147483647, %v1342
    %v1345 = vmul.f32 %v1343, 0.3275911
    %v1346 = vmul.f32 %v1344, 0.3275911
    %v1347 = vadd.f32 %v1345, 1.0
    %v1348 = vadd.f32 %v1346, 1.0
    %v1349 = vrcp.pop %v1347
    %v1350 = vrcp.pop %v1348
    %v1351 = vmul.f32 %v1349, 1.0614054
    %v1352 = vmul.f32 %v1350, 1.0614054
    %v1353 = vadd.f32 %v1351, -1.4531521
    %v1354 = vadd.f32 %v1352, -1.4531521
    %v1355 = vmul.f32 %v1353, %v1349
    %v1356 = vmul.f32 %v1354, %v1350
    %v1357 = vadd.f32 %v1355, 1.4214138
    %v1358 = vadd.f32 %v1356, 1.4214138
    %v1359 = vmul.f32 %v1357, %v1349
    %v1360 = vmul.f32 %v1358, %v1350
    %v1361 = vadd.f32 %v1359, -0.28449672
    %v1362 = vadd.f32 %v1360, -0.28449672
    %v1363 = vmul.f32 %v1361, %v1349
    %v1364 = vmul.f32 %v1362, %v1350
    %v1365 = vadd.f32 %v1363, 0.2548296
    %v1366 = vadd.f32 %v1364, 0.2548296
    %v1367 = vmul.f32 %v1365, %v1349
    %v1368 = vmul.f32 %v1366, %v1350
    %v1369 = vsub.f32 0.0, %v1343
    %v1370 = vsub.f32 0.0, %v1344
    %v1371 = vmul.f32 %v1369, %v1343
    %v1372 = vmul.f32 %v1370, %v1344
    %v1373 = vmul.f32 %v1371, 1.442695
    %v1374 = vpow.pop %v1373
    %v1375 = vmul.f32 %v1372, 1.442695
    %v1376 = vpow.pop %v1375
    %v1377 = vmul.f32 %v1367, %v1374
    %v1378 = vmul.f32 %v1368, %v1376
    %v1379 = vsub.f32 1.0, %v1377
    %v1380 = vsub.f32 1.0, %v1378
    %vm1381 = vcmp.lt.f32.partialorder %v1341, 0.0
    %vm1382 = vcmp.lt.f32.partialorder %v1342, 0.0
    %v1383 = vsub.f32 0.0, %v1379
    %v1384 = vsub.f32 0.0, %v1380
    %v1385 = vsel %vm1381, %v1383, %v1379
    %v1386 = vsel %vm1382, %v1384, %v1380
    %v1387 = vadd.f32 %v1385, 1.0
    %v1388 = vadd.f32 %v1386, 1.0
    %v1389 = vmul.f32 %v1339, %v1387
    %v1390 = vmul.f32 %v1340, %v1388
    %v1391 = vpack.c.bf16 %v1390, %v1389
    %v1392 = vld [vmem:[%s9] sm:$0xf]
    %v1393 = vld [vmem:[%s9 + $0x4] sm:$0xf]
    %v1394 = vld [vmem:[%s9 + $0x8] sm:$0xf]
    %v1395 = vld [vmem:[%s9 + $0xc] sm:$0xf]
    %v1396 = vld [vmem:[%s9 + $0x10] sm:$0xf]
    %v1397 = vld [vmem:[%s9 + $0x14] sm:$0xf]
    %v1398 = vld [vmem:[%s9 + $0x18] sm:$0xf]
    %v1399 = vld [vmem:[%s9 + $0x1c] sm:$0xf]
    %v1400 = vld [vmem:[%s9 + $0x20] sm:$0xf]
    %v1401 = vld [vmem:[%s9 + $0x24] sm:$0xf]
    %v1402 = vld [vmem:[%s9 + $0x28] sm:$0xf]
    %v1403 = vld [vmem:[%s9 + $0x2c] sm:$0xf]
    %v1404 = vld [vmem:[%s9 + $0x30] sm:$0xf]
    %v1405 = vld [vmem:[%s9 + $0x34] sm:$0xf]
    %v1406 = vld [vmem:[%s9 + $0x38] sm:$0xf]
    %v1407 = vld [vmem:[%s9 + $0x3c] sm:$0xf]
    %v1408 = vld [vmem:[%s10] sm:$0x1]
    %v1410 = vlaneseq
    %v1411 = vshrl.u32 %v1410, 7
    %v1412 = vsub.s32 0, %v1411
    %v1413 = vrot.slane %v1408, %v1412
    %v1431 = vunpack.c.l.b16 %v1392
    %v1432 = vunpack.c.l.b16 %v1393
    %v1433 = vunpack.c.l.b16 %v1394
    %v1434 = vunpack.c.l.b16 %v1395
    %v1435 = vunpack.c.l.b16 %v1396
    %v1436 = vunpack.c.l.b16 %v1397
    %v1437 = vunpack.c.l.b16 %v1398
    %v1438 = vunpack.c.l.b16 %v1399
    %v1439 = vunpack.c.l.b16 %v1400
    %v1440 = vunpack.c.l.b16 %v1401
    %v1441 = vunpack.c.l.b16 %v1402
    %v1442 = vunpack.c.l.b16 %v1403
    %v1443 = vunpack.c.l.b16 %v1404
    %v1444 = vunpack.c.l.b16 %v1405
    %v1445 = vunpack.c.l.b16 %v1406
    %v1446 = vunpack.c.l.b16 %v1407
    %v1447 = vpack.c.b16 %v1432, %v1431
    %v1448 = vpack.c.b16 %v1434, %v1433
    %v1449 = vpack.c.b16 %v1436, %v1435
    %v1450 = vpack.c.b16 %v1438, %v1437
    %v1451 = vpack.c.b16 %v1440, %v1439
    %v1452 = vpack.c.b16 %v1442, %v1441
    %v1453 = vpack.c.b16 %v1444, %v1443
    %v1454 = vpack.c.b16 %v1446, %v1445
    %1463 = vmatprep.subr.bf16.mxu0 0
    %1464 = vmatpush1.bf16.msra.mxu0 %v1454
    %1465 = vmatprep.subr.bf16.mxu0 0
    %1466 = vmatpush1.bf16.msra.mxu0 %v1453
    %1467 = vmatprep.subr.bf16.mxu0 0
    %1468 = vmatpush1.bf16.msra.mxu0 %v1452
    %1469 = vmatprep.subr.bf16.mxu0 0
    %1470 = vmatpush1.bf16.msra.mxu0 %v1451
    %1471 = vmatprep.subr.bf16.mxu0 0
    %1472 = vmatpush1.bf16.msra.mxu0 %v1450
    %1473 = vmatprep.subr.bf16.mxu0 0
    %1474 = vmatpush1.bf16.msra.mxu0 %v1449
    %1475 = vmatprep.subr.bf16.mxu0 0
    %1476 = vmatpush1.bf16.msra.mxu0 %v1448
    %1477 = vmatprep.subr.bf16.mxu0 0
    %1478 = vmatpush1.bf16.msra.mxu0 %v1447
    %1479 = vmatprep.subr.bf16.mxu0 0
    %1480 = vmatpush2.bf16.msra.mxu0 0
    %1481 = vmatprep.subr.bf16.mxu0 0
    %1482 = vmatpush2.bf16.msra.mxu0 0
    %1483 = vmatprep.subr.bf16.mxu0 0
    %1484 = vmatpush2.bf16.msra.mxu0 0
    %1485 = vmatprep.subr.bf16.mxu0 0
    %1486 = vmatpush2.bf16.msra.mxu0 0
    %1487 = vmatprep.subr.bf16.mxu0 0
    %1488 = vmatpush2.bf16.msra.mxu0 0
    %1489 = vmatprep.subr.bf16.mxu0 0
    %1490 = vmatpush2.bf16.msra.mxu0 0
    %1491 = vmatprep.subr.bf16.mxu0 0
    %1492 = vmatpush2.bf16.msra.mxu0 0
    %1493 = vmatprep.subr.bf16.mxu0 0
    %1494 = vmatpush2.bf16.msra.mxu0 0
    %1495 = vmatprep.mubr.bf16.mxu0 0
    %1496 = vmatmul.mubr.bf16.gmra.mxu0 %v1391
    %v1497 = vpop.f32.mrf.mxu0
    %v1498 = vadd.f32 %v1413, %v1497
    %v1499 = vpop.f32.mrf.mxu0
    %v1500 = vpop.f32.mrf.mxu0
    %v1501 = vadd.f32 %v1413, %v1500
    %v1502 = vpop.f32.mrf.mxu0
    %1503 = vdwg.mxu0
    %v1504 = vadd.f32 %v1269, %v1498
    %v1505 = vadd.f32 %v1270, %v1501
    %v1506 = vld [vmem:[%s11] sm:$0x1]
    %v1507 = vld [vmem:[%s12] sm:$0x1]
    %v1508 = vsel %vm75, %v1504, 0.0
    %1509 = vadd.xlane.f32.xlu0 %v1508
    %v1510 = vpop.xlane.xlu0 %1509
    %v1511 = vsel %vm75, %v1505, 0.0
    %1512 = vadd.xlane.f32.xlu0 %v1511
    %v1513 = vpop.xlane.xlu0 %1512
    %v1514 = vmul.f32 %v1510, %v1234
    %v1515 = vmul.f32 %v1513, %v1234
    %v1516 = vsub.f32 %v1504, %v1514
    %v1517 = vsub.f32 %v1505, %v1515
    %v1518 = vmul.f32 %v1516, %v1516
    %v1519 = vmul.f32 %v1517, %v1517
    %v1520 = vsel %vm75, %v1518, 0.0
    %1521 = vadd.xlane.f32.xlu0 %v1520
    %v1522 = vpop.xlane.xlu0 %1521
    %v1523 = vsel %vm75, %v1519, 0.0
    %1524 = vadd.xlane.f32.xlu0 %v1523
    %v1525 = vpop.xlane.xlu0 %1524
    %v1526 = vmul.f32 %v1522, %v1234
    %v1527 = vmul.f32 %v1525, %v1234
    %v1528 = vadd.f32 %v1526, 1e-12
    %v1529 = vadd.f32 %v1527, 1e-12
    %v1530 = vrsqrt.pop %v1528
    %v1531 = vrsqrt.pop %v1529
    %v1532 = vmul.f32 %v1516, %v1530
    %v1533 = vmul.f32 %v1517, %v1531
    %v1535 = vlaneseq
    %v1536 = vshrl.u32 %v1535, 7
    %v1537 = vsub.s32 0, %v1536
    %v1538 = vrot.slane %v1506, %v1537
    %v1540 = vmul.f32 %v1532, %v1538
    %v1541 = vmul.f32 %v1533, %v1538
    %v1543 = vlaneseq
    %v1544 = vshrl.u32 %v1543, 7
    %v1545 = vsub.s32 0, %v1544
    %v1546 = vrot.slane %v1507, %v1545
    %v1548 = vadd.f32 %v1540, %v1546
    %v1549 = vadd.f32 %v1541, %v1546
    %1550 = vst.msk [vmem:[#allocation2] sm:$0xff] %vm75, %v1548
    %1551 = vst.msk [vmem:[#allocation2 + $0x8] sm:$0xff] %vm75, %v1549
    // Predicated region
    $region54: #{tpu_custom_call.1} parent=1 // pred_check
      _
    $region55: #{tpu_custom_call.1} parent=1 // pred_check_branch
      %1553 = sbr.rel (0) target = $region57
    $region56: #{tpu_custom_call.1} parent=1 // pred_region
      %s1555 = ssub.s32 256, 256
      %1556 = vsyncadd [#allocation3], %s1555
      %s1557 = sshll.u32 [#allocation2], 4
      %s1558 = int_to_ptr.vmem [resolvable:$true] %s1557
      %1563 = dma.vmem_to_hbm [thread:$0]  %s1558, 256, %s13, [#allocation3], 128, 128, 8
    $region57: #{tpu_custom_call.1} parent=1 // pred_fallthru
      _
    // Predicated region
    $region58: #{tpu_custom_call.1} parent=1 // pred_check
      _
    $region59: #{tpu_custom_call.1} parent=1 // pred_check_branch
      %1565 = sbr.rel (0) target = $region61
    $region60: #{tpu_custom_call.1} parent=1 // pred_region
      %s1567 = ssub.s32 256, 256
      %1568 = vsyncadd [#allocation5], %s1567
      %s1569 = sshll.u32 [#allocation4], 4
      %s1570 = int_to_ptr.vmem [resolvable:$true] %s1569
      %1575 = dma.vmem_to_hbm [thread:$0]  %s1570, 256, %s14, [#allocation5], 128, 128, 8
    $region61: #{tpu_custom_call.1} parent=1 // pred_fallthru
      _
    // Predicated region
    $region62: #{tpu_custom_call.1} parent=1 // pred_check
      _
    $region63: #{tpu_custom_call.1} parent=1 // pred_check_branch
      %1577 = sbr.rel (0) target = $region65
    $region64: #{tpu_custom_call.1} parent=1 // pred_region
      %1578 = dma.done [#allocation3], 256
    $region65: #{tpu_custom_call.1} parent=1 // pred_fallthru
      _
    // Predicated region
    $region66: #{tpu_custom_call.1} parent=1 // pred_check
      _
    $region67: #{tpu_custom_call.1} parent=1 // pred_check_branch
      %1580 = sbr.rel (0) target = $region69
    $region68: #{tpu_custom_call.1} parent=1 // pred_region
      %1581 = dma.done [#allocation5], 256
    $region69: #{tpu_custom_call.1} parent=1 // pred_fallthru
      _
    %1582 = vsyncpa [#allocation3], 1
    %1583 = vsyncpa [#allocation5], 1

// kernel: tpu_custom_call.1
$region0: #{tpu_custom_call.1}
  #allocation0 [shape = 'u32[]', space=smem, size = 0x4, offset = 0x4, fixed_abs, tag = 'smem constant byte address 0x4 - core index']
  #allocation1 [shape = 'u32[144,128]{1,0:T(1,128)}', space=vmem, size = 0x12000, scoped, tag = 'internal scratch']
  %s0 = inlined_call_operand.vmem [shape: f32[2,8,32], index: 0, kind: input, shape index: {}]
  %s1 = inlined_call_operand.vmem [shape: bf16[32,96], index: 1, kind: input, shape index: {}]
  %s2 = inlined_call_operand.vmem [shape: f32[1,96], index: 2, kind: input, shape index: {}]
  %s3 = inlined_call_operand.vmem [shape: bf16[4,8,32], index: 3, kind: input, shape index: {}]
  %s4 = inlined_call_operand.vmem [shape: f32[1,32], index: 4, kind: input, shape index: {}]
  %s5 = inlined_call_operand.vmem [shape: f32[1,32], index: 5, kind: input, shape index: {}]
  %s6 = inlined_call_operand.vmem [shape: f32[1,32], index: 6, kind: input, shape index: {}]
  %s7 = inlined_call_operand.vmem [shape: bf16[32,128], index: 7, kind: input, shape index: {}]
  %s8 = inlined_call_operand.vmem [shape: f32[1,128], index: 8, kind: input, shape index: {}]
  %s9 = inlined_call_operand.vmem [shape: bf16[128,32], index: 9, kind: input, shape index: {}]
  %s10 = inlined_call_operand.vmem [shape: f32[1,32], index: 10, kind: input, shape index: {}]
  %s11 = inlined_call_operand.vmem [shape: f32[1,32], index: 11, kind: input, shape index: {}]
  %s12 = inlined_call_operand.vmem [shape: f32[1,32], index: 12, kind: input, shape index: {}]
  %s13 = inlined_call_operand.hbm [shape: f32[2,8,32], index: 13, kind: output, shape index: {0}]
  %s14 = inlined_call_operand.hbm [shape: f32[2,8,32], index: 14, kind: output, shape index: {1}]
  %15 = xla_tuple %s13, %s14
  %s16 = sld [smem:[#allocation0]]
  $region70: #{tpu_custom_call.1} parent=0
    _
  %s18 = ssub.s32 1, %s16
  %s19 = scalar_select 0, %s18, %s16
  $region1: #{tpu_custom_call.1} parent=0
    #allocation2 [shape = 'u8[8192]{0}', space=vmem, size = 0x2000, scoped, tag = 'output window, operand 0, single buffered']
    #allocation3 [shape = 's32[1]{0}', space=sflag, size = 0x4, scoped, tag = 'scoped memory for tpu_custom_call.1']
    #allocation4 [shape = 'u8[8192]{0}', space=vmem, size = 0x2000, scoped, tag = 'output window, operand 1, single buffered']
    #allocation5 [shape = 's32[1]{0}', space=sflag, size = 0x4, scoped, tag = 'scoped memory for tpu_custom_call.1']
    %20 = vsyncpa [#allocation3], 0
    %21 = vsyncpa [#allocation5], 0
    // Predicated region
    $region2: #{tpu_custom_call.1} parent=1 // pred_check
      _
    $region3: #{tpu_custom_call.1} parent=1 // pred_check_branch
      %23 = sbr.rel (0) target = $region5
    $region4: #{tpu_custom_call.1} parent=1 // pred_region
      _
    $region5: #{tpu_custom_call.1} parent=1 // pred_fallthru
      _
    // Predicated region
    $region6: #{tpu_custom_call.1} parent=1 // pred_check
      _
    $region7: #{tpu_custom_call.1} parent=1 // pred_check_branch
      %25 = sbr.rel (0) target = $region9
    $region8: #{tpu_custom_call.1} parent=1 // pred_region
      _
    $region9: #{tpu_custom_call.1} parent=1 // pred_fallthru
      _
    // Predicated region
    $region10: #{tpu_custom_call.1} parent=1 // pred_check
      _
    $region11: #{tpu_custom_call.1} parent=1 // pred_check_branch
      %27 = sbr.rel (0) target = $region13
    $region12: #{tpu_custom_call.1} parent=1 // pred_region
      _
    $region13: #{tpu_custom_call.1} parent=1 // pred_fallthru
      _
    // Predicated region
    $region14: #{tpu_custom_call.1} parent=1 // pred_check
      _
    $region15: #{tpu_custom_call.1} parent=1 // pred_check_branch
      %29 = sbr.rel (0) target = $region17
    $region16: #{tpu_custom_call.1} parent=1 // pred_region
      _
    $region17: #{tpu_custom_call.1} parent=1 // pred_fallthru
      _
    // Predicated region
    $region18: #{tpu_custom_call.1} parent=1 // pred_check
      _
    $region19: #{tpu_custom_call.1} parent=1 // pred_check_branch
      %31 = sbr.rel (0) target = $region21
    $region20: #{tpu_custom_call.1} parent=1 // pred_region
      _
    $region21: #{tpu_custom_call.1} parent=1 // pred_fallthru
      _
    // Predicated region
    $region22: #{tpu_custom_call.1} parent=1 // pred_check
      _
    $region23: #{tpu_custom_call.1} parent=1 // pred_check_branch
      %33 = sbr.rel (0) target = $region25
    $region24: #{tpu_custom_call.1} parent=1 // pred_region
      _
    $region25: #{tpu_custom_call.1} parent=1 // pred_fallthru
      _
    // Predicated region
    $region26: #{tpu_custom_call.1} parent=1 // pred_check
      _
    $region27: #{tpu_custom_call.1} parent=1 // pred_check_branch
      %35 = sbr.rel (0) target = $region29
    $region28: #{tpu_custom_call.1} parent=1 // pred_region
      _
    $region29: #{tpu_custom_call.1} parent=1 // pred_fallthru
      _
    // Predicated region
    $region30: #{tpu_custom_call.1} parent=1 // pred_check
      _
    $region31: #{tpu_custom_call.1} parent=1 // pred_check_branch
      %37 = sbr.rel (0) target = $region33
    $region32: #{tpu_custom_call.1} parent=1 // pred_region
      _
    $region33: #{tpu_custom_call.1} parent=1 // pred_fallthru
      _
    // Predicated region
    $region34: #{tpu_custom_call.1} parent=1 // pred_check
      _
    $region35: #{tpu_custom_call.1} parent=1 // pred_check_branch
      %39 = sbr.rel (0) target = $region37
    $region36: #{tpu_custom_call.1} parent=1 // pred_region
      _
    $region37: #{tpu_custom_call.1} parent=1 // pred_fallthru
      _
    // Predicated region
    $region38: #{tpu_custom_call.1} parent=1 // pred_check
      _
    $region39: #{tpu_custom_call.1} parent=1 // pred_check_branch
      %41 = sbr.rel (0) target = $region41
    $region40: #{tpu_custom_call.1} parent=1 // pred_region
      _
    $region41: #{tpu_custom_call.1} parent=1 // pred_fallthru
      _
    // Predicated region
    $region42: #{tpu_custom_call.1} parent=1 // pred_check
      _
    $region43: #{tpu_custom_call.1} parent=1 // pred_check_branch
      %43 = sbr.rel (0) target = $region45
    $region44: #{tpu_custom_call.1} parent=1 // pred_region
      _
    $region45: #{tpu_custom_call.1} parent=1 // pred_fallthru
      _
    // Predicated region
    $region46: #{tpu_custom_call.1} parent=1 // pred_check
      _
    $region47: #{tpu_custom_call.1} parent=1 // pred_check_branch
      %45 = sbr.rel (0) target = $region49
    $region48: #{tpu_custom_call.1} parent=1 // pred_region
      _
    $region49: #{tpu_custom_call.1} parent=1 // pred_fallthru
      _
    // Predicated region
    $region50: #{tpu_custom_call.1} parent=1 // pred_check
      _
    $region51: #{tpu_custom_call.1} parent=1 // pred_check_branch
      %47 = sbr.rel (0) target = $region53
    $region52: #{tpu_custom_call.1} parent=1 // pred_region
      _
    $region53: #{tpu_custom_call.1} parent=1 // pred_fallthru
      _
    %v49 = vld [vmem:[%s0] sm:$0xff]
    %v50 = vld [vmem:[%s0 + $0x8] sm:$0xff]
    %v51 = vpack.c.bf16 %v50, %v49
    %v52 = vld [vmem:[%s1] sm:$0xf]
    %v53 = vld [vmem:[%s1 + $0x4] sm:$0xf]
    %v54 = vld [vmem:[%s1 + $0x8] sm:$0xf]
    %v55 = vld [vmem:[%s1 + $0xc] sm:$0xf]
    %v56 = vld [vmem:[%s2] sm:$0x1]
    %v58 = vlaneseq
    %v59 = vshrl.u32 %v58, 7
    %v60 = vsub.s32 0, %v59
    %v61 = vrot.slane %v56, %v60
    %v67 = vunpack.c.l.b16 %v52
    %v68 = vunpack.c.l.b16 %v53
    %v69 = vunpack.c.l.b16 %v54
    %v70 = vunpack.c.l.b16 %v55
    %v71 = vpack.c.b16 %v68, %v67
    %v72 = vpack.c.b16 %v70, %v69
    %vm75 = vcmask 261120
    %v77 = vsel %vm75, %v51, 0
    %79 = vmatprep.subr.bf16.mxu0 0
    %80 = vmatpush1.bf16.msra.mxu0 0
    %81 = vmatprep.subr.bf16.mxu0 0
    %82 = vmatpush1.bf16.msra.mxu0 0
    %83 = vmatprep.subr.bf16.mxu0 0
    %84 = vmatpush1.bf16.msra.mxu0 0
    %85 = vmatprep.subr.bf16.mxu0 0
    %86 = vmatpush1.bf16.msra.mxu0 0
    %87 = vmatprep.subr.bf16.mxu0 0
    %88 = vmatpush1.bf16.msra.mxu0 0
    %89 = vmatprep.subr.bf16.mxu0 0
    %90 = vmatpush1.bf16.msra.mxu0 0
    %91 = vmatprep.subr.bf16.mxu0 0
    %92 = vmatpush1.bf16.msra.mxu0 %v72
    %93 = vmatprep.subr.bf16.mxu0 0
    %94 = vmatpush1.bf16.msra.mxu0 %v71
    %95 = vmatprep.subr.bf16.mxu0 0
    %96 = vmatpush2.bf16.msra.mxu0 0
    %97 = vmatprep.subr.bf16.mxu0 0
    %98 = vmatpush2.bf16.msra.mxu0 0
    %99 = vmatprep.subr.bf16.mxu0 0
    %100 = vmatpush2.bf16.msra.mxu0 0
    %101 = vmatprep.subr.bf16.mxu0 0
    %102 = vmatpush2.bf16.msra.mxu0 0
    %103 = vmatprep.subr.bf16.mxu0 0
    %104 = vmatpush2.bf16.msra.mxu0 0
    %105 = vmatprep.subr.bf16.mxu0 0
    %106 = vmatpush2.bf16.msra.mxu0 0
    %107 = vmatprep.subr.bf16.mxu0 0
    %108 = vmatpush2.bf16.msra.mxu0 0
    %109 = vmatprep.subr.bf16.mxu0 0
    %110 = vmatpush2.bf16.msra.mxu0 0
    %111 = vmatprep.mubr.bf16.mxu0 0
    %112 = vmatmul.mubr.bf16.gmra.mxu0 %v77
    %v113 = vpop.f32.mrf.mxu0
    %v114 = vadd.f32 %v61, %v113
    %v115 = vpop.f32.mrf.mxu0
    %v116 = vpop.f32.mrf.mxu0
    %v117 = vadd.f32 %v61, %v116
    %v118 = vpop.f32.mrf.mxu0
    %119 = vdwg.mxu0
    %v120 = vpack.c.bf16 %v114, %v114
    %v121 = vpack.c.bf16 %v117, %v117
    %123 = vrot.lane.b32.xlu0 %v120, 96
    %v124 = vpop.permute.xlu0 %123
    %vm125 = vcmask 64512
    %v127 = vsel %vm125, %v120, 0
    %v130 = vsel %vm125, %v124, 0
    %132 = vmatprep.subr.bf16.mxu0 0
    %133 = vmatpush1.bf16.xpose.msra.mxu0 0
    %134 = vmatprep.subr.bf16.mxu0 0
    %135 = vmatpush1.bf16.xpose.msra.mxu0 0
    %136 = vmatprep.subr.bf16.mxu0 0
    %137 = vmatpush1.bf16.xpose.msra.mxu0 0
    %138 = vmatprep.subr.bf16.mxu0 0
    %139 = vmatpush1.bf16.xpose.msra.mxu0 0
    %140 = vmatprep.subr.bf16.mxu0 0
    %141 = vmatpush1.bf16.xpose.msra.mxu0 0
    %142 = vmatprep.subr.bf16.mxu0 0
    %143 = vmatpush1.bf16.xpose.msra.mxu0 0
    %144 = vmatprep.subr.bf16.mxu0 0
    %145 = vmatpush1.bf16.xpose.msra.mxu0 0
    %146 = vmatprep.subr.bf16.mxu0 0
    %147 = vmatpush1.bf16.xpose.msra.mxu0 %v130
    %148 = vmatprep.subr.bf16.mxu0 0
    %149 = vmatpush2.bf16.xpose.msra.mxu0 0
    %150 = vmatprep.subr.bf16.mxu0 0
    %151 = vmatpush2.bf16.xpose.msra.mxu0 0
    %152 = vmatprep.subr.bf16.mxu0 0
    %153 = vmatpush2.bf16.xpose.msra.mxu0 0
    %154 = vmatprep.subr.bf16.mxu0 0
    %155 = vmatpush2.bf16.xpose.msra.mxu0 0
    %156 = vmatprep.subr.bf16.mxu0 0
    %157 = vmatpush2.bf16.xpose.msra.mxu0 0
    %158 = vmatprep.subr.bf16.mxu0 0
    %159 = vmatpush2.bf16.xpose.msra.mxu0 0
    %160 = vmatprep.subr.bf16.mxu0 0
    %161 = vmatpush2.bf16.xpose.msra.mxu0 0
    %162 = vmatprep.subr.bf16.mxu0 0
    %163 = vmatpush2.bf16.xpose.msra.mxu0 0
    %164 = vmatprep.mubr.bf16.mxu0 0
    %165 = vmatmul.mubr.bf16.gmra.mxu0 %v127
    %v166 = vpop.f32.mrf.mxu0
    %v167 = vadd.f32 0.0, %v166
    %v168 = vpop.f32.mrf.mxu0
    %v169 = vpop.f32.mrf.mxu0
    %v170 = vpop.f32.mrf.mxu0
    %171 = vdwg.mxu0
    %173 = vrot.lane.b32.xlu0 %v121, 96
    %v174 = vpop.permute.xlu0 %173
    %v176 = vsel %vm125, %v121, 0
    %v179 = vsel %vm125, %v174, 0
    %181 = vmatprep.subr.bf16.mxu0 0
    %182 = vmatpush1.bf16.xpose.msra.mxu0 0
    %183 = vmatprep.subr.bf16.mxu0 0
    %184 = vmatpush1.bf16.xpose.msra.mxu0 0
    %185 = vmatprep.subr.bf16.mxu0 0
    %186 = vmatpush1.bf16.xpose.msra.mxu0 0
    %187 = vmatprep.subr.bf16.mxu0 0
    %188 = vmatpush1.bf16.xpose.msra.mxu0 0
    %189 = vmatprep.subr.bf16.mxu0 0
    %190 = vmatpush1.bf16.xpose.msra.mxu0 0
    %191 = vmatprep.subr.bf16.mxu0 0
    %192 = vmatpush1.bf16.xpose.msra.mxu0 0
    %193 = vmatprep.subr.bf16.mxu0 0
    %194 = vmatpush1.bf16.xpose.msra.mxu0 0
    %195 = vmatprep.subr.bf16.mxu0 0
    %196 = vmatpush1.bf16.xpose.msra.mxu0 %v179
    %197 = vmatprep.subr.bf16.mxu0 0
    %198 = vmatpush2.bf16.xpose.msra.mxu0 0
    %199 = vmatprep.subr.bf16.mxu0 0
    %200 = vmatpush2.bf16.xpose.msra.mxu0 0
    %201 = vmatprep.subr.bf16.mxu0 0
    %202 = vmatpush2.bf16.xpose.msra.mxu0 0
    %203 = vmatprep.subr.bf16.mxu0 0
    %204 = vmatpush2.bf16.xpose.msra.mxu0 0
    %205 = vmatprep.subr.bf16.mxu0 0
    %206 = vmatpush2.bf16.xpose.msra.mxu0 0
    %207 = vmatprep.subr.bf16.mxu0 0
    %208 = vmatpush2.bf16.xpose.msra.mxu0 0
    %209 = vmatprep.subr.bf16.mxu0 0
    %210 = vmatpush2.bf16.xpose.msra.mxu0 0
    %211 = vmatprep.subr.bf16.mxu0 0
    %212 = vmatpush2.bf16.xpose.msra.mxu0 0
    %213 = vmatprep.mubr.bf16.mxu0 0
    %214 = vmatmul.mubr.bf16.gmra.mxu0 %v176
    %v215 = vpop.f32.mrf.mxu0
    %v216 = vadd.f32 0.0, %v215
    %v217 = vpop.f32.mrf.mxu0
    %v218 = vpop.f32.mrf.mxu0
    %v219 = vpop.f32.mrf.mxu0
    %220 = vdwg.mxu0
    %v221 = vmul.f32 %v167, 0.35355338
    %v222 = vmul.f32 %v216, 0.35355338
    %v223 = vsel %vm125, %v221, -inf
    %224 = vmax.xlane.f32.xlu0 %v223
    %v225 = vpop.xlane.xlu0 %224
    %v226 = vsel %vm125, %v222, -inf
    %227 = vmax.xlane.f32.xlu0 %v226
    %v228 = vpop.xlane.xlu0 %227
    %v229 = vsub.f32 %v221, %v225
    %v230 = vsub.f32 %v222, %v228
    %v231 = vmul.f32 %v229, 1.442695
    %v232 = vpow.pop %v231
    %v233 = vmul.f32 %v230, 1.442695
    %v234 = vpow.pop %v233
    %v235 = vsel %vm125, %v232, 0.0
    %236 = vadd.xlane.f32.xlu0 %v235
    %v237 = vpop.xlane.xlu0 %236
    %v238 = vsel %vm125, %v234, 0.0
    %239 = vadd.xlane.f32.xlu0 %v238
    %v240 = vpop.xlane.xlu0 %239
    %v241 = vrcp.pop %v237
    %v242 = vrcp.pop %v240
    %v243 = vmul.f32 %v232, %v241
    %v244 = vmul.f32 %v234, %v242
    %v245 = vpack.c.bf16 %v243, %v243
    %v246 = vpack.c.bf16 %v244, %v244
    %247 = vrot.lane.b32.xlu0 %v120, 64
    %v248 = vpop.permute.xlu0 %247
    %v250 = vsel %vm125, %v245, 0
    %vm252 = vcmask 1043456
    %v254 = vsel %vm252, %v248, 0
    %256 = vmatprep.subr.bf16.mxu0 0
    %257 = vmatpush1.bf16.msra.mxu0 0
    %258 = vmatprep.subr.bf16.mxu0 0
    %259 = vmatpush1.bf16.msra.mxu0 0
    %260 = vmatprep.subr.bf16.mxu0 0
    %261 = vmatpush1.bf16.msra.mxu0 0
    %262 = vmatprep.subr.bf16.mxu0 0
    %263 = vmatpush1.bf16.msra.mxu0 0
    %264 = vmatprep.subr.bf16.mxu0 0
    %265 = vmatpush1.bf16.msra.mxu0 0
    %266 = vmatprep.subr.bf16.mxu0 0
    %267 = vmatpush1.bf16.msra.mxu0 0
    %268 = vmatprep.subr.bf16.mxu0 0
    %269 = vmatpush1.bf16.msra.mxu0 0
    %270 = vmatprep.subr.bf16.mxu0 0
    %271 = vmatpush1.bf16.msra.mxu0 %v254
    %272 = vmatprep.subr.bf16.mxu0 0
    %273 = vmatpush2.bf16.msra.mxu0 0
    %274 = vmatprep.subr.bf16.mxu0 0
    %275 = vmatpush2.bf16.msra.mxu0 0
    %276 = vmatprep.subr.bf16.mxu0 0
    %277 = vmatpush2.bf16.msra.mxu0 0
    %278 = vmatprep.subr.bf16.mxu0 0
    %279 = vmatpush2.bf16.msra.mxu0 0
    %280 = vmatprep.subr.bf16.mxu0 0
    %281 = vmatpush2.bf16.msra.mxu0 0
    %282 = vmatprep.subr.bf16.mxu0 0
    %283 = vmatpush2.bf16.msra.mxu0 0
    %284 = vmatprep.subr.bf16.mxu0 0
    %285 = vmatpush2.bf16.msra.mxu0 0
    %286 = vmatprep.subr.bf16.mxu0 0
    %287 = vmatpush2.bf16.msra.mxu0 0
    %288 = vmatprep.mubr.bf16.mxu0 0
    %289 = vmatmul.mubr.bf16.gmra.mxu0 %v250
    %v290 = vpop.f32.mrf.mxu0
    %v291 = vadd.f32 0.0, %v290
    %v292 = vpop.f32.mrf.mxu0
    %v293 = vpop.f32.mrf.mxu0
    %v294 = vpop.f32.mrf.mxu0
    %295 = vdwg.mxu0
    %296 = vrot.lane.b32.xlu0 %v121, 64
    %v297 = vpop.permute.xlu0 %296
    %v299 = vsel %vm125, %v246, 0
    %v302 = vsel %vm252, %v297, 0
    %304 = vmatprep.subr.bf16.mxu0 0
    %305 = vmatpush1.bf16.msra.mxu0 0
    %306 = vmatprep.subr.bf16.mxu0 0
    %307 = vmatpush1.bf16.msra.mxu0 0
    %308 = vmatprep.subr.bf16.mxu0 0
    %309 = vmatpush1.bf16.msra.mxu0 0
    %310 = vmatprep.subr.bf16.mxu0 0
    %311 = vmatpush1.bf16.msra.mxu0 0
    %312 = vmatprep.subr.bf16.mxu0 0
    %313 = vmatpush1.bf16.msra.mxu0 0
    %314 = vmatprep.subr.bf16.mxu0 0
    %315 = vmatpush1.bf16.msra.mxu0 0
    %316 = vmatprep.subr.bf16.mxu0 0
    %317 = vmatpush1.bf16.msra.mxu0 0
    %318 = vmatprep.subr.bf16.mxu0 0
    %319 = vmatpush1.bf16.msra.mxu0 %v302
    %320 = vmatprep.subr.bf16.mxu0 0
    %321 = vmatpush2.bf16.msra.mxu0 0
    %322 = vmatprep.subr.bf16.mxu0 0
    %323 = vmatpush2.bf16.msra.mxu0 0
    %324 = vmatprep.subr.bf16.mxu0 0
    %325 = vmatpush2.bf16.msra.mxu0 0
    %326 = vmatprep.subr.bf16.mxu0 0
    %327 = vmatpush2.bf16.msra.mxu0 0
    %328 = vmatprep.subr.bf16.mxu0 0
    %329 = vmatpush2.bf16.msra.mxu0 0
    %330 = vmatprep.subr.bf16.mxu0 0
    %331 = vmatpush2.bf16.msra.mxu0 0
    %332 = vmatprep.subr.bf16.mxu0 0
    %333 = vmatpush2.bf16.msra.mxu0 0
    %334 = vmatprep.subr.bf16.mxu0 0
    %335 = vmatpush2.bf16.msra.mxu0 0
    %336 = vmatprep.mubr.bf16.mxu0 0
    %337 = vmatmul.mubr.bf16.gmra.mxu0 %v299
    %v338 = vpop.f32.mrf.mxu0
    %v339 = vadd.f32 0.0, %v338
    %v340 = vpop.f32.mrf.mxu0
    %v341 = vpop.f32.mrf.mxu0
    %v342 = vpop.f32.mrf.mxu0
    %343 = vdwg.mxu0
    %v344 = vpack.c.bf16 %v339, %v291
    %v345 = vld [vmem:[%s3] sm:$0xf]
    %346 = vrot.lane.b32.xlu0 %v120, 120
    %v347 = vpop.permute.xlu0 %346
    %348 = vrot.lane.b32.xlu0 %v120, 88
    %v349 = vpop.permute.xlu0 %348
    %v351 = vsel %vm125, %v347, 0
    %v354 = vsel %vm125, %v349, 0
    %356 = vmatprep.subr.bf16.mxu0 0
    %357 = vmatpush1.bf16.xpose.msra.mxu0 0
    %358 = vmatprep.subr.bf16.mxu0 0
    %359 = vmatpush1.bf16.xpose.msra.mxu0 0
    %360 = vmatprep.subr.bf16.mxu0 0
    %361 = vmatpush1.bf16.xpose.msra.mxu0 0
    %362 = vmatprep.subr.bf16.mxu0 0
    %363 = vmatpush1.bf16.xpose.msra.mxu0 0
    %364 = vmatprep.subr.bf16.mxu0 0
    %365 = vmatpush1.bf16.xpose.msra.mxu0 0
    %366 = vmatprep.subr.bf16.mxu0 0
    %367 = vmatpush1.bf16.xpose.msra.mxu0 0
    %368 = vmatprep.subr.bf16.mxu0 0
    %369 = vmatpush1.bf16.xpose.msra.mxu0 0
    %370 = vmatprep.subr.bf16.mxu0 0
    %371 = vmatpush1.bf16.xpose.msra.mxu0 %v354
    %372 = vmatprep.subr.bf16.mxu0 0
    %373 = vmatpush2.bf16.xpose.msra.mxu0 0
    %374 = vmatprep.subr.bf16.mxu0 0
    %375 = vmatpush2.bf16.xpose.msra.mxu0 0
    %376 = vmatprep.subr.bf16.mxu0 0
    %377 = vmatpush2.bf16.xpose.msra.mxu0 0
    %378 = vmatprep.subr.bf16.mxu0 0
    %379 = vmatpush2.bf16.xpose.msra.mxu0 0
    %380 = vmatprep.subr.bf16.mxu0 0
    %381 = vmatpush2.bf16.xpose.msra.mxu0 0
    %382 = vmatprep.subr.bf16.mxu0 0
    %383 = vmatpush2.bf16.xpose.msra.mxu0 0
    %384 = vmatprep.subr.bf16.mxu0 0
    %385 = vmatpush2.bf16.xpose.msra.mxu0 0
    %386 = vmatprep.subr.bf16.mxu0 0
    %387 = vmatpush2.bf16.xpose.msra.mxu0 0
    %388 = vmatprep.mubr.bf16.mxu0 0
    %389 = vmatmul.mubr.bf16.gmra.mxu0 %v351
    %v390 = vpop.f32.mrf.mxu0
    %v391 = vadd.f32 0.0, %v390
    %v392 = vpop.f32.mrf.mxu0
    %v393 = vpop.f32.mrf.mxu0
    %v394 = vpop.f32.mrf.mxu0
    %395 = vdwg.mxu0
    %396 = vrot.lane.b32.xlu0 %v121, 120
    %v397 = vpop.permute.xlu0 %396
    %398 = vrot.lane.b32.xlu0 %v121, 88
    %v399 = vpop.permute.xlu0 %398
    %v401 = vsel %vm125, %v397, 0
    %v404 = vsel %vm125, %v399, 0
    %406 = vmatprep.subr.bf16.mxu0 0
    %407 = vmatpush1.bf16.xpose.msra.mxu0 0
    %408 = vmatprep.subr.bf16.mxu0 0
    %409 = vmatpush1.bf16.xpose.msra.mxu0 0
    %410 = vmatprep.subr.bf16.mxu0 0
    %411 = vmatpush1.bf16.xpose.msra.mxu0 0
    %412 = vmatprep.subr.bf16.mxu0 0
    %413 = vmatpush1.bf16.xpose.msra.mxu0 0
    %414 = vmatprep.subr.bf16.mxu0 0
    %415 = vmatpush1.bf16.xpose.msra.mxu0 0
    %416 = vmatprep.subr.bf16.mxu0 0
    %417 = vmatpush1.bf16.xpose.msra.mxu0 0
    %418 = vmatprep.subr.bf16.mxu0 0
    %419 = vmatpush1.bf16.xpose.msra.mxu0 0
    %420 = vmatprep.subr.bf16.mxu0 0
    %421 = vmatpush1.bf16.xpose.msra.mxu0 %v404
    %422 = vmatprep.subr.bf16.mxu0 0
    %423 = vmatpush2.bf16.xpose.msra.mxu0 0
    %424 = vmatprep.subr.bf16.mxu0 0
    %425 = vmatpush2.bf16.xpose.msra.mxu0 0
    %426 = vmatprep.subr.bf16.mxu0 0
    %427 = vmatpush2.bf16.xpose.msra.mxu0 0
    %428 = vmatprep.subr.bf16.mxu0 0
    %429 = vmatpush2.bf16.xpose.msra.mxu0 0
    %430 = vmatprep.subr.bf16.mxu0 0
    %431 = vmatpush2.bf16.xpose.msra.mxu0 0
    %432 = vmatprep.subr.bf16.mxu0 0
    %433 = vmatpush2.bf16.xpose.msra.mxu0 0
    %434 = vmatprep.subr.bf16.mxu0 0
    %435 = vmatpush2.bf16.xpose.msra.mxu0 0
    %436 = vmatprep.subr.bf16.mxu0 0
    %437 = vmatpush2.bf16.xpose.msra.mxu0 0
    %438 = vmatprep.mubr.bf16.mxu0 0
    %439 = vmatmul.mubr.bf16.gmra.mxu0 %v401
    %v440 = vpop.f32.mrf.mxu0
    %v441 = vadd.f32 0.0, %v440
    %v442 = vpop.f32.mrf.mxu0
    %v443 = vpop.f32.mrf.mxu0
    %v444 = vpop.f32.mrf.mxu0
    %445 = vdwg.mxu0
    %v446 = vmul.f32 %v391, 0.35355338
    %v447 = vmul.f32 %v441, 0.35355338
    %v448 = vsel %vm125, %v446, -inf
    %449 = vmax.xlane.f32.xlu0 %v448
    %v450 = vpop.xlane.xlu0 %449
    %v451 = vsel %vm125, %v447, -inf
    %452 = vmax.xlane.f32.xlu0 %v451
    %v453 = vpop.xlane.xlu0 %452
    %v454 = vsub.f32 %v446, %v450
    %v455 = vsub.f32 %v447, %v453
    %v456 = vmul.f32 %v454, 1.442695
    %v457 = vpow.pop %v456
    %v458 = vmul.f32 %v455, 1.442695
    %v459 = vpow.pop %v458
    %v460 = vsel %vm125, %v457, 0.0
    %461 = vadd.xlane.f32.xlu0 %v460
    %v462 = vpop.xlane.xlu0 %461
    %v463 = vsel %vm125, %v459, 0.0
    %464 = vadd.xlane.f32.xlu0 %v463
    %v465 = vpop.xlane.xlu0 %464
    %v466 = vrcp.pop %v462
    %v467 = vrcp.pop %v465
    %v468 = vmul.f32 %v457, %v466
    %v469 = vmul.f32 %v459, %v467
    %v470 = vpack.c.bf16 %v468, %v468
    %v471 = vpack.c.bf16 %v469, %v469
    %472 = vrot.lane.b32.xlu0 %v120, 56
    %v473 = vpop.permute.xlu0 %472
    %v475 = vsel %vm125, %v470, 0
    %v478 = vsel %vm252, %v473, 0
    %480 = vmatprep.subr.bf16.mxu0 0
    %481 = vmatpush1.bf16.msra.mxu0 0
    %482 = vmatprep.subr.bf16.mxu0 0
    %483 = vmatpush1.bf16.msra.mxu0 0
    %484 = vmatprep.subr.bf16.mxu0 0
    %485 = vmatpush1.bf16.msra.mxu0 0
    %486 = vmatprep.subr.bf16.mxu0 0
    %487 = vmatpush1.bf16.msra.mxu0 0
    %488 = vmatprep.subr.bf16.mxu0 0
    %489 = vmatpush1.bf16.msra.mxu0 0
    %490 = vmatprep.subr.bf16.mxu0 0
    %491 = vmatpush1.bf16.msra.mxu0 0
    %492 = vmatprep.subr.bf16.mxu0 0
    %493 = vmatpush1.bf16.msra.mxu0 0
    %494 = vmatprep.subr.bf16.mxu0 0
    %495 = vmatpush1.bf16.msra.mxu0 %v478
    %496 = vmatprep.subr.bf16.mxu0 0
    %497 = vmatpush2.bf16.msra.mxu0 0
    %498 = vmatprep.subr.bf16.mxu0 0
    %499 = vmatpush2.bf16.msra.mxu0 0
    %500 = vmatprep.subr.bf16.mxu0 0
    %501 = vmatpush2.bf16.msra.mxu0 0
    %502 = vmatprep.subr.bf16.mxu0 0
    %503 = vmatpush2.bf16.msra.mxu0 0
    %504 = vmatprep.subr.bf16.mxu0 0
    %505 = vmatpush2.bf16.msra.mxu0 0
    %506 = vmatprep.subr.bf16.mxu0 0
    %507 = vmatpush2.bf16.msra.mxu0 0
    %508 = vmatprep.subr.bf16.mxu0 0
    %509 = vmatpush2.bf16.msra.mxu0 0
    %510 = vmatprep.subr.bf16.mxu0 0
    %511 = vmatpush2.bf16.msra.mxu0 0
    %512 = vmatprep.mubr.bf16.mxu0 0
    %513 = vmatmul.mubr.bf16.gmra.mxu0 %v475
    %v514 = vpop.f32.mrf.mxu0
    %v515 = vadd.f32 0.0, %v514
    %v516 = vpop.f32.mrf.mxu0
    %v517 = vpop.f32.mrf.mxu0
    %v518 = vpop.f32.mrf.mxu0
    %519 = vdwg.mxu0
    %520 = vrot.lane.b32.xlu0 %v121, 56
    %v521 = vpop.permute.xlu0 %520
    %v523 = vsel %vm125, %v471, 0
    %v526 = vsel %vm252, %v521, 0
    %528 = vmatprep.subr.bf16.mxu0 0
    %529 = vmatpush1.bf16.msra.mxu0 0
    %530 = vmatprep.subr.bf16.mxu0 0
    %531 = vmatpush1.bf16.msra.mxu0 0
    %532 = vmatprep.subr.bf16.mxu0 0
    %533 = vmatpush1.bf16.msra.mxu0 0
    %534 = vmatprep.subr.bf16.mxu0 0
    %535 = vmatpush1.bf16.msra.mxu0 0
    %536 = vmatprep.subr.bf16.mxu0 0
    %537 = vmatpush1.bf16.msra.mxu0 0
    %538 = vmatprep.subr.bf16.mxu0 0
    %539 = vmatpush1.bf16.msra.mxu0 0
    %540 = vmatprep.subr.bf16.mxu0 0
    %541 = vmatpush1.bf16.msra.mxu0 0
    %542 = vmatprep.subr.bf16.mxu0 0
    %543 = vmatpush1.bf16.msra.mxu0 %v526
    %544 = vmatprep.subr.bf16.mxu0 0
    %545 = vmatpush2.bf16.msra.mxu0 0
    %546 = vmatprep.subr.bf16.mxu0 0
    %547 = vmatpush2.bf16.msra.mxu0 0
    %548 = vmatprep.subr.bf16.mxu0 0
    %549 = vmatpush2.bf16.msra.mxu0 0
    %550 = vmatprep.subr.bf16.mxu0 0
    %551 = vmatpush2.bf16.msra.mxu0 0
    %552 = vmatprep.subr.bf16.mxu0 0
    %553 = vmatpush2.bf16.msra.mxu0 0
    %554 = vmatprep.subr.bf16.mxu0 0
    %555 = vmatpush2.bf16.msra.mxu0 0
    %556 = vmatprep.subr.bf16.mxu0 0
    %557 = vmatpush2.bf16.msra.mxu0 0
    %558 = vmatprep.subr.bf16.mxu0 0
    %559 = vmatpush2.bf16.msra.mxu0 0
    %560 = vmatprep.mubr.bf16.mxu0 0
    %561 = vmatmul.mubr.bf16.gmra.mxu0 %v523
    %v562 = vpop.f32.mrf.mxu0
    %v563 = vadd.f32 0.0, %v562
    %v564 = vpop.f32.mrf.mxu0
    %v565 = vpop.f32.mrf.mxu0
    %v566 = vpop.f32.mrf.mxu0
    %567 = vdwg.mxu0
    %v568 = vpack.c.bf16 %v563, %v515
    %s569 = scalar_lea.vmem %s3, 4
    %v570 = vld [vmem:[%s569] sm:$0xf]
    %v572 = vsel %vm125, %v568, 0
    %v575 = vsel %vm252, %v570, 0
    %577 = vmatprep.subr.bf16.mxu0 0
    %578 = vmatpush1.bf16.msra.mxu0 0
    %579 = vmatprep.subr.bf16.mxu0 0
    %580 = vmatpush1.bf16.msra.mxu0 0
    %581 = vmatprep.subr.bf16.mxu0 0
    %582 = vmatpush1.bf16.msra.mxu0 0
    %583 = vmatprep.subr.bf16.mxu0 0
    %584 = vmatpush1.bf16.msra.mxu0 0
    %585 = vmatprep.subr.bf16.mxu0 0
    %586 = vmatpush1.bf16.msra.mxu0 0
    %587 = vmatprep.subr.bf16.mxu0 0
    %588 = vmatpush1.bf16.msra.mxu0 0
    %589 = vmatprep.subr.bf16.mxu0 0
    %590 = vmatpush1.bf16.msra.mxu0 0
    %591 = vmatprep.subr.bf16.mxu0 0
    %592 = vmatpush1.bf16.msra.mxu0 %v575
    %593 = vmatprep.subr.bf16.mxu0 0
    %594 = vmatpush2.bf16.msra.mxu0 0
    %595 = vmatprep.subr.bf16.mxu0 0
    %596 = vmatpush2.bf16.msra.mxu0 0
    %597 = vmatprep.subr.bf16.mxu0 0
    %598 = vmatpush2.bf16.msra.mxu0 0
    %599 = vmatprep.subr.bf16.mxu0 0
    %600 = vmatpush2.bf16.msra.mxu0 0
    %601 = vmatprep.subr.bf16.mxu0 0
    %602 = vmatpush2.bf16.msra.mxu0 0
    %603 = vmatprep.subr.bf16.mxu0 0
    %604 = vmatpush2.bf16.msra.mxu0 0
    %605 = vmatprep.subr.bf16.mxu0 0
    %606 = vmatpush2.bf16.msra.mxu0 0
    %607 = vmatprep.subr.bf16.mxu0 0
    %608 = vmatpush2.bf16.msra.mxu0 0
    %609 = vmatprep.mubr.bf16.mxu0 0
    %610 = vmatmul.mubr.bf16.gmra.mxu0 %v572
    %v611 = vpop.f32.mrf.mxu0
    %v612 = vadd.f32 0.0, %v611
    %v613 = vpop.f32.mrf.mxu0
    %v614 = vpop.f32.mrf.mxu0
    %v615 = vadd.f32 0.0, %v614
    %v616 = vpop.f32.mrf.mxu0
    %617 = vdwg.mxu0
    %v619 = vsel %vm125, %v344, 0
    %v622 = vsel %vm252, %v345, 0
    %624 = vmatprep.subr.bf16.mxu0 0
    %625 = vmatpush1.bf16.msra.mxu0 0
    %626 = vmatprep.subr.bf16.mxu0 0
    %627 = vmatpush1.bf16.msra.mxu0 0
    %628 = vmatprep.subr.bf16.mxu0 0
    %629 = vmatpush1.bf16.msra.mxu0 0
    %630 = vmatprep.subr.bf16.mxu0 0
    %631 = vmatpush1.bf16.msra.mxu0 0
    %632 = vmatprep.subr.bf16.mxu0 0
    %633 = vmatpush1.bf16.msra.mxu0 0
    %634 = vmatprep.subr.bf16.mxu0 0
    %635 = vmatpush1.bf16.msra.mxu0 0
    %636 = vmatprep.subr.bf16.mxu0 0
    %637 = vmatpush1.bf16.msra.mxu0 0
    %638 = vmatprep.subr.bf16.mxu0 0
    %639 = vmatpush1.bf16.msra.mxu0 %v622
    %640 = vmatprep.subr.bf16.mxu0 0
    %641 = vmatpush2.bf16.msra.mxu0 0
    %642 = vmatprep.subr.bf16.mxu0 0
    %643 = vmatpush2.bf16.msra.mxu0 0
    %644 = vmatprep.subr.bf16.mxu0 0
    %645 = vmatpush2.bf16.msra.mxu0 0
    %646 = vmatprep.subr.bf16.mxu0 0
    %647 = vmatpush2.bf16.msra.mxu0 0
    %648 = vmatprep.subr.bf16.mxu0 0
    %649 = vmatpush2.bf16.msra.mxu0 0
    %650 = vmatprep.subr.bf16.mxu0 0
    %651 = vmatpush2.bf16.msra.mxu0 0
    %652 = vmatprep.subr.bf16.mxu0 0
    %653 = vmatpush2.bf16.msra.mxu0 0
    %654 = vmatprep.subr.bf16.mxu0 0
    %655 = vmatpush2.bf16.msra.mxu0 0
    %656 = vmatprep.mubr.bf16.mxu0 0
    %657 = vmatmul.mubr.bf16.gmra.mxu0 %v619
    %v658 = vpop.f32.mrf.mxu0
    %v659 = vadd.f32 %v612, %v658
    %v660 = vpop.f32.mrf.mxu0
    %v661 = vpop.f32.mrf.mxu0
    %v662 = vadd.f32 %v615, %v661
    %v663 = vpop.f32.mrf.mxu0
    %664 = vdwg.mxu0
    %665 = vrot.lane.b32.xlu0 %v120, 112
    %v666 = vpop.permute.xlu0 %665
    %667 = vrot.lane.b32.xlu0 %v120, 80
    %v668 = vpop.permute.xlu0 %667
    %v670 = vsel %vm125, %v666, 0
    %v673 = vsel %vm125, %v668, 0
    %675 = vmatprep.subr.bf16.mxu0 0
    %676 = vmatpush1.bf16.xpose.msra.mxu0 0
    %677 = vmatprep.subr.bf16.mxu0 0
    %678 = vmatpush1.bf16.xpose.msra.mxu0 0
    %679 = vmatprep.subr.bf16.mxu0 0
    %680 = vmatpush1.bf16.xpose.msra.mxu0 0
    %681 = vmatprep.subr.bf16.mxu0 0
    %682 = vmatpush1.bf16.xpose.msra.mxu0 0
    %683 = vmatprep.subr.bf16.mxu0 0
    %684 = vmatpush1.bf16.xpose.msra.mxu0 0
    %685 = vmatprep.subr.bf16.mxu0 0
    %686 = vmatpush1.bf16.xpose.msra.mxu0 0
    %687 = vmatprep.subr.bf16.mxu0 0
    %688 = vmatpush1.bf16.xpose.msra.mxu0 0
    %689 = vmatprep.subr.bf16.mxu0 0
    %690 = vmatpush1.bf16.xpose.msra.mxu0 %v673
    %691 = vmatprep.subr.bf16.mxu0 0
    %692 = vmatpush2.bf16.xpose.msra.mxu0 0
    %693 = vmatprep.subr.bf16.mxu0 0
    %694 = vmatpush2.bf16.xpose.msra.mxu0 0
    %695 = vmatprep.subr.bf16.mxu0 0
    %696 = vmatpush2.bf16.xpose.msra.mxu0 0
    %697 = vmatprep.subr.bf16.mxu0 0
    %698 = vmatpush2.bf16.xpose.msra.mxu0 0
    %699 = vmatprep.subr.bf16.mxu0 0
    %700 = vmatpush2.bf16.xpose.msra.mxu0 0
    %701 = vmatprep.subr.bf16.mxu0 0
    %702 = vmatpush2.bf16.xpose.msra.mxu0 0
    %703 = vmatprep.subr.bf16.mxu0 0
    %704 = vmatpush2.bf16.xpose.msra.mxu0 0
    %705 = vmatprep.subr.bf16.mxu0 0
    %706 = vmatpush2.bf16.xpose.msra.mxu0 0
    %707 = vmatprep.mubr.bf16.mxu0 0
    %708 = vmatmul.mubr.bf16.gmra.mxu0 %v670
    %v709 = vpop.f32.mrf.mxu0
    %v710 = vadd.f32 0.0, %v709
    %v711 = vpop.f32.mrf.mxu0
    %v712 = vpop.f32.mrf.mxu0
    %v713 = vpop.f32.mrf.mxu0
    %714 = vdwg.mxu0
    %715 = vrot.lane.b32.xlu0 %v121, 112
    %v716 = vpop.permute.xlu0 %715
    %717 = vrot.lane.b32.xlu0 %v121, 80
    %v718 = vpop.permute.xlu0 %717
    %v720 = vsel %vm125, %v716, 0
    %v723 = vsel %vm125, %v718, 0
    %725 = vmatprep.subr.bf16.mxu0 0
    %726 = vmatpush1.bf16.xpose.msra.mxu0 0
    %727 = vmatprep.subr.bf16.mxu0 0
    %728 = vmatpush1.bf16.xpose.msra.mxu0 0
    %729 = vmatprep.subr.bf16.mxu0 0
    %730 = vmatpush1.bf16.xpose.msra.mxu0 0
    %731 = vmatprep.subr.bf16.mxu0 0
    %732 = vmatpush1.bf16.xpose.msra.mxu0 0
    %733 = vmatprep.subr.bf16.mxu0 0
    %734 = vmatpush1.bf16.xpose.msra.mxu0 0
    %735 = vmatprep.subr.bf16.mxu0 0
    %736 = vmatpush1.bf16.xpose.msra.mxu0 0
    %737 = vmatprep.subr.bf16.mxu0 0
    %738 = vmatpush1.bf16.xpose.msra.mxu0 0
    %739 = vmatprep.subr.bf16.mxu0 0
    %740 = vmatpush1.bf16.xpose.msra.mxu0 %v723
    %741 = vmatprep.subr.bf16.mxu0 0
    %742 = vmatpush2.bf16.xpose.msra.mxu0 0
    %743 = vmatprep.subr.bf16.mxu0 0
    %744 = vmatpush2.bf16.xpose.msra.mxu0 0
    %745 = vmatprep.subr.bf16.mxu0 0
    %746 = vmatpush2.bf16.xpose.msra.mxu0 0
    %747 = vmatprep.subr.bf16.mxu0 0
    %748 = vmatpush2.bf16.xpose.msra.mxu0 0
    %749 = vmatprep.subr.bf16.mxu0 0
    %750 = vmatpush2.bf16.xpose.msra.mxu0 0
    %751 = vmatprep.subr.bf16.mxu0 0
    %752 = vmatpush2.bf16.xpose.msra.mxu0 0
    %753 = vmatprep.subr.bf16.mxu0 0
    %754 = vmatpush2.bf16.xpose.msra.mxu0 0
    %755 = vmatprep.subr.bf16.mxu0 0
    %756 = vmatpush2.bf16.xpose.msra.mxu0 0
    %757 = vmatprep.mubr.bf16.mxu0 0
    %758 = vmatmul.mubr.bf16.gmra.mxu0 %v720
    %v759 = vpop.f32.mrf.mxu0
    %v760 = vadd.f32 0.0, %v759
    %v761 = vpop.f32.mrf.mxu0
    %v762 = vpop.f32.mrf.mxu0
    %v763 = vpop.f32.mrf.mxu0
    %764 = vdwg.mxu0
    %v765 = vmul.f32 %v710, 0.35355338
    %v766 = vmul.f32 %v760, 0.35355338
    %v767 = vsel %vm125, %v765, -inf
    %768 = vmax.xlane.f32.xlu0 %v767
    %v769 = vpop.xlane.xlu0 %768
    %v770 = vsel %vm125, %v766, -inf
    %771 = vmax.xlane.f32.xlu0 %v770
    %v772 = vpop.xlane.xlu0 %771
    %v773 = vsub.f32 %v765, %v769
    %v774 = vsub.f32 %v766, %v772
    %v775 = vmul.f32 %v773, 1.442695
    %v776 = vpow.pop %v775
    %v777 = vmul.f32 %v774, 1.442695
    %v778 = vpow.pop %v777
    %v779 = vsel %vm125, %v776, 0.0
    %780 = vadd.xlane.f32.xlu0 %v779
    %v781 = vpop.xlane.xlu0 %780
    %v782 = vsel %vm125, %v778, 0.0
    %783 = vadd.xlane.f32.xlu0 %v782
    %v784 = vpop.xlane.xlu0 %783
    %v785 = vrcp.pop %v781
    %v786 = vrcp.pop %v784
    %v787 = vmul.f32 %v776, %v785
    %v788 = vmul.f32 %v778, %v786
    %v789 = vpack.c.bf16 %v787, %v787
    %v790 = vpack.c.bf16 %v788, %v788
    %791 = vrot.lane.b32.xlu0 %v120, 48
    %v792 = vpop.permute.xlu0 %791
    %v794 = vsel %vm125, %v789, 0
    %v797 = vsel %vm252, %v792, 0
    %799 = vmatprep.subr.bf16.mxu0 0
    %800 = vmatpush1.bf16.msra.mxu0 0
    %801 = vmatprep.subr.bf16.mxu0 0
    %802 = vmatpush1.bf16.msra.mxu0 0
    %803 = vmatprep.subr.bf16.mxu0 0
    %804 = vmatpush1.bf16.msra.mxu0 0
    %805 = vmatprep.subr.bf16.mxu0 0
    %806 = vmatpush1.bf16.msra.mxu0 0
    %807 = vmatprep.subr.bf16.mxu0 0
    %808 = vmatpush1.bf16.msra.mxu0 0
    %809 = vmatprep.subr.bf16.mxu0 0
    %810 = vmatpush1.bf16.msra.mxu0 0
    %811 = vmatprep.subr.bf16.mxu0 0
    %812 = vmatpush1.bf16.msra.mxu0 0
    %813 = vmatprep.subr.bf16.mxu0 0
    %814 = vmatpush1.bf16.msra.mxu0 %v797
    %815 = vmatprep.subr.bf16.mxu0 0
    %816 = vmatpush2.bf16.msra.mxu0 0
    %817 = vmatprep.subr.bf16.mxu0 0
    %818 = vmatpush2.bf16.msra.mxu0 0
    %819 = vmatprep.subr.bf16.mxu0 0
    %820 = vmatpush2.bf16.msra.mxu0 0
    %821 = vmatprep.subr.bf16.mxu0 0
    %822 = vmatpush2.bf16.msra.mxu0 0
    %823 = vmatprep.subr.bf16.mxu0 0
    %824 = vmatpush2.bf16.msra.mxu0 0
    %825 = vmatprep.subr.bf16.mxu0 0
    %826 = vmatpush2.bf16.msra.mxu0 0
    %827 = vmatprep.subr.bf16.mxu0 0
    %828 = vmatpush2.bf16.msra.mxu0 0
    %829 = vmatprep.subr.bf16.mxu0 0
    %830 = vmatpush2.bf16.msra.mxu0 0
    %831 = vmatprep.mubr.bf16.mxu0 0
    %832 = vmatmul.mubr.bf16.gmra.mxu0 %v794
    %v833 = vpop.f32.mrf.mxu0
    %v834 = vadd.f32 0.0, %v833
    %v835 = vpop.f32.mrf.mxu0
    %v836 = vpop.f32.mrf.mxu0
    %v837 = vpop.f32.mrf.mxu0
    %838 = vdwg.mxu0
    %839 = vrot.lane.b32.xlu0 %v121, 48
    %v840 = vpop.permute.xlu0 %839
    %v842 = vsel %vm125, %v790, 0
    %v845 = vsel %vm252, %v840, 0
    %847 = vmatprep.subr.bf16.mxu0 0
    %848 = vmatpush1.bf16.msra.mxu0 0
    %849 = vmatprep.subr.bf16.mxu0 0
    %850 = vmatpush1.bf16.msra.mxu0 0
    %851 = vmatprep.subr.bf16.mxu0 0
    %852 = vmatpush1.bf16.msra.mxu0 0
    %853 = vmatprep.subr.bf16.mxu0 0
    %854 = vmatpush1.bf16.msra.mxu0 0
    %855 = vmatprep.subr.bf16.mxu0 0
    %856 = vmatpush1.bf16.msra.mxu0 0
    %857 = vmatprep.subr.bf16.mxu0 0
    %858 = vmatpush1.bf16.msra.mxu0 0
    %859 = vmatprep.subr.bf16.mxu0 0
    %860 = vmatpush1.bf16.msra.mxu0 0
    %861 = vmatprep.subr.bf16.mxu0 0
    %862 = vmatpush1.bf16.msra.mxu0 %v845
    %863 = vmatprep.subr.bf16.mxu0 0
    %864 = vmatpush2.bf16.msra.mxu0 0
    %865 = vmatprep.subr.bf16.mxu0 0
    %866 = vmatpush2.bf16.msra.mxu0 0
    %867 = vmatprep.subr.bf16.mxu0 0
    %868 = vmatpush2.bf16.msra.mxu0 0
    %869 = vmatprep.subr.bf16.mxu0 0
    %870 = vmatpush2.bf16.msra.mxu0 0
    %871 = vmatprep.subr.bf16.mxu0 0
    %872 = vmatpush2.bf16.msra.mxu0 0
    %873 = vmatprep.subr.bf16.mxu0 0
    %874 = vmatpush2.bf16.msra.mxu0 0
    %875 = vmatprep.subr.bf16.mxu0 0
    %876 = vmatpush2.bf16.msra.mxu0 0
    %877 = vmatprep.subr.bf16.mxu0 0
    %878 = vmatpush2.bf16.msra.mxu0 0
    %879 = vmatprep.mubr.bf16.mxu0 0
    %880 = vmatmul.mubr.bf16.gmra.mxu0 %v842
    %v881 = vpop.f32.mrf.mxu0
    %v882 = vadd.f32 0.0, %v881
    %v883 = vpop.f32.mrf.mxu0
    %v884 = vpop.f32.mrf.mxu0
    %v885 = vpop.f32.mrf.mxu0
    %886 = vdwg.mxu0
    %v887 = vpack.c.bf16 %v882, %v834
    %s888 = scalar_lea.vmem %s3, 8
    %v889 = vld [vmem:[%s888] sm:$0xf]
    %v891 = vsel %vm125, %v887, 0
    %v894 = vsel %vm252, %v889, 0
    %896 = vmatprep.subr.bf16.mxu0 0
    %897 = vmatpush1.bf16.msra.mxu0 0
    %898 = vmatprep.subr.bf16.mxu0 0
    %899 = vmatpush1.bf16.msra.mxu0 0
    %900 = vmatprep.subr.bf16.mxu0 0
    %901 = vmatpush1.bf16.msra.mxu0 0
    %902 = vmatprep.subr.bf16.mxu0 0
    %903 = vmatpush1.bf16.msra.mxu0 0
    %904 = vmatprep.subr.bf16.mxu0 0
    %905 = vmatpush1.bf16.msra.mxu0 0
    %906 = vmatprep.subr.bf16.mxu0 0
    %907 = vmatpush1.bf16.msra.mxu0 0
    %908 = vmatprep.subr.bf16.mxu0 0
    %909 = vmatpush1.bf16.msra.mxu0 0
    %910 = vmatprep.subr.bf16.mxu0 0
    %911 = vmatpush1.bf16.msra.mxu0 %v894
    %912 = vmatprep.subr.bf16.mxu0 0
    %913 = vmatpush2.bf16.msra.mxu0 0
    %914 = vmatprep.subr.bf16.mxu0 0
    %915 = vmatpush2.bf16.msra.mxu0 0
    %916 = vmatprep.subr.bf16.mxu0 0
    %917 = vmatpush2.bf16.msra.mxu0 0
    %918 = vmatprep.subr.bf16.mxu0 0
    %919 = vmatpush2.bf16.msra.mxu0 0
    %920 = vmatprep.subr.bf16.mxu0 0
    %921 = vmatpush2.bf16.msra.mxu0 0
    %922 = vmatprep.subr.bf16.mxu0 0
    %923 = vmatpush2.bf16.msra.mxu0 0
    %924 = vmatprep.subr.bf16.mxu0 0
    %925 = vmatpush2.bf16.msra.mxu0 0
    %926 = vmatprep.subr.bf16.mxu0 0
    %927 = vmatpush2.bf16.msra.mxu0 0
    %928 = vmatprep.mubr.bf16.mxu0 0
    %929 = vmatmul.mubr.bf16.gmra.mxu0 %v891
    %v930 = vpop.f32.mrf.mxu0
    %v931 = vadd.f32 0.0, %v930
    %v932 = vpop.f32.mrf.mxu0
    %v933 = vpop.f32.mrf.mxu0
    %v934 = vadd.f32 0.0, %v933
    %v935 = vpop.f32.mrf.mxu0
    %936 = vdwg.mxu0
    %v937 = vadd.f32 %v659, %v931
    %v938 = vadd.f32 %v662, %v934
    %939 = vrot.lane.b32.xlu0 %v120, 104
    %v940 = vpop.permute.xlu0 %939
    %941 = vrot.lane.b32.xlu0 %v120, 72
    %v942 = vpop.permute.xlu0 %941
    %v944 = vsel %vm125, %v940, 0
    %v947 = vsel %vm125, %v942, 0
    %949 = vmatprep.subr.bf16.mxu0 0
    %950 = vmatpush1.bf16.xpose.msra.mxu0 0
    %951 = vmatprep.subr.bf16.mxu0 0
    %952 = vmatpush1.bf16.xpose.msra.mxu0 0
    %953 = vmatprep.subr.bf16.mxu0 0
    %954 = vmatpush1.bf16.xpose.msra.mxu0 0
    %955 = vmatprep.subr.bf16.mxu0 0
    %956 = vmatpush1.bf16.xpose.msra.mxu0 0
    %957 = vmatprep.subr.bf16.mxu0 0
    %958 = vmatpush1.bf16.xpose.msra.mxu0 0
    %959 = vmatprep.subr.bf16.mxu0 0
    %960 = vmatpush1.bf16.xpose.msra.mxu0 0
    %961 = vmatprep.subr.bf16.mxu0 0
    %962 = vmatpush1.bf16.xpose.msra.mxu0 0
    %963 = vmatprep.subr.bf16.mxu0 0
    %964 = vmatpush1.bf16.xpose.msra.mxu0 %v947
    %965 = vmatprep.subr.bf16.mxu0 0
    %966 = vmatpush2.bf16.xpose.msra.mxu0 0
    %967 = vmatprep.subr.bf16.mxu0 0
    %968 = vmatpush2.bf16.xpose.msra.mxu0 0
    %969 = vmatprep.subr.bf16.mxu0 0
    %970 = vmatpush2.bf16.xpose.msra.mxu0 0
    %971 = vmatprep.subr.bf16.mxu0 0
    %972 = vmatpush2.bf16.xpose.msra.mxu0 0
    %973 = vmatprep.subr.bf16.mxu0 0
    %974 = vmatpush2.bf16.xpose.msra.mxu0 0
    %975 = vmatprep.subr.bf16.mxu0 0
    %976 = vmatpush2.bf16.xpose.msra.mxu0 0
    %977 = vmatprep.subr.bf16.mxu0 0
    %978 = vmatpush2.bf16.xpose.msra.mxu0 0
    %979 = vmatprep.subr.bf16.mxu0 0
    %980 = vmatpush2.bf16.xpose.msra.mxu0 0
    %981 = vmatprep.mubr.bf16.mxu0 0
    %982 = vmatmul.mubr.bf16.gmra.mxu0 %v944
    %v983 = vpop.f32.mrf.mxu0
    %v984 = vadd.f32 0.0, %v983
    %v985 = vpop.f32.mrf.mxu0
    %v986 = vpop.f32.mrf.mxu0
    %v987 = vpop.f32.mrf.mxu0
    %988 = vdwg.mxu0
    %989 = vrot.lane.b32.xlu0 %v121, 104
    %v990 = vpop.permute.xlu0 %989
    %991 = vrot.lane.b32.xlu0 %v121, 72
    %v992 = vpop.permute.xlu0 %991
    %v994 = vsel %vm125, %v990, 0
    %v997 = vsel %vm125, %v992, 0
    %999 = vmatprep.subr.bf16.mxu0 0
    %1000 = vmatpush1.bf16.xpose.msra.mxu0 0
    %1001 = vmatprep.subr.bf16.mxu0 0
    %1002 = vmatpush1.bf16.xpose.msra.mxu0 0
    %1003 = vmatprep.subr.bf16.mxu0 0
    %1004 = vmatpush1.bf16.xpose.msra.mxu0 0
    %1005 = vmatprep.subr.bf16.mxu0 0
    %1006 = vmatpush1.bf16.xpose.msra.mxu0 0
    %1007 = vmatprep.subr.bf16.mxu0 0
    %1008 = vmatpush1.bf16.xpose.msra.mxu0 0
    %1009 = vmatprep.subr.bf16.mxu0 0
    %1010 = vmatpush1.bf16.xpose.msra.mxu0 0
    %1011 = vmatprep.subr.bf16.mxu0 0
    %1012 = vmatpush1.bf16.xpose.msra.mxu0 0
    %1013 = vmatprep.subr.bf16.mxu0 0
    %1014 = vmatpush1.bf16.xpose.msra.mxu0 %v997
    %1015 = vmatprep.subr.bf16.mxu0 0
    %1016 = vmatpush2.bf16.xpose.msra.mxu0 0
    %1017 = vmatprep.subr.bf16.mxu0 0
    %1018 = vmatpush2.bf16.xpose.msra.mxu0 0
    %1019 = vmatprep.subr.bf16.mxu0 0
    %1020 = vmatpush2.bf16.xpose.msra.mxu0 0
    %1021 = vmatprep.subr.bf16.mxu0 0
    %1022 = vmatpush2.bf16.xpose.msra.mxu0 0
    %1023 = vmatprep.subr.bf16.mxu0 0
    %1024 = vmatpush2.bf16.xpose.msra.mxu0 0
    %1025 = vmatprep.subr.bf16.mxu0 0
    %1026 = vmatpush2.bf16.xpose.msra.mxu0 0
    %1027 = vmatprep.subr.bf16.mxu0 0
    %1028 = vmatpush2.bf16.xpose.msra.mxu0 0
    %1029 = vmatprep.subr.bf16.mxu0 0
    %1030 = vmatpush2.bf16.xpose.msra.mxu0 0
    %1031 = vmatprep.mubr.bf16.mxu0 0
    %1032 = vmatmul.mubr.bf16.gmra.mxu0 %v994
    %v1033 = vpop.f32.mrf.mxu0
    %v1034 = vadd.f32 0.0, %v1033
    %v1035 = vpop.f32.mrf.mxu0
    %v1036 = vpop.f32.mrf.mxu0
    %v1037 = vpop.f32.mrf.mxu0
    %1038 = vdwg.mxu0
    %v1039 = vmul.f32 %v984, 0.35355338
    %v1040 = vmul.f32 %v1034, 0.35355338
    %v1041 = vsel %vm125, %v1039, -inf
    %1042 = vmax.xlane.f32.xlu0 %v1041
    %v1043 = vpop.xlane.xlu0 %1042
    %v1044 = vsel %vm125, %v1040, -inf
    %1045 = vmax.xlane.f32.xlu0 %v1044
    %v1046 = vpop.xlane.xlu0 %1045
    %v1047 = vsub.f32 %v1039, %v1043
    %v1048 = vsub.f32 %v1040, %v1046
    %v1049 = vmul.f32 %v1047, 1.442695
    %v1050 = vpow.pop %v1049
    %v1051 = vmul.f32 %v1048, 1.442695
    %v1052 = vpow.pop %v1051
    %v1053 = vsel %vm125, %v1050, 0.0
    %1054 = vadd.xlane.f32.xlu0 %v1053
    %v1055 = vpop.xlane.xlu0 %1054
    %v1056 = vsel %vm125, %v1052, 0.0
    %1057 = vadd.xlane.f32.xlu0 %v1056
    %v1058 = vpop.xlane.xlu0 %1057
    %v1059 = vrcp.pop %v1055
    %v1060 = vrcp.pop %v1058
    %v1061 = vmul.f32 %v1050, %v1059
    %v1062 = vmul.f32 %v1052, %v1060
    %v1063 = vpack.c.bf16 %v1061, %v1061
    %v1064 = vpack.c.bf16 %v1062, %v1062
    %1065 = vrot.lane.b32.xlu0 %v120, 40
    %v1066 = vpop.permute.xlu0 %1065
    %v1068 = vsel %vm125, %v1063, 0
    %v1071 = vsel %vm252, %v1066, 0
    %1073 = vmatprep.subr.bf16.mxu0 0
    %1074 = vmatpush1.bf16.msra.mxu0 0
    %1075 = vmatprep.subr.bf16.mxu0 0
    %1076 = vmatpush1.bf16.msra.mxu0 0
    %1077 = vmatprep.subr.bf16.mxu0 0
    %1078 = vmatpush1.bf16.msra.mxu0 0
    %1079 = vmatprep.subr.bf16.mxu0 0
    %1080 = vmatpush1.bf16.msra.mxu0 0
    %1081 = vmatprep.subr.bf16.mxu0 0
    %1082 = vmatpush1.bf16.msra.mxu0 0
    %1083 = vmatprep.subr.bf16.mxu0 0
    %1084 = vmatpush1.bf16.msra.mxu0 0
    %1085 = vmatprep.subr.bf16.mxu0 0
    %1086 = vmatpush1.bf16.msra.mxu0 0
    %1087 = vmatprep.subr.bf16.mxu0 0
    %1088 = vmatpush1.bf16.msra.mxu0 %v1071
    %1089 = vmatprep.subr.bf16.mxu0 0
    %1090 = vmatpush2.bf16.msra.mxu0 0
    %1091 = vmatprep.subr.bf16.mxu0 0
    %1092 = vmatpush2.bf16.msra.mxu0 0
    %1093 = vmatprep.subr.bf16.mxu0 0
    %1094 = vmatpush2.bf16.msra.mxu0 0
    %1095 = vmatprep.subr.bf16.mxu0 0
    %1096 = vmatpush2.bf16.msra.mxu0 0
    %1097 = vmatprep.subr.bf16.mxu0 0
    %1098 = vmatpush2.bf16.msra.mxu0 0
    %1099 = vmatprep.subr.bf16.mxu0 0
    %1100 = vmatpush2.bf16.msra.mxu0 0
    %1101 = vmatprep.subr.bf16.mxu0 0
    %1102 = vmatpush2.bf16.msra.mxu0 0
    %1103 = vmatprep.subr.bf16.mxu0 0
    %1104 = vmatpush2.bf16.msra.mxu0 0
    %1105 = vmatprep.mubr.bf16.mxu0 0
    %1106 = vmatmul.mubr.bf16.gmra.mxu0 %v1068
    %v1107 = vpop.f32.mrf.mxu0
    %v1108 = vadd.f32 0.0, %v1107
    %v1109 = vpop.f32.mrf.mxu0
    %v1110 = vpop.f32.mrf.mxu0
    %v1111 = vpop.f32.mrf.mxu0
    %1112 = vdwg.mxu0
    %1113 = vrot.lane.b32.xlu0 %v121, 40
    %v1114 = vpop.permute.xlu0 %1113
    %v1116 = vsel %vm125, %v1064, 0
    %v1119 = vsel %vm252, %v1114, 0
    %1121 = vmatprep.subr.bf16.mxu0 0
    %1122 = vmatpush1.bf16.msra.mxu0 0
    %1123 = vmatprep.subr.bf16.mxu0 0
    %1124 = vmatpush1.bf16.msra.mxu0 0
    %1125 = vmatprep.subr.bf16.mxu0 0
    %1126 = vmatpush1.bf16.msra.mxu0 0
    %1127 = vmatprep.subr.bf16.mxu0 0
    %1128 = vmatpush1.bf16.msra.mxu0 0
    %1129 = vmatprep.subr.bf16.mxu0 0
    %1130 = vmatpush1.bf16.msra.mxu0 0
    %1131 = vmatprep.subr.bf16.mxu0 0
    %1132 = vmatpush1.bf16.msra.mxu0 0
    %1133 = vmatprep.subr.bf16.mxu0 0
    %1134 = vmatpush1.bf16.msra.mxu0 0
    %1135 = vmatprep.subr.bf16.mxu0 0
    %1136 = vmatpush1.bf16.msra.mxu0 %v1119
    %1137 = vmatprep.subr.bf16.mxu0 0
    %1138 = vmatpush2.bf16.msra.mxu0 0
    %1139 = vmatprep.subr.bf16.mxu0 0
    %1140 = vmatpush2.bf16.msra.mxu0 0
    %1141 = vmatprep.subr.bf16.mxu0 0
    %1142 = vmatpush2.bf16.msra.mxu0 0
    %1143 = vmatprep.subr.bf16.mxu0 0
    %1144 = vmatpush2.bf16.msra.mxu0 0
    %1145 = vmatprep.subr.bf16.mxu0 0
    %1146 = vmatpush2.bf16.msra.mxu0 0
    %1147 = vmatprep.subr.bf16.mxu0 0
    %1148 = vmatpush2.bf16.msra.mxu0 0
    %1149 = vmatprep.subr.bf16.mxu0 0
    %1150 = vmatpush2.bf16.msra.mxu0 0
    %1151 = vmatprep.subr.bf16.mxu0 0
    %1152 = vmatpush2.bf16.msra.mxu0 0
    %1153 = vmatprep.mubr.bf16.mxu0 0
    %1154 = vmatmul.mubr.bf16.gmra.mxu0 %v1116
    %v1155 = vpop.f32.mrf.mxu0
    %v1156 = vadd.f32 0.0, %v1155
    %v1157 = vpop.f32.mrf.mxu0
    %v1158 = vpop.f32.mrf.mxu0
    %v1159 = vpop.f32.mrf.mxu0
    %1160 = vdwg.mxu0
    %v1161 = vpack.c.bf16 %v1156, %v1108
    %s1162 = scalar_lea.vmem %s3, 12
    %v1163 = vld [vmem:[%s1162] sm:$0xf]
    %v1165 = vsel %vm125, %v1161, 0
    %v1168 = vsel %vm252, %v1163, 0
    %1170 = vmatprep.subr.bf16.mxu0 0
    %1171 = vmatpush1.bf16.msra.mxu0 0
    %1172 = vmatprep.subr.bf16.mxu0 0
    %1173 = vmatpush1.bf16.msra.mxu0 0
    %1174 = vmatprep.subr.bf16.mxu0 0
    %1175 = vmatpush1.bf16.msra.mxu0 0
    %1176 = vmatprep.subr.bf16.mxu0 0
    %1177 = vmatpush1.bf16.msra.mxu0 0
    %1178 = vmatprep.subr.bf16.mxu0 0
    %1179 = vmatpush1.bf16.msra.mxu0 0
    %1180 = vmatprep.subr.bf16.mxu0 0
    %1181 = vmatpush1.bf16.msra.mxu0 0
    %1182 = vmatprep.subr.bf16.mxu0 0
    %1183 = vmatpush1.bf16.msra.mxu0 0
    %1184 = vmatprep.subr.bf16.mxu0 0
    %1185 = vmatpush1.bf16.msra.mxu0 %v1168
    %1186 = vmatprep.subr.bf16.mxu0 0
    %1187 = vmatpush2.bf16.msra.mxu0 0
    %1188 = vmatprep.subr.bf16.mxu0 0
    %1189 = vmatpush2.bf16.msra.mxu0 0
    %1190 = vmatprep.subr.bf16.mxu0 0
    %1191 = vmatpush2.bf16.msra.mxu0 0
    %1192 = vmatprep.subr.bf16.mxu0 0
    %1193 = vmatpush2.bf16.msra.mxu0 0
    %1194 = vmatprep.subr.bf16.mxu0 0
    %1195 = vmatpush2.bf16.msra.mxu0 0
    %1196 = vmatprep.subr.bf16.mxu0 0
    %1197 = vmatpush2.bf16.msra.mxu0 0
    %1198 = vmatprep.subr.bf16.mxu0 0
    %1199 = vmatpush2.bf16.msra.mxu0 0
    %1200 = vmatprep.subr.bf16.mxu0 0
    %1201 = vmatpush2.bf16.msra.mxu0 0
    %1202 = vmatprep.mubr.bf16.mxu0 0
    %1203 = vmatmul.mubr.bf16.gmra.mxu0 %v1165
    %v1204 = vpop.f32.mrf.mxu0
    %v1205 = vadd.f32 0.0, %v1204
    %v1206 = vpop.f32.mrf.mxu0
    %v1207 = vpop.f32.mrf.mxu0
    %v1208 = vadd.f32 0.0, %v1207
    %v1209 = vpop.f32.mrf.mxu0
    %1210 = vdwg.mxu0
    %v1211 = vadd.f32 %v937, %v1205
    %v1212 = vadd.f32 %v938, %v1208
    %v1213 = vld [vmem:[%s4] sm:$0x1]
    %v1215 = vlaneseq
    %v1216 = vshrl.u32 %v1215, 7
    %v1217 = vsub.s32 0, %v1216
    %v1218 = vrot.slane %v1213, %v1217
    %v1220 = vadd.f32 %v1211, %v1218
    %v1221 = vadd.f32 %v1212, %v1218
    %1222 = vst.msk [vmem:[#allocation4] sm:$0xff] %vm75, %v1220
    %1223 = vst.msk [vmem:[#allocation4 + $0x8] sm:$0xff] %vm75, %v1221
    %v1224 = vadd.f32 %v49, %v1220
    %v1225 = vadd.f32 %v50, %v1221
    %v1226 = vld [vmem:[%s5] sm:$0x1]
    %v1227 = vld [vmem:[%s6] sm:$0x1]
    %v1228 = vsel %vm75, %v1224, 0.0
    %1229 = vadd.xlane.f32.xlu0 %v1228
    %v1230 = vpop.xlane.xlu0 %1229
    %v1231 = vsel %vm75, %v1225, 0.0
    %1232 = vadd.xlane.f32.xlu0 %v1231
    %v1233 = vpop.xlane.xlu0 %1232
    %v1234 = vrcp.pop 32.0
    %v1235 = vmul.f32 %v1230, %v1234
    %v1236 = vmul.f32 %v1233, %v1234
    %v1237 = vsub.f32 %v1224, %v1235
    %v1238 = vsub.f32 %v1225, %v1236
    %v1239 = vmul.f32 %v1237, %v1237
    %v1240 = vmul.f32 %v1238, %v1238
    %v1241 = vsel %vm75, %v1239, 0.0
    %1242 = vadd.xlane.f32.xlu0 %v1241
    %v1243 = vpop.xlane.xlu0 %1242
    %v1244 = vsel %vm75, %v1240, 0.0
    %1245 = vadd.xlane.f32.xlu0 %v1244
    %v1246 = vpop.xlane.xlu0 %1245
    %v1247 = vmul.f32 %v1243, %v1234
    %v1248 = vmul.f32 %v1246, %v1234
    %v1249 = vadd.f32 %v1247, 1e-12
    %v1250 = vadd.f32 %v1248, 1e-12
    %v1251 = vrsqrt.pop %v1249
    %v1252 = vrsqrt.pop %v1250
    %v1253 = vmul.f32 %v1237, %v1251
    %v1254 = vmul.f32 %v1238, %v1252
    %v1256 = vlaneseq
    %v1257 = vshrl.u32 %v1256, 7
    %v1258 = vsub.s32 0, %v1257
    %v1259 = vrot.slane %v1226, %v1258
    %v1261 = vmul.f32 %v1253, %v1259
    %v1262 = vmul.f32 %v1254, %v1259
    %v1264 = vlaneseq
    %v1265 = vshrl.u32 %v1264, 7
    %v1266 = vsub.s32 0, %v1265
    %v1267 = vrot.slane %v1227, %v1266
    %v1269 = vadd.f32 %v1261, %v1267
    %v1270 = vadd.f32 %v1262, %v1267
    %v1271 = vpack.c.bf16 %v1270, %v1269
    %v1272 = vld [vmem:[%s7] sm:$0xf]
    %v1273 = vld [vmem:[%s7 + $0x4] sm:$0xf]
    %v1274 = vld [vmem:[%s7 + $0x8] sm:$0xf]
    %v1275 = vld [vmem:[%s7 + $0xc] sm:$0xf]
    %v1276 = vld [vmem:[%s8] sm:$0x1]
    %v1278 = vlaneseq
    %v1279 = vshrl.u32 %v1278, 7
    %v1280 = vsub.s32 0, %v1279
    %v1281 = vrot.slane %v1276, %v1280
    %v1287 = vunpack.c.l.b16 %v1272
    %v1288 = vunpack.c.l.b16 %v1273
    %v1289 = vunpack.c.l.b16 %v1274
    %v1290 = vunpack.c.l.b16 %v1275
    %v1291 = vpack.c.b16 %v1288, %v1287
    %v1292 = vpack.c.b16 %v1290, %v1289
    %v1296 = vsel %vm75, %v1271, 0
    %1298 = vmatprep.subr.bf16.mxu0 0
    %1299 = vmatpush1.bf16.msra.mxu0 0
    %1300 = vmatprep.subr.bf16.mxu0 0
    %1301 = vmatpush1.bf16.msra.mxu0 0
    %1302 = vmatprep.subr.bf16.mxu0 0
    %1303 = vmatpush1.bf16.msra.mxu0 0
    %1304 = vmatprep.subr.bf16.mxu0 0
    %1305 = vmatpush1.bf16.msra.mxu0 0
    %1306 = vmatprep.subr.bf16.mxu0 0
    %1307 = vmatpush1.bf16.msra.mxu0 0
    %1308 = vmatprep.subr.bf16.mxu0 0
    %1309 = vmatpush1.bf16.msra.mxu0 0
    %1310 = vmatprep.subr.bf16.mxu0 0
    %1311 = vmatpush1.bf16.msra.mxu0 %v1292
    %1312 = vmatprep.subr.bf16.mxu0 0
    %1313 = vmatpush1.bf16.msra.mxu0 %v1291
    %1314 = vmatprep.subr.bf16.mxu0 0
    %1315 = vmatpush2.bf16.msra.mxu0 0
    %1316 = vmatprep.subr.bf16.mxu0 0
    %1317 = vmatpush2.bf16.msra.mxu0 0
    %1318 = vmatprep.subr.bf16.mxu0 0
    %1319 = vmatpush2.bf16.msra.mxu0 0
    %1320 = vmatprep.subr.bf16.mxu0 0
    %1321 = vmatpush2.bf16.msra.mxu0 0
    %1322 = vmatprep.subr.bf16.mxu0 0
    %1323 = vmatpush2.bf16.msra.mxu0 0
    %1324 = vmatprep.subr.bf16.mxu0 0
    %1325 = vmatpush2.bf16.msra.mxu0 0
    %1326 = vmatprep.subr.bf16.mxu0 0
    %1327 = vmatpush2.bf16.msra.mxu0 0
    %1328 = vmatprep.subr.bf16.mxu0 0
    %1329 = vmatpush2.bf16.msra.mxu0 0
    %1330 = vmatprep.mubr.bf16.mxu0 0
    %1331 = vmatmul.mubr.bf16.gmra.mxu0 %v1296
    %v1332 = vpop.f32.mrf.mxu0
    %v1333 = vadd.f32 %v1281, %v1332
    %v1334 = vpop.f32.mrf.mxu0
    %v1335 = vpop.f32.mrf.mxu0
    %v1336 = vadd.f32 %v1281, %v1335
    %v1337 = vpop.f32.mrf.mxu0
    %1338 = vdwg.mxu0
    %v1339 = vmul.f32 %v1333, 0.5
    %v1340 = vmul.f32 %v1336, 0.5
    %v1341 = vmul.f32 %v1333, 0.70710677
    %v1342 = vmul.f32 %v1336, 0.70710677
    %v1343 = vand.u32 2147483647, %v1341
    %v1344 = vand.u32 2147483647, %v1342
    %v1345 = vmul.f32 %v1343, 0.3275911
    %v1346 = vmul.f32 %v1344, 0.3275911
    %v1347 = vadd.f32 %v1345, 1.0
    %v1348 = vadd.f32 %v1346, 1.0
    %v1349 = vrcp.pop %v1347
    %v1350 = vrcp.pop %v1348
    %v1351 = vmul.f32 %v1349, 1.0614054
    %v1352 = vmul.f32 %v1350, 1.0614054
    %v1353 = vadd.f32 %v1351, -1.4531521
    %v1354 = vadd.f32 %v1352, -1.4531521
    %v1355 = vmul.f32 %v1353, %v1349
    %v1356 = vmul.f32 %v1354, %v1350
    %v1357 = vadd.f32 %v1355, 1.4214138
    %v1358 = vadd.f32 %v1356, 1.4214138
    %v1359 = vmul.f32 %v1357, %v1349
    %v1360 = vmul.f32 %v1358, %v1350
    %v1361 = vadd.f32 %v1359, -0.28449672
    %v1362 = vadd.f32 %v1360, -0.28449672
    %v1363 = vmul.f32 %v1361, %v1349
    %v1364 = vmul.f32 %v1362, %v1350
    %v1365 = vadd.f32 %v1363, 0.2548296
    %v1366 = vadd.f32 %v1364, 0.2548296
    %v1367 = vmul.f32 %v1365, %v1349
    %v1368 = vmul.f32 %v1366, %v1350
    %v1369 = vsub.f32 0.0, %v1343
    %v1370 = vsub.f32 0.0, %v1344
    %v1371 = vmul.f32 %v1369, %v1343
    %v1372 = vmul.f32 %v1370, %v1344
    %v1373 = vmul.f32 %v1371, 1.442695
    %v1374 = vpow.pop %v1373
    %v1375 = vmul.f32 %v1372, 1.442695
    %v1376 = vpow.pop %v1375
    %v1377 = vmul.f32 %v1367, %v1374
    %v1378 = vmul.f32 %v1368, %v1376
    %v1379 = vsub.f32 1.0, %v1377
    %v1380 = vsub.f32 1.0, %v1378
    %vm1381 = vcmp.lt.f32.partialorder %v1341, 0.0
    %vm1382 = vcmp.lt.f32.partialorder %v1342, 0.0
    %v1383 = vsub.f32 0.0, %v1379
    %v1384 = vsub.f32 0.0, %v1380
    %v1385 = vsel %vm1381, %v1383, %v1379
    %v1386 = vsel %vm1382, %v1384, %v1380
    %v1387 = vadd.f32 %v1385, 1.0
    %v1388 = vadd.f32 %v1386, 1.0
    %v1389 = vmul.f32 %v1339, %v1387
    %v1390 = vmul.f32 %v1340, %v1388
    %v1391 = vpack.c.bf16 %v1390, %v1389
    %v1392 = vld [vmem:[%s9] sm:$0xf]
    %v1393 = vld [vmem:[%s9 + $0x4] sm:$0xf]
    %v1394 = vld [vmem:[%s9 + $0x8] sm:$0xf]
    %v1395 = vld [vmem:[%s9 + $0xc] sm:$0xf]
    %v1396 = vld [vmem:[%s9 + $0x10] sm:$0xf]
    %v1397 = vld [vmem:[%s9 + $0x14] sm:$0xf]
    %v1398 = vld [vmem:[%s9 + $0x18] sm:$0xf]
    %v1399 = vld [vmem:[%s9 + $0x1c] sm:$0xf]
    %v1400 = vld [vmem:[%s9 + $0x20] sm:$0xf]
    %v1401 = vld [vmem:[%s9 + $0x24] sm:$0xf]
    %v1402 = vld [vmem:[%s9 + $0x28] sm:$0xf]
    %v1403 = vld [vmem:[%s9 + $0x2c] sm:$0xf]
    %v1404 = vld [vmem:[%s9 + $0x30] sm:$0xf]
    %v1405 = vld [vmem:[%s9 + $0x34] sm:$0xf]
    %v1406 = vld [vmem:[%s9 + $0x38] sm:$0xf]
    %v1407 = vld [vmem:[%s9 + $0x3c] sm:$0xf]
    %v1408 = vld [vmem:[%s10] sm:$0x1]
    %v1410 = vlaneseq
    %v1411 = vshrl.u32 %v1410, 7
    %v1412 = vsub.s32 0, %v1411
    %v1413 = vrot.slane %v1408, %v1412
    %v1431 = vunpack.c.l.b16 %v1392
    %v1432 = vunpack.c.l.b16 %v1393
    %v1433 = vunpack.c.l.b16 %v1394
    %v1434 = vunpack.c.l.b16 %v1395
    %v1435 = vunpack.c.l.b16 %v1396
    %v1436 = vunpack.c.l.b16 %v1397
    %v1437 = vunpack.c.l.b16 %v1398
    %v1438 = vunpack.c.l.b16 %v1399
    %v1439 = vunpack.c.l.b16 %v1400
    %v1440 = vunpack.c.l.b16 %v1401
    %v1441 = vunpack.c.l.b16 %v1402
    %v1442 = vunpack.c.l.b16 %v1403
    %v1443 = vunpack.c.l.b16 %v1404
    %v1444 = vunpack.c.l.b16 %v1405
    %v1445 = vunpack.c.l.b16 %v1406
    %v1446 = vunpack.c.l.b16 %v1407
    %v1447 = vpack.c.b16 %v1432, %v1431
    %v1448 = vpack.c.b16 %v1434, %v1433
    %v1449 = vpack.c.b16 %v1436, %v1435
    %v1450 = vpack.c.b16 %v1438, %v1437
    %v1451 = vpack.c.b16 %v1440, %v1439
    %v1452 = vpack.c.b16 %v1442, %v1441
    %v1453 = vpack.c.b16 %v1444, %v1443
    %v1454 = vpack.c.b16 %v1446, %v1445
    %1463 = vmatprep.subr.bf16.mxu0 0
    %1464 = vmatpush1.bf16.msra.mxu0 %v1454
    %1465 = vmatprep.subr.bf16.mxu0 0
    %1466 = vmatpush1.bf16.msra.mxu0 %v1453
    %1467 = vmatprep.subr.bf16.mxu0 0
    %1468 = vmatpush1.bf16.msra.mxu0 %v1452
    %1469 = vmatprep.subr.bf16.mxu0 0
    %1470 = vmatpush1.bf16.msra.mxu0 %v1451
    %1471 = vmatprep.subr.bf16.mxu0 0
    %1472 = vmatpush1.bf16.msra.mxu0 %v1450
    %1473 = vmatprep.subr.bf16.mxu0 0
    %1474 = vmatpush1.bf16.msra.mxu0 %v1449
    %1475 = vmatprep.subr.bf16.mxu0 0
    %1476 = vmatpush1.bf16.msra.mxu0 %v1448
    %1477 = vmatprep.subr.bf16.mxu0 0
    %1478 = vmatpush1.bf16.msra.mxu0 %v1447
    %1479 = vmatprep.subr.bf16.mxu0 0
    %1480 = vmatpush2.bf16.msra.mxu0 0
    %1481 = vmatprep.subr.bf16.mxu0 0
    %1482 = vmatpush2.bf16.msra.mxu0 0
    %1483 = vmatprep.subr.bf16.mxu0 0
    %1484 = vmatpush2.bf16.msra.mxu0 0
    %1485 = vmatprep.subr.bf16.mxu0 0
    %1486 = vmatpush2.bf16.msra.mxu0 0
    %1487 = vmatprep.subr.bf16.mxu0 0
    %1488 = vmatpush2.bf16.msra.mxu0 0
    %1489 = vmatprep.subr.bf16.mxu0 0
    %1490 = vmatpush2.bf16.msra.mxu0 0
    %1491 = vmatprep.subr.bf16.mxu0 0
    %1492 = vmatpush2.bf16.msra.mxu0 0
    %1493 = vmatprep.subr.bf16.mxu0 0
    %1494 = vmatpush2.bf16.msra.mxu0 0
    %1495 = vmatprep.mubr.bf16.mxu0 0
    %1496 = vmatmul.mubr.bf16.gmra.mxu0 %v1391
    %v1497 = vpop.f32.mrf.mxu0
    %v1498 = vadd.f32 %v1413, %v1497
    %v1499 = vpop.f32.mrf.mxu0
    %v1500 = vpop.f32.mrf.mxu0
    %v1501 = vadd.f32 %v1413, %v1500
    %v1502 = vpop.f32.mrf.mxu0
    %1503 = vdwg.mxu0
    %v1504 = vadd.f32 %v1269, %v1498
    %v1505 = vadd.f32 %v1270, %v1501
    %v1506 = vld [vmem:[%s11] sm:$0x1]
    %v1507 = vld [vmem:[%s12] sm:$0x1]
    %v1508 = vsel %vm75, %v1504, 0.0
    %1509 = vadd.xlane.f32.xlu0 %v1508
    %v1510 = vpop.xlane.xlu0 %1509
    %v1511 = vsel %vm75, %v1505, 0.0
    %1512 = vadd.xlane.f32.xlu0 %v1511
    %v1513 = vpop.xlane.xlu0 %1512
    %v1514 = vmul.f32 %v1510, %v1234
    %v1515 = vmul.f32 %v1513, %v1234
    %v1516 = vsub.f32 %v1504, %v1514
    %v1517 = vsub.f32 %v1505, %v1515
    %v1518 = vmul.f32 %v1516, %v1516
    %v1519 = vmul.f32 %v1517, %v1517
    %v1520 = vsel %vm75, %v1518, 0.0
    %1521 = vadd.xlane.f32.xlu0 %v1520
    %v1522 = vpop.xlane.xlu0 %1521
    %v1523 = vsel %vm75, %v1519, 0.0
    %1524 = vadd.xlane.f32.xlu0 %v1523
    %v1525 = vpop.xlane.xlu0 %1524
    %v1526 = vmul.f32 %v1522, %v1234
    %v1527 = vmul.f32 %v1525, %v1234
    %v1528 = vadd.f32 %v1526, 1e-12
    %v1529 = vadd.f32 %v1527, 1e-12
    %v1530 = vrsqrt.pop %v1528
    %v1531 = vrsqrt.pop %v1529
    %v1532 = vmul.f32 %v1516, %v1530
    %v1533 = vmul.f32 %v1517, %v1531
    %v1535 = vlaneseq
    %v1536 = vshrl.u32 %v1535, 7
    %v1537 = vsub.s32 0, %v1536
    %v1538 = vrot.slane %v1506, %v1537
    %v1540 = vmul.f32 %v1532, %v1538
    %v1541 = vmul.f32 %v1533, %v1538
    %v1543 = vlaneseq
    %v1544 = vshrl.u32 %v1543, 7
    %v1545 = vsub.s32 0, %v1544
    %v1546 = vrot.slane %v1507, %v1545
    %v1548 = vadd.f32 %v1540, %v1546
    %v1549 = vadd.f32 %v1541, %v1546
    %1550 = vst.msk [vmem:[#allocation2] sm:$0xff] %vm75, %v1548
    %1551 = vst.msk [vmem:[#allocation2 + $0x8] sm:$0xff] %vm75, %v1549
    // Predicated region
    $region54: #{tpu_custom_call.1} parent=1 // pred_check
      _
    $region55: #{tpu_custom_call.1} parent=1 // pred_check_branch
      %1553 = sbr.rel (0) target = $region57
    $region56: #{tpu_custom_call.1} parent=1 // pred_region
      %s1555 = ssub.s32 256, 256
      %1556 = vsyncadd [#allocation3], %s1555
      %s1557 = sshll.u32 [#allocation2], 4
      %s1558 = int_to_ptr.vmem [resolvable:$true] %s1557
      %1563 = dma.vmem_to_hbm [thread:$0]  %s1558, 256, %s13, [#allocation3], 128, 128, 8
    $region57: #{tpu_custom_call.1} parent=1 // pred_fallthru
      _
    // Predicated region
    $region58: #{tpu_custom_call.1} parent=1 // pred_check
      _
    $region59: #{tpu_custom_call.1} parent=1 // pred_check_branch
      %1565 = sbr.rel (0) target = $region61
    $region60: #{tpu_custom_call.1} parent=1 // pred_region
      %s1567 = ssub.s32 256, 256
      %1568 = vsyncadd [#allocation5], %s1567
      %s1569 = sshll.u32 [#allocation4], 4
      %s1570 = int_to_ptr.vmem [resolvable:$true] %s1569
      %1575 = dma.vmem_to_hbm [thread:$0]  %s1570, 256, %s14, [#allocation5], 128, 128, 8
    $region61: #{tpu_custom_call.1} parent=1 // pred_fallthru
      _
    // Predicated region
    $region62: #{tpu_custom_call.1} parent=1 // pred_check
      _
    $region63: #{tpu_custom_call.1} parent=1 // pred_check_branch
      %1577 = sbr.rel (0) target = $region65
    $region64: #{tpu_custom_call.1} parent=1 // pred_region
      %1578 = dma.done [#allocation3], 256
    $region65: #{tpu_custom_call.1} parent=1 // pred_fallthru
      _
    // Predicated region
    $region66: #{tpu_custom_call.1} parent=1 // pred_check
      _
    $region67: #{tpu_custom_call.1} parent=1 // pred_check_branch
      %1580 = sbr.rel (0) target = $region69
    $region68: #{tpu_custom_call.1} parent=1 // pred_region
      %1581 = dma.done [#allocation5], 256
    $region69: #{tpu_custom_call.1} parent=1 // pred_fallthru
      _
    %1582 = vsyncpa [#allocation3], 1
    %1583 = vsyncpa [#allocation5], 1

</llo_original>
